<compile_context>
chip_gen: v7x
topology: tpu7x:2x2x1
jax: 0.10.0
libtpu: 0.0.40
codegen_flags: <defaults>
</compile_context>

<pallas_src>
import functools

import jax
import jax.numpy as jnp
from jax.experimental import pallas as pl
from jax.experimental.pallas import tpu as pltpu


def _vmem_spec():
    return pl.BlockSpec(memory_space=pltpu.MemorySpace.VMEM)


# ---------------------------------------------------------------------------
# Fused kernel: affine proj + cross-attention decoder layer (MHA + FFN + LNs)
# ---------------------------------------------------------------------------
def _cmra_kernel(q_ref, m_ref,
                 waff_ref, baff_ref,
                 wq_ref, bq_ref,
                 wkv_ref, bkv_ref,
                 wo_ref, bo_ref,
                 ln1_ref, ln2_ref,
                 w1_ref, b1_ref,
                 w2_ref, b2_ref,
                 o_ref,
                 *, nhead, batch, t_q, t_m, matmul_dtype):
    d = wq_ref.shape[0]
    hd = d // nhead
    seq_kv = t_m + t_q
    rows_q = batch * t_q
    scale = 1.0 / float(hd) ** 0.5          # PyTorch MHA scaling (1/sqrt(head_dim))

    def mm(x, w):
        # (M,K)@(K,N) on the MXU; bf16 operands on v6e/v7x, f32 accumulation always.
        return jnp.dot(x.astype(matmul_dtype), w.astype(matmul_dtype),
                       preferred_element_type=jnp.float32)

    def layer_norm(z, gb):                   # gb: (2, D) = [gamma; beta], eps=1e-5
        mu = jnp.mean(z, axis=-1, keepdims=True)
        var = jnp.mean(jnp.square(z - mu), axis=-1, keepdims=True)
        return (z - mu) * jax.lax.rsqrt(var + 1e-5) * gb[0] + gb[1]

    # ---- affine_matrix: project query rows to d_model ----------------------
    tgt = mm(q_ref[...], waff_ref[...]) + baff_ref[...]          # (B*Tq, D) f32

    # ---- Q projection (scaling folded in) ----------------------------------
    q = (mm(tgt, wq_ref[...]) + bq_ref[...]) * scale             # (B*Tq, D)

    # ---- memory = cat([memory, tgt], dim=seq); fused K/V projection --------
    mem3 = m_ref[...].reshape(batch, t_m, d)
    tgt3 = tgt.reshape(batch, t_q, d)
    src = jnp.concatenate([mem3, tgt3], axis=1).reshape(batch * seq_kv, d)
    kv = mm(src, wkv_ref[...]) + bkv_ref[...]                    # (B*L, 2D)

    q3 = q.reshape(batch, t_q, d).astype(matmul_dtype)
    k3 = kv[:, :d].reshape(batch, seq_kv, d).astype(matmul_dtype)
    v3 = kv[:, d:].reshape(batch, seq_kv, d).astype(matmul_dtype)
    wo = wo_ref[...].astype(matmul_dtype)                        # (D, D) = Wo^T

    # ---- per-head scaled-dot-product attention, out_proj folded in ----------
    # nhead=4 is static so this unrolls at trace time; each head's context
    # directly multiplies its (hd, D) slab of Wo^T and accumulates, so no
    # (B*Tq, D) context scratch and no masked partial-lane stores are needed.
    attn = jnp.zeros((rows_q, d), jnp.float32)
    for h in range(nhead):
        sl = slice(h * hd, (h + 1) * hd)
        s = jnp.einsum('bqd,bkd->bqk', q3[:, :, sl], k3[:, :, sl],
                       preferred_element_type=jnp.float32)       # (B, Tq, L)
        s = s - jnp.max(s, axis=-1, keepdims=True)
        e = jnp.exp(s)
        p = e * pl.reciprocal(jnp.sum(e, axis=-1, keepdims=True), approx=True)
        ctx_h = jnp.einsum('bqk,bkd->bqd', p.astype(matmul_dtype), v3[:, :, sl],
                           preferred_element_type=jnp.float32)   # (B, Tq, hd)
        attn = attn + mm(ctx_h.reshape(rows_q, hd), wo[sl, :])   # head slab of out_proj
    attn = attn + bo_ref[...]

    # ---- residual + LayerNorm1 ----------------------------------------------
    h1 = layer_norm(tgt + attn, ln1_ref[...])

    # ---- FFN (relu) + residual + LayerNorm2 ---------------------------------
    # TODO(synk): at realistic AVSBench sizes, tile the 1024-wide FFN (and the
    # row dim) over a grid axis with 'parallel' semantics for v7x's 2 TCs
    # instead of keeping the whole (rows, 1024) intermediate resident.
    f = jnp.maximum(mm(h1, w1_ref[...]) + b1_ref[...], 0.0)
    ff = mm(f, w2_ref[...]) + b2_ref[...]
    h2 = layer_norm(h1 + ff, ln2_ref[...])

    o_ref[...] = h2.astype(o_ref.dtype)


# ---------------------------------------------------------------------------
# Module forward (jitted wrapper around the single pallas_call)
# ---------------------------------------------------------------------------
@functools.partial(jax.jit, static_argnames=("nhead", "matmul_dtype"))
def cross_modal_relation_att_forward(query_feature, memory_feature, params,
                                     *, nhead=4, matmul_dtype=jnp.float32):
    # query_feature : (T_q, B, input_dim)   memory_feature : (T_m, B, d_model)
    t_q, b, _ = query_feature.shape
    t_m, _, d_model = memory_feature.shape

    # seq-first (T,B,C) -> batch-major rows (B*T, C); cheap layout plumbing
    # inside the same jit as the fused kernel.
    q_rows = jnp.transpose(query_feature, (1, 0, 2)).reshape(b * t_q, -1)
    m_rows = jnp.transpose(memory_feature, (1, 0, 2)).reshape(b * t_m, d_model)

    kernel = functools.partial(_cmra_kernel, nhead=nhead, batch=b,
                               t_q=t_q, t_m=t_m, matmul_dtype=matmul_dtype)
    out_rows = pl.pallas_call(
        kernel,
        out_shape=jax.ShapeDtypeStruct((b * t_q, d_model), query_feature.dtype),
        in_specs=[_vmem_spec()] * (2 + len(params)),
        out_specs=_vmem_spec(),
    )(q_rows, m_rows, *params)

    return jnp.transpose(out_rows.reshape(b, t_q, d_model), (1, 0, 2))


def pick_matmul_dtype():
    """bf16 matmul operands (f32 accumulation) on bf16-native chips (v6e/v7x);
    plain f32 on v5e and anything unrecognised."""
    try:
        kind = jax.devices()[0].device_kind.lower()
    except Exception:
        return jnp.float32
    if ("v6" in kind) or ("v7" in kind) or ("7x" in kind):
        return jnp.bfloat16
    return jnp.float32


# ---------------------------------------------------------------------------
# Deterministic synthetic parameters (stored pre-transposed for the kernel)
# ---------------------------------------------------------------------------
def init_params(key, input_dim, d_model, dim_ff=1024, nhead=4):
    del nhead  # head count affects only the kernel, not parameter shapes
    ks = jax.random.split(key, 10)
    waff = 0.05 * jax.random.normal(ks[0], (d_model, input_dim), jnp.float32)
    baff = 0.01 * jax.random.normal(ks[9], (d_model,), jnp.float32)
    in_w = 0.05 * jax.random.normal(ks[1], (3 * d_model, d_model), jnp.float32)
    in_b = 0.01 * jax.random.normal(ks[2], (3 * d_model,), jnp.float32)
    wo = 0.05 * jax.random.normal(ks[3], (d_model, d_model), jnp.float32)
    bo = 0.01 * jax.random.normal(ks[4], (d_model,), jnp.float32)
    w1 = 0.05 * jax.random.normal(ks[5], (dim_ff, d_model), jnp.float32)
    b1 = 0.01 * jax.random.normal(ks[6], (dim_ff,), jnp.float32)
    w2 = 0.05 * jax.random.normal(ks[7], (d_model, dim_ff), jnp.float32)
    b2 = 0.01 * jax.random.normal(ks[8], (d_model,), jnp.float32)
    ones = jnp.ones((d_model,), jnp.float32)
    zeros = jnp.zeros((d_model,), jnp.float32)

    # All weights PRE-TRANSPOSED so every in-kernel contraction is (M,K)@(K,N).
    return (
        waff.T,                                    # (Cin, D)  affine_matrix
        baff.reshape(1, d_model),                  # affine bias
        in_w[:d_model].T,                          # (D, D)    Wq^T
        in_b[:d_model].reshape(1, d_model),        # bq
        in_w[d_model:].T,                          # (D, 2D)   [Wk; Wv]^T  (k: cols 0:D, v: cols D:2D)
        in_b[d_model:].reshape(1, 2 * d_model),    # [bk, bv]
        wo.T,                                      # (D, D)    out_proj Wo^T
        bo.reshape(1, d_model),
        jnp.stack([ones, zeros]),                  # (2, D)    norm1 gamma/beta
        jnp.stack([ones, zeros]),                  # (2, D)    norm2 gamma/beta
        w1.T,                                      # (D, FF)   linear1
        b1.reshape(1, dim_ff),
        w2.T,                                      # (FF, D)   linear2
        b2.reshape(1, d_model),
    )


# ---------------------------------------------------------------------------
# Pure-JAX reference (same math, no Pallas) for a correctness check
# ---------------------------------------------------------------------------
def _reference_forward(query_feature, memory_feature, params, nhead):
    (waffT, baff, wqT, bq, wkvT, bkv, woT, bo,
     ln1, ln2, w1T, b1, w2T, b2) = params
    t_q, b, _ = query_feature.shape
    t_m, _, d = memory_feature.shape
    hd = d // nhead
    scale = 1.0 / float(hd) ** 0.5

    def ln(z, gb):
        mu = z.mean(-1, keepdims=True)
        var = ((z - mu) ** 2).mean(-1, keepdims=True)
        return (z - mu) / jnp.sqrt(var + 1e-5) * gb[0] + gb[1]

    q_rows = jnp.transpose(query_feature, (1, 0, 2)).reshape(b * t_q, -1)
    m_rows = jnp.transpose(memory_feature, (1, 0, 2)).reshape(b * t_m, d)

    tgt = q_rows @ waffT + baff
    q = (tgt @ wqT + bq) * scale
    src = jnp.concatenate(
        [m_rows.reshape(b, t_m, d), tgt.reshape(b, t_q, d)], axis=1)
    kv = src.reshape(b * (t_m + t_q), d) @ wkvT + bkv
    k = kv[:, :d].reshape(b, t_m + t_q, d)
    v = kv[:, d:].reshape(b, t_m + t_q, d)
    q3 = q.reshape(b, t_q, d)

    ctxs = []
    for h in range(nhead):
        sl = slice(h * hd, (h + 1) * hd)
        s = jnp.einsum('bqd,bkd->bqk', q3[:, :, sl], k[:, :, sl])
        p = jax.nn.softmax(s, axis=-1)
        ctxs.append(jnp.einsum('bqk,bkd->bqd', p, v[:, :, sl]))
    ctx = jnp.concatenate(ctxs, axis=-1).reshape(b * t_q, d)

    attn = ctx @ woT + bo
    h1 = ln(tgt + attn, ln1)
    f = jnp.maximum(h1 @ w1T + b1, 0.0)
    h2 = ln(h1 + f @ w2T + b2, ln2)
    return jnp.transpose(h2.reshape(b, t_q, d), (1, 0, 2))


if __name__ == "__main__":
    T_Q, T_M, B = 8, 8, 2
    INPUT_DIM, D_MODEL, NHEAD, DIM_FF = 16, 32, 4, 1024   # d_model divisible by nhead

    key = jax.random.PRNGKey(0)
    k_q, k_m, k_p = jax.random.split(key, 3)
    query_feature = jax.random.normal(k_q, (T_Q, B, INPUT_DIM), jnp.float32)
    memory_feature = jax.random.normal(k_m, (T_M, B, D_MODEL), jnp.float32)
    params = init_params(k_p, INPUT_DIM, D_MODEL, dim_ff=DIM_FF, nhead=NHEAD)

    out = cross_modal_relation_att_forward(
        query_feature, memory_feature, params,
        nhead=NHEAD, matmul_dtype=pick_matmul_dtype())
    out = jax.block_until_ready(out)

    assert out.shape == (T_Q, B, D_MODEL)
    assert bool(jnp.all(jnp.isfinite(out)))

    ref = _reference_forward(query_feature, memory_feature, params, NHEAD)
    max_err = float(jnp.max(jnp.abs(out - ref)))
    # loose bound: covers bf16-operand matmuls and approx reciprocal on v6e/v7x
    assert max_err < 0.08, f"kernel/reference mismatch: max abs err {max_err}"

    print("KERNEL_OK")
</pallas_src>

<mosaic_0001>
module attributes {stable_mosaic.version = 11 : i64} {
  func.func @_cmra_kernel(%arg0: memref<16x16xf32, #tpu.memory_space<vmem>>, %arg1: memref<16x32xf32, #tpu.memory_space<vmem>>, %arg2: memref<16x32xf32, #tpu.memory_space<vmem>>, %arg3: memref<1x32xf32, #tpu.memory_space<vmem>>, %arg4: memref<32x32xf32, #tpu.memory_space<vmem>>, %arg5: memref<1x32xf32, #tpu.memory_space<vmem>>, %arg6: memref<32x64xf32, #tpu.memory_space<vmem>>, %arg7: memref<1x64xf32, #tpu.memory_space<vmem>>, %arg8: memref<32x32xf32, #tpu.memory_space<vmem>>, %arg9: memref<1x32xf32, #tpu.memory_space<vmem>>, %arg10: memref<2x32xf32, #tpu.memory_space<vmem>>, %arg11: memref<2x32xf32, #tpu.memory_space<vmem>>, %arg12: memref<32x1024xf32, #tpu.memory_space<vmem>>, %arg13: memref<1x1024xf32, #tpu.memory_space<vmem>>, %arg14: memref<1024x32xf32, #tpu.memory_space<vmem>>, %arg15: memref<1x32xf32, #tpu.memory_space<vmem>>, %arg16: memref<16x32xf32, #tpu.memory_space<vmem>>) attributes {dimension_semantics = [], scalar_prefetch = 0 : i64, scratch_operands = 0 : i64, tpu.core_type = #tpu.core_type<tc>} {
    %c0 = arith.constant 0 : index
    %c0_0 = arith.constant 0 : index
    %0 = vector.load %arg0[%c0, %c0_0] : memref<16x16xf32, #tpu.memory_space<vmem>>, vector<16x16xf32>
    %c0_1 = arith.constant 0 : index
    %c0_2 = arith.constant 0 : index
    %1 = vector.load %arg2[%c0_1, %c0_2] : memref<16x32xf32, #tpu.memory_space<vmem>>, vector<16x32xf32>
    %cst = arith.constant dense<0.000000e+00> : vector<16x32xf32>
    %2 = tpu.matmul %0, %1, %cst {dimension_numbers = #tpu.dot_dimension_numbers<[1], [0], [0], [1], [0, 0, 1, 1], [], []>} : vector<16x16xf32>, vector<16x32xf32>, vector<16x32xf32> -> vector<16x32xf32>
    %c0_3 = arith.constant 0 : index
    %c0_4 = arith.constant 0 : index
    %3 = vector.load %arg3[%c0_3, %c0_4] : memref<1x32xf32, #tpu.memory_space<vmem>>, vector<1x32xf32>
    %4 = vector.broadcast %3 : vector<1x32xf32> to vector<16x32xf32>
    %5 = arith.addf %2, %4 : vector<16x32xf32>
    %c0_5 = arith.constant 0 : index
    %c0_6 = arith.constant 0 : index
    %6 = vector.load %arg4[%c0_5, %c0_6] : memref<32x32xf32, #tpu.memory_space<vmem>>, vector<32x32xf32>
    %cst_7 = arith.constant dense<0.000000e+00> : vector<16x32xf32>
    %7 = tpu.matmul %5, %6, %cst_7 {dimension_numbers = #tpu.dot_dimension_numbers<[1], [0], [0], [1], [0, 0, 1, 1], [], []>} : vector<16x32xf32>, vector<32x32xf32>, vector<16x32xf32> -> vector<16x32xf32>
    %c0_8 = arith.constant 0 : index
    %c0_9 = arith.constant 0 : index
    %8 = vector.load %arg5[%c0_8, %c0_9] : memref<1x32xf32, #tpu.memory_space<vmem>>, vector<1x32xf32>
    %9 = vector.broadcast %8 : vector<1x32xf32> to vector<16x32xf32>
    %10 = arith.addf %7, %9 : vector<16x32xf32>
    %cst_10 = arith.constant 0.353553385 : f32
    %11 = vector.broadcast %cst_10 : f32 to vector<16x32xf32>
    %12 = arith.mulf %10, %11 : vector<16x32xf32>
    %c0_11 = arith.constant 0 : index
    %c0_12 = arith.constant 0 : index
    %13 = vector.load %arg1[%c0_11, %c0_12] : memref<16x32xf32, #tpu.memory_space<vmem>>, vector<16x32xf32>
    %14 = vector.shape_cast %13 : vector<16x32xf32> to vector<2x8x32xf32>
    %15 = vector.shape_cast %5 : vector<16x32xf32> to vector<2x8x32xf32>
    %16 = tpu.concatenate %14, %15 in 1 : vector<2x8x32xf32>, vector<2x8x32xf32> -> vector<2x16x32xf32>
    %17 = vector.shape_cast %16 : vector<2x16x32xf32> to vector<32x32xf32>
    %c0_13 = arith.constant 0 : index
    %c0_14 = arith.constant 0 : index
    %18 = vector.load %arg6[%c0_13, %c0_14] : memref<32x64xf32, #tpu.memory_space<vmem>>, vector<32x64xf32>
    %cst_15 = arith.constant dense<0.000000e+00> : vector<32x64xf32>
    %19 = tpu.matmul %17, %18, %cst_15 {dimension_numbers = #tpu.dot_dimension_numbers<[1], [0], [0], [1], [0, 0, 1, 1], [], []>} : vector<32x32xf32>, vector<32x64xf32>, vector<32x64xf32> -> vector<32x64xf32>
    %c0_16 = arith.constant 0 : index
    %c0_17 = arith.constant 0 : index
    %20 = vector.load %arg7[%c0_16, %c0_17] : memref<1x64xf32, #tpu.memory_space<vmem>>, vector<1x64xf32>
    %21 = vector.broadcast %20 : vector<1x64xf32> to vector<32x64xf32>
    %22 = arith.addf %19, %21 : vector<32x64xf32>
    %23 = vector.shape_cast %12 : vector<16x32xf32> to vector<2x8x32xf32>
    %24 = vector.extract_strided_slice %22 {offsets = [0, 0], sizes = [32, 32], strides = [1, 1]} : vector<32x64xf32> to vector<32x32xf32>
    %25 = vector.shape_cast %24 : vector<32x32xf32> to vector<2x16x32xf32>
    %26 = vector.extract_strided_slice %22 {offsets = [0, 32], sizes = [32, 32], strides = [1, 1]} : vector<32x64xf32> to vector<32x32xf32>
    %27 = vector.shape_cast %26 : vector<32x32xf32> to vector<2x16x32xf32>
    %c0_18 = arith.constant 0 : index
    %c0_19 = arith.constant 0 : index
    %28 = vector.load %arg8[%c0_18, %c0_19] : memref<32x32xf32, #tpu.memory_space<vmem>>, vector<32x32xf32>
    %cst_20 = arith.constant 0.000000e+00 : f32
    %29 = vector.broadcast %cst_20 : f32 to vector<16x32xf32>
    %30 = vector.extract_strided_slice %23 {offsets = [0, 0, 0], sizes = [2, 8, 8], strides = [1, 1, 1]} : vector<2x8x32xf32> to vector<2x8x8xf32>
    %31 = vector.extract_strided_slice %25 {offsets = [0, 0, 0], sizes = [2, 16, 8], strides = [1, 1, 1]} : vector<2x16x32xf32> to vector<2x16x8xf32>
    "tpu.trace_start"() <{level = 10 : i32, message = "bqd,bkd->bqk"}> : () -> ()
    %cst_21 = arith.constant dense<0.000000e+00> : vector<2x8x16xf32>
    %32 = tpu.matmul %30, %31, %cst_21 {dimension_numbers = #tpu.dot_dimension_numbers<[2], [2], [1], [1], [0, 0, 0, 1, 1, 1], [0], [0]>} : vector<2x8x8xf32>, vector<2x16x8xf32>, vector<2x8x16xf32> -> vector<2x8x16xf32>
    "tpu.trace_stop"() : () -> ()
    %cst_22 = arith.constant dense<0xFF800000> : vector<2x8xf32>
    %33 = vector.multi_reduction <maximumf>, %32, %cst_22 [2] : vector<2x8x16xf32> to vector<2x8xf32>
    %34 = vector.shape_cast %33 : vector<2x8xf32> to vector<2x8x1xf32>
    %35 = vector.broadcast %34 : vector<2x8x1xf32> to vector<2x8x16xf32>
    %36 = arith.subf %32, %35 : vector<2x8x16xf32>
    %37 = math.exp %36 : vector<2x8x16xf32>
    %cst_23 = arith.constant dense<0.000000e+00> : vector<2x8xf32>
    %38 = vector.multi_reduction <add>, %37, %cst_23 [2] : vector<2x8x16xf32> to vector<2x8xf32>
    %39 = vector.shape_cast %38 : vector<2x8xf32> to vector<2x8x1xf32>
    %40 = tpu.reciprocal %39 {approx = true} : vector<2x8x1xf32> -> vector<2x8x1xf32>
    %41 = vector.broadcast %40 : vector<2x8x1xf32> to vector<2x8x16xf32>
    %42 = arith.mulf %37, %41 : vector<2x8x16xf32>
    %43 = vector.extract_strided_slice %27 {offsets = [0, 0, 0], sizes = [2, 16, 8], strides = [1, 1, 1]} : vector<2x16x32xf32> to vector<2x16x8xf32>
    "tpu.trace_start"() <{level = 10 : i32, message = "bqk,bkd->bqd"}> : () -> ()
    %cst_24 = arith.constant dense<0.000000e+00> : vector<2x8x8xf32>
    %44 = tpu.matmul %42, %43, %cst_24 {dimension_numbers = #tpu.dot_dimension_numbers<[2], [1], [1], [2], [0, 0, 0, 1, 1, 2], [0], [0]>} : vector<2x8x16xf32>, vector<2x16x8xf32>, vector<2x8x8xf32> -> vector<2x8x8xf32>
    "tpu.trace_stop"() : () -> ()
    %45 = vector.shape_cast %44 : vector<2x8x8xf32> to vector<16x8xf32>
    %46 = vector.extract_strided_slice %28 {offsets = [0, 0], sizes = [8, 32], strides = [1, 1]} : vector<32x32xf32> to vector<8x32xf32>
    %cst_25 = arith.constant dense<0.000000e+00> : vector<16x32xf32>
    %47 = tpu.matmul %45, %46, %cst_25 {dimension_numbers = #tpu.dot_dimension_numbers<[1], [0], [0], [1], [0, 0, 1, 1], [], []>} : vector<16x8xf32>, vector<8x32xf32>, vector<16x32xf32> -> vector<16x32xf32>
    %48 = arith.addf %29, %47 : vector<16x32xf32>
    %49 = vector.extract_strided_slice %23 {offsets = [0, 0, 8], sizes = [2, 8, 8], strides = [1, 1, 1]} : vector<2x8x32xf32> to vector<2x8x8xf32>
    %50 = vector.extract_strided_slice %25 {offsets = [0, 0, 8], sizes = [2, 16, 8], strides = [1, 1, 1]} : vector<2x16x32xf32> to vector<2x16x8xf32>
    "tpu.trace_start"() <{level = 10 : i32, message = "bqd,bkd->bqk"}> : () -> ()
    %cst_26 = arith.constant dense<0.000000e+00> : vector<2x8x16xf32>
    %51 = tpu.matmul %49, %50, %cst_26 {dimension_numbers = #tpu.dot_dimension_numbers<[2], [2], [1], [1], [0, 0, 0, 1, 1, 1], [0], [0]>} : vector<2x8x8xf32>, vector<2x16x8xf32>, vector<2x8x16xf32> -> vector<2x8x16xf32>
    "tpu.trace_stop"() : () -> ()
    %cst_27 = arith.constant dense<0xFF800000> : vector<2x8xf32>
    %52 = vector.multi_reduction <maximumf>, %51, %cst_27 [2] : vector<2x8x16xf32> to vector<2x8xf32>
    %53 = vector.shape_cast %52 : vector<2x8xf32> to vector<2x8x1xf32>
    %54 = vector.broadcast %53 : vector<2x8x1xf32> to vector<2x8x16xf32>
    %55 = arith.subf %51, %54 : vector<2x8x16xf32>
    %56 = math.exp %55 : vector<2x8x16xf32>
    %cst_28 = arith.constant dense<0.000000e+00> : vector<2x8xf32>
    %57 = vector.multi_reduction <add>, %56, %cst_28 [2] : vector<2x8x16xf32> to vector<2x8xf32>
    %58 = vector.shape_cast %57 : vector<2x8xf32> to vector<2x8x1xf32>
    %59 = tpu.reciprocal %58 {approx = true} : vector<2x8x1xf32> -> vector<2x8x1xf32>
    %60 = vector.broadcast %59 : vector<2x8x1xf32> to vector<2x8x16xf32>
    %61 = arith.mulf %56, %60 : vector<2x8x16xf32>
    %62 = vector.extract_strided_slice %27 {offsets = [0, 0, 8], sizes = [2, 16, 8], strides = [1, 1, 1]} : vector<2x16x32xf32> to vector<2x16x8xf32>
    "tpu.trace_start"() <{level = 10 : i32, message = "bqk,bkd->bqd"}> : () -> ()
    %cst_29 = arith.constant dense<0.000000e+00> : vector<2x8x8xf32>
    %63 = tpu.matmul %61, %62, %cst_29 {dimension_numbers = #tpu.dot_dimension_numbers<[2], [1], [1], [2], [0, 0, 0, 1, 1, 2], [0], [0]>} : vector<2x8x16xf32>, vector<2x16x8xf32>, vector<2x8x8xf32> -> vector<2x8x8xf32>
    "tpu.trace_stop"() : () -> ()
    %64 = vector.shape_cast %63 : vector<2x8x8xf32> to vector<16x8xf32>
    %65 = vector.extract_strided_slice %28 {offsets = [8, 0], sizes = [8, 32], strides = [1, 1]} : vector<32x32xf32> to vector<8x32xf32>
    %cst_30 = arith.constant dense<0.000000e+00> : vector<16x32xf32>
    %66 = tpu.matmul %64, %65, %cst_30 {dimension_numbers = #tpu.dot_dimension_numbers<[1], [0], [0], [1], [0, 0, 1, 1], [], []>} : vector<16x8xf32>, vector<8x32xf32>, vector<16x32xf32> -> vector<16x32xf32>
    %67 = arith.addf %48, %66 : vector<16x32xf32>
    %68 = vector.extract_strided_slice %23 {offsets = [0, 0, 16], sizes = [2, 8, 8], strides = [1, 1, 1]} : vector<2x8x32xf32> to vector<2x8x8xf32>
    %69 = vector.extract_strided_slice %25 {offsets = [0, 0, 16], sizes = [2, 16, 8], strides = [1, 1, 1]} : vector<2x16x32xf32> to vector<2x16x8xf32>
    "tpu.trace_start"() <{level = 10 : i32, message = "bqd,bkd->bqk"}> : () -> ()
    %cst_31 = arith.constant dense<0.000000e+00> : vector<2x8x16xf32>
    %70 = tpu.matmul %68, %69, %cst_31 {dimension_numbers = #tpu.dot_dimension_numbers<[2], [2], [1], [1], [0, 0, 0, 1, 1, 1], [0], [0]>} : vector<2x8x8xf32>, vector<2x16x8xf32>, vector<2x8x16xf32> -> vector<2x8x16xf32>
    "tpu.trace_stop"() : () -> ()
    %cst_32 = arith.constant dense<0xFF800000> : vector<2x8xf32>
    %71 = vector.multi_reduction <maximumf>, %70, %cst_32 [2] : vector<2x8x16xf32> to vector<2x8xf32>
    %72 = vector.shape_cast %71 : vector<2x8xf32> to vector<2x8x1xf32>
    %73 = vector.broadcast %72 : vector<2x8x1xf32> to vector<2x8x16xf32>
    %74 = arith.subf %70, %73 : vector<2x8x16xf32>
    %75 = math.exp %74 : vector<2x8x16xf32>
    %cst_33 = arith.constant dense<0.000000e+00> : vector<2x8xf32>
    %76 = vector.multi_reduction <add>, %75, %cst_33 [2] : vector<2x8x16xf32> to vector<2x8xf32>
    %77 = vector.shape_cast %76 : vector<2x8xf32> to vector<2x8x1xf32>
    %78 = tpu.reciprocal %77 {approx = true} : vector<2x8x1xf32> -> vector<2x8x1xf32>
    %79 = vector.broadcast %78 : vector<2x8x1xf32> to vector<2x8x16xf32>
    %80 = arith.mulf %75, %79 : vector<2x8x16xf32>
    %81 = vector.extract_strided_slice %27 {offsets = [0, 0, 16], sizes = [2, 16, 8], strides = [1, 1, 1]} : vector<2x16x32xf32> to vector<2x16x8xf32>
    "tpu.trace_start"() <{level = 10 : i32, message = "bqk,bkd->bqd"}> : () -> ()
    %cst_34 = arith.constant dense<0.000000e+00> : vector<2x8x8xf32>
    %82 = tpu.matmul %80, %81, %cst_34 {dimension_numbers = #tpu.dot_dimension_numbers<[2], [1], [1], [2], [0, 0, 0, 1, 1, 2], [0], [0]>} : vector<2x8x16xf32>, vector<2x16x8xf32>, vector<2x8x8xf32> -> vector<2x8x8xf32>
    "tpu.trace_stop"() : () -> ()
    %83 = vector.shape_cast %82 : vector<2x8x8xf32> to vector<16x8xf32>
    %84 = vector.extract_strided_slice %28 {offsets = [16, 0], sizes = [8, 32], strides = [1, 1]} : vector<32x32xf32> to vector<8x32xf32>
    %cst_35 = arith.constant dense<0.000000e+00> : vector<16x32xf32>
    %85 = tpu.matmul %83, %84, %cst_35 {dimension_numbers = #tpu.dot_dimension_numbers<[1], [0], [0], [1], [0, 0, 1, 1], [], []>} : vector<16x8xf32>, vector<8x32xf32>, vector<16x32xf32> -> vector<16x32xf32>
    %86 = arith.addf %67, %85 : vector<16x32xf32>
    %87 = vector.extract_strided_slice %23 {offsets = [0, 0, 24], sizes = [2, 8, 8], strides = [1, 1, 1]} : vector<2x8x32xf32> to vector<2x8x8xf32>
    %88 = vector.extract_strided_slice %25 {offsets = [0, 0, 24], sizes = [2, 16, 8], strides = [1, 1, 1]} : vector<2x16x32xf32> to vector<2x16x8xf32>
    "tpu.trace_start"() <{level = 10 : i32, message = "bqd,bkd->bqk"}> : () -> ()
    %cst_36 = arith.constant dense<0.000000e+00> : vector<2x8x16xf32>
    %89 = tpu.matmul %87, %88, %cst_36 {dimension_numbers = #tpu.dot_dimension_numbers<[2], [2], [1], [1], [0, 0, 0, 1, 1, 1], [0], [0]>} : vector<2x8x8xf32>, vector<2x16x8xf32>, vector<2x8x16xf32> -> vector<2x8x16xf32>
    "tpu.trace_stop"() : () -> ()
    %cst_37 = arith.constant dense<0xFF800000> : vector<2x8xf32>
    %90 = vector.multi_reduction <maximumf>, %89, %cst_37 [2] : vector<2x8x16xf32> to vector<2x8xf32>
    %91 = vector.shape_cast %90 : vector<2x8xf32> to vector<2x8x1xf32>
    %92 = vector.broadcast %91 : vector<2x8x1xf32> to vector<2x8x16xf32>
    %93 = arith.subf %89, %92 : vector<2x8x16xf32>
    %94 = math.exp %93 : vector<2x8x16xf32>
    %cst_38 = arith.constant dense<0.000000e+00> : vector<2x8xf32>
    %95 = vector.multi_reduction <add>, %94, %cst_38 [2] : vector<2x8x16xf32> to vector<2x8xf32>
    %96 = vector.shape_cast %95 : vector<2x8xf32> to vector<2x8x1xf32>
    %97 = tpu.reciprocal %96 {approx = true} : vector<2x8x1xf32> -> vector<2x8x1xf32>
    %98 = vector.broadcast %97 : vector<2x8x1xf32> to vector<2x8x16xf32>
    %99 = arith.mulf %94, %98 : vector<2x8x16xf32>
    %100 = vector.extract_strided_slice %27 {offsets = [0, 0, 24], sizes = [2, 16, 8], strides = [1, 1, 1]} : vector<2x16x32xf32> to vector<2x16x8xf32>
    "tpu.trace_start"() <{level = 10 : i32, message = "bqk,bkd->bqd"}> : () -> ()
    %cst_39 = arith.constant dense<0.000000e+00> : vector<2x8x8xf32>
    %101 = tpu.matmul %99, %100, %cst_39 {dimension_numbers = #tpu.dot_dimension_numbers<[2], [1], [1], [2], [0, 0, 0, 1, 1, 2], [0], [0]>} : vector<2x8x16xf32>, vector<2x16x8xf32>, vector<2x8x8xf32> -> vector<2x8x8xf32>
    "tpu.trace_stop"() : () -> ()
    %102 = vector.shape_cast %101 : vector<2x8x8xf32> to vector<16x8xf32>
    %103 = vector.extract_strided_slice %28 {offsets = [24, 0], sizes = [8, 32], strides = [1, 1]} : vector<32x32xf32> to vector<8x32xf32>
    %cst_40 = arith.constant dense<0.000000e+00> : vector<16x32xf32>
    %104 = tpu.matmul %102, %103, %cst_40 {dimension_numbers = #tpu.dot_dimension_numbers<[1], [0], [0], [1], [0, 0, 1, 1], [], []>} : vector<16x8xf32>, vector<8x32xf32>, vector<16x32xf32> -> vector<16x32xf32>
    %105 = arith.addf %86, %104 : vector<16x32xf32>
    %c0_41 = arith.constant 0 : index
    %c0_42 = arith.constant 0 : index
    %106 = vector.load %arg9[%c0_41, %c0_42] : memref<1x32xf32, #tpu.memory_space<vmem>>, vector<1x32xf32>
    %107 = vector.broadcast %106 : vector<1x32xf32> to vector<16x32xf32>
    %108 = arith.addf %105, %107 : vector<16x32xf32>
    %109 = arith.addf %5, %108 : vector<16x32xf32>
    %c0_43 = arith.constant 0 : index
    %c0_44 = arith.constant 0 : index
    %110 = vector.load %arg10[%c0_43, %c0_44] : memref<2x32xf32, #tpu.memory_space<vmem>>, vector<2x32xf32>
    %cst_45 = arith.constant dense<0.000000e+00> : vector<16xf32>
    %111 = vector.multi_reduction <add>, %109, %cst_45 [1] : vector<16x32xf32> to vector<16xf32>
    %112 = vector.shape_cast %111 : vector<16xf32> to vector<16x1xf32>
    %cst_46 = arith.constant 3.200000e+01 : f32
    %113 = vector.broadcast %cst_46 : f32 to vector<16x1xf32>
    %114 = arith.divf %112, %113 : vector<16x1xf32>
    %115 = vector.broadcast %114 : vector<16x1xf32> to vector<16x32xf32>
    %116 = arith.subf %109, %115 : vector<16x32xf32>
    %117 = arith.mulf %116, %116 : vector<16x32xf32>
    %cst_47 = arith.constant dense<0.000000e+00> : vector<16xf32>
    %118 = vector.multi_reduction <add>, %117, %cst_47 [1] : vector<16x32xf32> to vector<16xf32>
    %119 = vector.shape_cast %118 : vector<16xf32> to vector<16x1xf32>
    %cst_48 = arith.constant 3.200000e+01 : f32
    %120 = vector.broadcast %cst_48 : f32 to vector<16x1xf32>
    %121 = arith.divf %119, %120 : vector<16x1xf32>
    %122 = vector.broadcast %114 : vector<16x1xf32> to vector<16x32xf32>
    %123 = arith.subf %109, %122 : vector<16x32xf32>
    %cst_49 = arith.constant 9.99999974E-6 : f32
    %124 = vector.broadcast %cst_49 : f32 to vector<16x1xf32>
    %125 = arith.addf %121, %124 : vector<16x1xf32>
    %126 = math.rsqrt %125 : vector<16x1xf32>
    %127 = vector.broadcast %126 : vector<16x1xf32> to vector<16x32xf32>
    %128 = arith.mulf %123, %127 : vector<16x32xf32>
    %129 = vector.extract_strided_slice %110 {offsets = [0, 0], sizes = [1, 32], strides = [1, 1]} : vector<2x32xf32> to vector<1x32xf32>
    %130 = vector.shape_cast %129 : vector<1x32xf32> to vector<32xf32>
    %131 = vector.shape_cast %130 : vector<32xf32> to vector<1x32xf32>
    %132 = vector.broadcast %131 : vector<1x32xf32> to vector<16x32xf32>
    %133 = arith.mulf %128, %132 : vector<16x32xf32>
    %134 = vector.extract_strided_slice %110 {offsets = [1, 0], sizes = [1, 32], strides = [1, 1]} : vector<2x32xf32> to vector<1x32xf32>
    %135 = vector.shape_cast %134 : vector<1x32xf32> to vector<32xf32>
    %136 = vector.shape_cast %135 : vector<32xf32> to vector<1x32xf32>
    %137 = vector.broadcast %136 : vector<1x32xf32> to vector<16x32xf32>
    %138 = arith.addf %133, %137 : vector<16x32xf32>
    %c0_50 = arith.constant 0 : index
    %c0_51 = arith.constant 0 : index
    %139 = vector.load %arg12[%c0_50, %c0_51] : memref<32x1024xf32, #tpu.memory_space<vmem>>, vector<32x1024xf32>
    %cst_52 = arith.constant dense<0.000000e+00> : vector<16x1024xf32>
    %140 = tpu.matmul %138, %139, %cst_52 {dimension_numbers = #tpu.dot_dimension_numbers<[1], [0], [0], [1], [0, 0, 1, 1], [], []>} : vector<16x32xf32>, vector<32x1024xf32>, vector<16x1024xf32> -> vector<16x1024xf32>
    %c0_53 = arith.constant 0 : index
    %c0_54 = arith.constant 0 : index
    %141 = vector.load %arg13[%c0_53, %c0_54] : memref<1x1024xf32, #tpu.memory_space<vmem>>, vector<1x1024xf32>
    %142 = vector.broadcast %141 : vector<1x1024xf32> to vector<16x1024xf32>
    %143 = arith.addf %140, %142 : vector<16x1024xf32>
    %cst_55 = arith.constant 0.000000e+00 : f32
    %144 = vector.broadcast %cst_55 : f32 to vector<16x1024xf32>
    %145 = arith.maximumf %143, %144 : vector<16x1024xf32>
    %c0_56 = arith.constant 0 : index
    %c0_57 = arith.constant 0 : index
    %146 = vector.load %arg14[%c0_56, %c0_57] : memref<1024x32xf32, #tpu.memory_space<vmem>>, vector<1024x32xf32>
    %cst_58 = arith.constant dense<0.000000e+00> : vector<16x32xf32>
    %147 = tpu.matmul %145, %146, %cst_58 {dimension_numbers = #tpu.dot_dimension_numbers<[1], [0], [0], [1], [0, 0, 1, 1], [], []>} : vector<16x1024xf32>, vector<1024x32xf32>, vector<16x32xf32> -> vector<16x32xf32>
    %c0_59 = arith.constant 0 : index
    %c0_60 = arith.constant 0 : index
    %148 = vector.load %arg15[%c0_59, %c0_60] : memref<1x32xf32, #tpu.memory_space<vmem>>, vector<1x32xf32>
    %149 = vector.broadcast %148 : vector<1x32xf32> to vector<16x32xf32>
    %150 = arith.addf %147, %149 : vector<16x32xf32>
    %151 = arith.addf %138, %150 : vector<16x32xf32>
    %c0_61 = arith.constant 0 : index
    %c0_62 = arith.constant 0 : index
    %152 = vector.load %arg11[%c0_61, %c0_62] : memref<2x32xf32, #tpu.memory_space<vmem>>, vector<2x32xf32>
    %cst_63 = arith.constant dense<0.000000e+00> : vector<16xf32>
    %153 = vector.multi_reduction <add>, %151, %cst_63 [1] : vector<16x32xf32> to vector<16xf32>
    %154 = vector.shape_cast %153 : vector<16xf32> to vector<16x1xf32>
    %cst_64 = arith.constant 3.200000e+01 : f32
    %155 = vector.broadcast %cst_64 : f32 to vector<16x1xf32>
    %156 = arith.divf %154, %155 : vector<16x1xf32>
    %157 = vector.broadcast %156 : vector<16x1xf32> to vector<16x32xf32>
    %158 = arith.subf %151, %157 : vector<16x32xf32>
    %159 = arith.mulf %158, %158 : vector<16x32xf32>
    %cst_65 = arith.constant dense<0.000000e+00> : vector<16xf32>
    %160 = vector.multi_reduction <add>, %159, %cst_65 [1] : vector<16x32xf32> to vector<16xf32>
    %161 = vector.shape_cast %160 : vector<16xf32> to vector<16x1xf32>
    %cst_66 = arith.constant 3.200000e+01 : f32
    %162 = vector.broadcast %cst_66 : f32 to vector<16x1xf32>
    %163 = arith.divf %161, %162 : vector<16x1xf32>
    %164 = vector.broadcast %156 : vector<16x1xf32> to vector<16x32xf32>
    %165 = arith.subf %151, %164 : vector<16x32xf32>
    %cst_67 = arith.constant 9.99999974E-6 : f32
    %166 = vector.broadcast %cst_67 : f32 to vector<16x1xf32>
    %167 = arith.addf %163, %166 : vector<16x1xf32>
    %168 = math.rsqrt %167 : vector<16x1xf32>
    %169 = vector.broadcast %168 : vector<16x1xf32> to vector<16x32xf32>
    %170 = arith.mulf %165, %169 : vector<16x32xf32>
    %171 = vector.extract_strided_slice %152 {offsets = [0, 0], sizes = [1, 32], strides = [1, 1]} : vector<2x32xf32> to vector<1x32xf32>
    %172 = vector.shape_cast %171 : vector<1x32xf32> to vector<32xf32>
    %173 = vector.shape_cast %172 : vector<32xf32> to vector<1x32xf32>
    %174 = vector.broadcast %173 : vector<1x32xf32> to vector<16x32xf32>
    %175 = arith.mulf %170, %174 : vector<16x32xf32>
    %176 = vector.extract_strided_slice %152 {offsets = [1, 0], sizes = [1, 32], strides = [1, 1]} : vector<2x32xf32> to vector<1x32xf32>
    %177 = vector.shape_cast %176 : vector<1x32xf32> to vector<32xf32>
    %178 = vector.shape_cast %177 : vector<32xf32> to vector<1x32xf32>
    %179 = vector.broadcast %178 : vector<1x32xf32> to vector<16x32xf32>
    %180 = arith.addf %175, %179 : vector<16x32xf32>
    %c0_68 = arith.constant 0 : index
    %c0_69 = arith.constant 0 : index
    %181 = vector.load %arg16[%c0_68, %c0_69] : memref<16x32xf32, #tpu.memory_space<vmem>>, vector<16x32xf32>
    tpu.vector_store %arg16[%c0_68, %c0_69], %180 {strides = array<i32>} : memref<16x32xf32, #tpu.memory_space<vmem>>, vector<16x32xf32>,
    return
  }
}

</mosaic_0001>

<llo_original>
// kernel: cross_modal_relation_att_forward.1
$region0: #{cross_modal_relation_att_forward.1}
  #allocation0 [shape = 'u32[]', space=smem, size = 0x4, offset = 0x4, fixed_abs, tag = 'smem constant byte address 0x4 - core index']
  #allocation1 [shape = 'u32[144,128]{1,0:T(1,128)}', space=vmem, size = 0x12000, scoped, tag = 'internal scratch']
  %s0 = inlined_call_operand.vmem [shape: f32[16,16], index: 0, kind: input, shape index: {}]
  %s1 = inlined_call_operand.vmem [shape: f32[16,32], index: 1, kind: input, shape index: {}]
  %s2 = inlined_call_operand.vmem [shape: f32[16,32], index: 2, kind: input, shape index: {}]
  %s3 = inlined_call_operand.vmem [shape: f32[1,32], index: 3, kind: input, shape index: {}]
  %s4 = inlined_call_operand.vmem [shape: f32[32,32], index: 4, kind: input, shape index: {}]
  %s5 = inlined_call_operand.vmem [shape: f32[1,32], index: 5, kind: input, shape index: {}]
  %s6 = inlined_call_operand.vmem [shape: f32[32,64], index: 6, kind: input, shape index: {}]
  %s7 = inlined_call_operand.vmem [shape: f32[1,64], index: 7, kind: input, shape index: {}]
  %s8 = inlined_call_operand.vmem [shape: f32[32,32], index: 8, kind: input, shape index: {}]
  %s9 = inlined_call_operand.vmem [shape: f32[1,32], index: 9, kind: input, shape index: {}]
  %s10 = inlined_call_operand.vmem [shape: f32[2,32], index: 10, kind: input, shape index: {}]
  %s11 = inlined_call_operand.vmem [shape: f32[2,32], index: 11, kind: input, shape index: {}]
  %s12 = inlined_call_operand.vmem [shape: f32[32,1024], index: 12, kind: input, shape index: {}]
  %s13 = inlined_call_operand.vmem [shape: f32[1,1024], index: 13, kind: input, shape index: {}]
  %s14 = inlined_call_operand.vmem [shape: f32[1024,32], index: 14, kind: input, shape index: {}]
  %s15 = inlined_call_operand.vmem [shape: f32[1,32], index: 15, kind: input, shape index: {}]
  %s16 = inlined_call_operand.vmem [shape: f32[16,32], index: 16, kind: output, shape index: {}]
  %s17 = sld [smem:[#allocation0]]
  $region74: #{cross_modal_relation_att_forward.1} parent=0
    _
  %s19 = ssub.s32 1, %s17
  %s20 = scalar_select 0, %s19, %s17
  // Predicated region
  $region2: #{cross_modal_relation_att_forward.1} parent=0 // pred_check
    _
  $region3: #{cross_modal_relation_att_forward.1} parent=0 // pred_check_branch
    %22 = sbr.rel (0) target = $region5
  $region4: #{cross_modal_relation_att_forward.1} parent=0 // pred_region
    _
  $region5: #{cross_modal_relation_att_forward.1} parent=0 // pred_fallthru
    _
  // Predicated region
  $region6: #{cross_modal_relation_att_forward.1} parent=0 // pred_check
    _
  $region7: #{cross_modal_relation_att_forward.1} parent=0 // pred_check_branch
    %24 = sbr.rel (0) target = $region9
  $region8: #{cross_modal_relation_att_forward.1} parent=0 // pred_region
    _
  $region9: #{cross_modal_relation_att_forward.1} parent=0 // pred_fallthru
    _
  // Predicated region
  $region10: #{cross_modal_relation_att_forward.1} parent=0 // pred_check
    _
  $region11: #{cross_modal_relation_att_forward.1} parent=0 // pred_check_branch
    %26 = sbr.rel (0) target = $region13
  $region12: #{cross_modal_relation_att_forward.1} parent=0 // pred_region
    _
  $region13: #{cross_modal_relation_att_forward.1} parent=0 // pred_fallthru
    _
  // Predicated region
  $region14: #{cross_modal_relation_att_forward.1} parent=0 // pred_check
    _
  $region15: #{cross_modal_relation_att_forward.1} parent=0 // pred_check_branch
    %28 = sbr.rel (0) target = $region17
  $region16: #{cross_modal_relation_att_forward.1} parent=0 // pred_region
    _
  $region17: #{cross_modal_relation_att_forward.1} parent=0 // pred_fallthru
    _
  // Predicated region
  $region18: #{cross_modal_relation_att_forward.1} parent=0 // pred_check
    _
  $region19: #{cross_modal_relation_att_forward.1} parent=0 // pred_check_branch
    %30 = sbr.rel (0) target = $region21
  $region20: #{cross_modal_relation_att_forward.1} parent=0 // pred_region
    _
  $region21: #{cross_modal_relation_att_forward.1} parent=0 // pred_fallthru
    _
  // Predicated region
  $region22: #{cross_modal_relation_att_forward.1} parent=0 // pred_check
    _
  $region23: #{cross_modal_relation_att_forward.1} parent=0 // pred_check_branch
    %32 = sbr.rel (0) target = $region25
  $region24: #{cross_modal_relation_att_forward.1} parent=0 // pred_region
    _
  $region25: #{cross_modal_relation_att_forward.1} parent=0 // pred_fallthru
    _
  // Predicated region
  $region26: #{cross_modal_relation_att_forward.1} parent=0 // pred_check
    _
  $region27: #{cross_modal_relation_att_forward.1} parent=0 // pred_check_branch
    %34 = sbr.rel (0) target = $region29
  $region28: #{cross_modal_relation_att_forward.1} parent=0 // pred_region
    _
  $region29: #{cross_modal_relation_att_forward.1} parent=0 // pred_fallthru
    _
  // Predicated region
  $region30: #{cross_modal_relation_att_forward.1} parent=0 // pred_check
    _
  $region31: #{cross_modal_relation_att_forward.1} parent=0 // pred_check_branch
    %36 = sbr.rel (0) target = $region33
  $region32: #{cross_modal_relation_att_forward.1} parent=0 // pred_region
    _
  $region33: #{cross_modal_relation_att_forward.1} parent=0 // pred_fallthru
    _
  // Predicated region
  $region34: #{cross_modal_relation_att_forward.1} parent=0 // pred_check
    _
  $region35: #{cross_modal_relation_att_forward.1} parent=0 // pred_check_branch
    %38 = sbr.rel (0) target = $region37
  $region36: #{cross_modal_relation_att_forward.1} parent=0 // pred_region
    _
  $region37: #{cross_modal_relation_att_forward.1} parent=0 // pred_fallthru
    _
  // Predicated region
  $region38: #{cross_modal_relation_att_forward.1} parent=0 // pred_check
    _
  $region39: #{cross_modal_relation_att_forward.1} parent=0 // pred_check_branch
    %40 = sbr.rel (0) target = $region41
  $region40: #{cross_modal_relation_att_forward.1} parent=0 // pred_region
    _
  $region41: #{cross_modal_relation_att_forward.1} parent=0 // pred_fallthru
    _
  // Predicated region
  $region42: #{cross_modal_relation_att_forward.1} parent=0 // pred_check
    _
  $region43: #{cross_modal_relation_att_forward.1} parent=0 // pred_check_branch
    %42 = sbr.rel (0) target = $region45
  $region44: #{cross_modal_relation_att_forward.1} parent=0 // pred_region
    _
  $region45: #{cross_modal_relation_att_forward.1} parent=0 // pred_fallthru
    _
  // Predicated region
  $region46: #{cross_modal_relation_att_forward.1} parent=0 // pred_check
    _
  $region47: #{cross_modal_relation_att_forward.1} parent=0 // pred_check_branch
    %44 = sbr.rel (0) target = $region49
  $region48: #{cross_modal_relation_att_forward.1} parent=0 // pred_region
    _
  $region49: #{cross_modal_relation_att_forward.1} parent=0 // pred_fallthru
    _
  // Predicated region
  $region50: #{cross_modal_relation_att_forward.1} parent=0 // pred_check
    _
  $region51: #{cross_modal_relation_att_forward.1} parent=0 // pred_check_branch
    %46 = sbr.rel (0) target = $region53
  $region52: #{cross_modal_relation_att_forward.1} parent=0 // pred_region
    _
  $region53: #{cross_modal_relation_att_forward.1} parent=0 // pred_fallthru
    _
  // Predicated region
  $region54: #{cross_modal_relation_att_forward.1} parent=0 // pred_check
    _
  $region55: #{cross_modal_relation_att_forward.1} parent=0 // pred_check_branch
    %48 = sbr.rel (0) target = $region57
  $region56: #{cross_modal_relation_att_forward.1} parent=0 // pred_region
    _
  $region57: #{cross_modal_relation_att_forward.1} parent=0 // pred_fallthru
    _
  // Predicated region
  $region58: #{cross_modal_relation_att_forward.1} parent=0 // pred_check
    _
  $region59: #{cross_modal_relation_att_forward.1} parent=0 // pred_check_branch
    %50 = sbr.rel (0) target = $region61
  $region60: #{cross_modal_relation_att_forward.1} parent=0 // pred_region
    _
  $region61: #{cross_modal_relation_att_forward.1} parent=0 // pred_fallthru
    _
  // Predicated region
  $region62: #{cross_modal_relation_att_forward.1} parent=0 // pred_check
    _
  $region63: #{cross_modal_relation_att_forward.1} parent=0 // pred_check_branch
    %52 = sbr.rel (0) target = $region65
  $region64: #{cross_modal_relation_att_forward.1} parent=0 // pred_region
    _
  $region65: #{cross_modal_relation_att_forward.1} parent=0 // pred_fallthru
    _
  %v53 = vld [vmem:[%s0] sm:$0xff]
  %v54 = vld [vmem:[%s0 + $0x8] sm:$0xff]
  %v55 = vld [vmem:[%s2] sm:$0xff]
  %v56 = vld [vmem:[%s2 + $0x8] sm:$0xff]
  %v57 = vld [vmem:[%s3] sm:$0x1]
  %v59 = vlaneseq
  %v60 = vshrl.u32 %v59, 7
  %v61 = vsub.s32 0, %v60
  %v62 = vrot.slane %v57, %v61
  %vm64 = vcmask 130048
  %v66 = vsel %vm64, %v53, 0
  %v69 = vsel %vm64, %v54, 0
  %71 = vmatprep.subr.mxu0 0.0
  %72 = vmatpush1.msra.mxu0 %v55
  %73 = vmatprep.subr.mxu0 0.0
  %74 = vmatpush1.msra.mxu0 %v56
  %75 = vmatprep.subr.mxu0 0.0
  %76 = vmatpush1.msra.mxu0 0.0
  %77 = vmatprep.subr.mxu0 0.0
  %78 = vmatpush1.msra.mxu0 0.0
  %79 = vmatprep.subr.mxu0 0.0
  %80 = vmatpush1.msra.mxu0 0.0
  %81 = vmatprep.subr.mxu0 0.0
  %82 = vmatpush1.msra.mxu0 0.0
  %83 = vmatprep.subr.mxu0 0.0
  %84 = vmatpush1.msra.mxu0 0.0
  %85 = vmatprep.subr.mxu0 0.0
  %86 = vmatpush1.msra.mxu0 0.0
  %87 = vmatprep.subr.mxu0 0.0
  %88 = vmatpush1.msra.mxu0 0.0
  %89 = vmatprep.subr.mxu0 0.0
  %90 = vmatpush1.msra.mxu0 0.0
  %91 = vmatprep.subr.mxu0 0.0
  %92 = vmatpush1.msra.mxu0 0.0
  %93 = vmatprep.subr.mxu0 0.0
  %94 = vmatpush1.msra.mxu0 0.0
  %95 = vmatprep.subr.mxu0 0.0
  %96 = vmatpush1.msra.mxu0 0.0
  %97 = vmatprep.subr.mxu0 0.0
  %98 = vmatpush1.msra.mxu0 0.0
  %99 = vmatprep.subr.mxu0 0.0
  %100 = vmatpush1.msra.mxu0 0.0
  %101 = vmatprep.subr.mxu0 0.0
  %102 = vmatpush1.msra.mxu0 0.0
  %103 = vmatprep.subr.mxu0 0.0
  %104 = vmatpush1.msra.mxu0 0.0
  %105 = vmatprep.subr.mxu0 0.0
  %106 = vmatpush1.msra.mxu0 0.0
  %107 = vmatprep.subr.mxu0 0.0
  %108 = vmatpush1.msra.mxu0 0.0
  %109 = vmatprep.subr.mxu0 0.0
  %110 = vmatpush1.msra.mxu0 0.0
  %111 = vmatprep.subr.mxu0 0.0
  %112 = vmatpush1.msra.mxu0 0.0
  %113 = vmatprep.subr.mxu0 0.0
  %114 = vmatpush1.msra.mxu0 0.0
  %115 = vmatprep.subr.mxu0 0.0
  %116 = vmatpush1.msra.mxu0 0.0
  %117 = vmatprep.subr.mxu0 0.0
  %118 = vmatpush1.msra.mxu0 0.0
  %119 = vmatprep.subr.mxu0 0.0
  %120 = vmatpush1.msra.mxu0 0.0
  %121 = vmatprep.subr.mxu0 0.0
  %122 = vmatpush1.msra.mxu0 0.0
  %123 = vmatprep.subr.mxu0 0.0
  %124 = vmatpush1.msra.mxu0 0.0
  %125 = vmatprep.subr.mxu0 0.0
  %126 = vmatpush1.msra.mxu0 0.0
  %127 = vmatprep.subr.mxu0 0.0
  %128 = vmatpush1.msra.mxu0 0.0
  %129 = vmatprep.subr.mxu0 0.0
  %130 = vmatpush1.msra.mxu0 0.0
  %131 = vmatprep.subr.mxu0 0.0
  %132 = vmatpush1.msra.mxu0 0.0
  %133 = vmatprep.subr.mxu0 0.0
  %134 = vmatpush1.msra.mxu0 0.0
  %135 = vmatprep.mubr.f32.mxu0 0.0
  %136 = vmatmul.mubr.f32.gmra.mrb[0].mxu0 %v66
  %v137 = vpop.f32.mrb[0].mxu0
  %v138 = vadd.f32 %v62, %v137
  %v139 = vpop.f32.mrb[0].mxu0
  %140 = vmatprep.mubr.f32.mxu0 0.0
  %141 = vmatmul.mubr.f32.gmra.mrb[0].mxu0 %v69
  %v142 = vpop.f32.mrb[0].mxu0
  %v143 = vadd.f32 %v62, %v142
  %v144 = vpop.f32.mrb[0].mxu0
  %145 = vdwg.mxu0
  %v146 = vld [vmem:[%s4] sm:$0xff]
  %v147 = vld [vmem:[%s4 + $0x8] sm:$0xff]
  %v148 = vld [vmem:[%s4 + $0x10] sm:$0xff]
  %v149 = vld [vmem:[%s4 + $0x18] sm:$0xff]
  %v150 = vld [vmem:[%s5] sm:$0x1]
  %v152 = vlaneseq
  %v153 = vshrl.u32 %v152, 7
  %v154 = vsub.s32 0, %v153
  %v155 = vrot.slane %v150, %v154
  %vm157 = vcmask 261120
  %v159 = vsel %vm157, %v138, 0
  %v162 = vsel %vm157, %v143, 0
  %164 = vmatprep.subr.mxu0 0.0
  %165 = vmatpush1.msra.mxu0 %v146
  %166 = vmatprep.subr.mxu0 0.0
  %167 = vmatpush1.msra.mxu0 %v147
  %168 = vmatprep.subr.mxu0 0.0
  %169 = vmatpush1.msra.mxu0 %v148
  %170 = vmatprep.subr.mxu0 0.0
  %171 = vmatpush1.msra.mxu0 %v149
  %172 = vmatprep.subr.mxu0 0.0
  %173 = vmatpush1.msra.mxu0 0.0
  %174 = vmatprep.subr.mxu0 0.0
  %175 = vmatpush1.msra.mxu0 0.0
  %176 = vmatprep.subr.mxu0 0.0
  %177 = vmatpush1.msra.mxu0 0.0
  %178 = vmatprep.subr.mxu0 0.0
  %179 = vmatpush1.msra.mxu0 0.0
  %180 = vmatprep.subr.mxu0 0.0
  %181 = vmatpush1.msra.mxu0 0.0
  %182 = vmatprep.subr.mxu0 0.0
  %183 = vmatpush1.msra.mxu0 0.0
  %184 = vmatprep.subr.mxu0 0.0
  %185 = vmatpush1.msra.mxu0 0.0
  %186 = vmatprep.subr.mxu0 0.0
  %187 = vmatpush1.msra.mxu0 0.0
  %188 = vmatprep.subr.mxu0 0.0
  %189 = vmatpush1.msra.mxu0 0.0
  %190 = vmatprep.subr.mxu0 0.0
  %191 = vmatpush1.msra.mxu0 0.0
  %192 = vmatprep.subr.mxu0 0.0
  %193 = vmatpush1.msra.mxu0 0.0
  %194 = vmatprep.subr.mxu0 0.0
  %195 = vmatpush1.msra.mxu0 0.0
  %196 = vmatprep.subr.mxu0 0.0
  %197 = vmatpush1.msra.mxu0 0.0
  %198 = vmatprep.subr.mxu0 0.0
  %199 = vmatpush1.msra.mxu0 0.0
  %200 = vmatprep.subr.mxu0 0.0
  %201 = vmatpush1.msra.mxu0 0.0
  %202 = vmatprep.subr.mxu0 0.0
  %203 = vmatpush1.msra.mxu0 0.0
  %204 = vmatprep.subr.mxu0 0.0
  %205 = vmatpush1.msra.mxu0 0.0
  %206 = vmatprep.subr.mxu0 0.0
  %207 = vmatpush1.msra.mxu0 0.0
  %208 = vmatprep.subr.mxu0 0.0
  %209 = vmatpush1.msra.mxu0 0.0
  %210 = vmatprep.subr.mxu0 0.0
  %211 = vmatpush1.msra.mxu0 0.0
  %212 = vmatprep.subr.mxu0 0.0
  %213 = vmatpush1.msra.mxu0 0.0
  %214 = vmatprep.subr.mxu0 0.0
  %215 = vmatpush1.msra.mxu0 0.0
  %216 = vmatprep.subr.mxu0 0.0
  %217 = vmatpush1.msra.mxu0 0.0
  %218 = vmatprep.subr.mxu0 0.0
  %219 = vmatpush1.msra.mxu0 0.0
  %220 = vmatprep.subr.mxu0 0.0
  %221 = vmatpush1.msra.mxu0 0.0
  %222 = vmatprep.subr.mxu0 0.0
  %223 = vmatpush1.msra.mxu0 0.0
  %224 = vmatprep.subr.mxu0 0.0
  %225 = vmatpush1.msra.mxu0 0.0
  %226 = vmatprep.subr.mxu0 0.0
  %227 = vmatpush1.msra.mxu0 0.0
  %228 = vmatprep.mubr.f32.mxu0 0.0
  %229 = vmatmul.mubr.f32.gmra.mrb[0].mxu0 %v159
  %v230 = vpop.f32.mrb[0].mxu0
  %v231 = vadd.f32 %v155, %v230
  %v232 = vpop.f32.mrb[0].mxu0
  %233 = vmatprep.mubr.f32.mxu0 0.0
  %234 = vmatmul.mubr.f32.gmra.mrb[0].mxu0 %v162
  %v235 = vpop.f32.mrb[0].mxu0
  %v236 = vadd.f32 %v155, %v235
  %v237 = vpop.f32.mrb[0].mxu0
  %238 = vdwg.mxu0
  %v239 = vmul.f32 %v231, 0.35355338
  %v240 = vmul.f32 %v236, 0.35355338
  %v241 = vld [vmem:[%s1] sm:$0xff]
  %v242 = vld [vmem:[%s1 + $0x8] sm:$0xff]
  %v243 = vld [vmem:[%s6] sm:$0xff]
  %v244 = vld [vmem:[%s6 + $0x8] sm:$0xff]
  %v245 = vld [vmem:[%s6 + $0x10] sm:$0xff]
  %v246 = vld [vmem:[%s6 + $0x18] sm:$0xff]
  %v247 = vld [vmem:[%s7] sm:$0x1]
  %v249 = vlaneseq
  %v250 = vshrl.u32 %v249, 7
  %v251 = vsub.s32 0, %v250
  %v252 = vrot.slane %v247, %v251
  %v255 = vsel %vm157, %v241, 0
  %v258 = vsel %vm157, %v242, 0
  %260 = vmatprep.subr.mxu0 0.0
  %261 = vmatpush1.msra.mxu0 %v243
  %262 = vmatprep.subr.mxu0 0.0
  %263 = vmatpush1.msra.mxu0 %v244
  %264 = vmatprep.subr.mxu0 0.0
  %265 = vmatpush1.msra.mxu0 %v245
  %266 = vmatprep.subr.mxu0 0.0
  %267 = vmatpush1.msra.mxu0 %v246
  %268 = vmatprep.subr.mxu0 0.0
  %269 = vmatpush1.msra.mxu0 0.0
  %270 = vmatprep.subr.mxu0 0.0
  %271 = vmatpush1.msra.mxu0 0.0
  %272 = vmatprep.subr.mxu0 0.0
  %273 = vmatpush1.msra.mxu0 0.0
  %274 = vmatprep.subr.mxu0 0.0
  %275 = vmatpush1.msra.mxu0 0.0
  %276 = vmatprep.subr.mxu0 0.0
  %277 = vmatpush1.msra.mxu0 0.0
  %278 = vmatprep.subr.mxu0 0.0
  %279 = vmatpush1.msra.mxu0 0.0
  %280 = vmatprep.subr.mxu0 0.0
  %281 = vmatpush1.msra.mxu0 0.0
  %282 = vmatprep.subr.mxu0 0.0
  %283 = vmatpush1.msra.mxu0 0.0
  %284 = vmatprep.subr.mxu0 0.0
  %285 = vmatpush1.msra.mxu0 0.0
  %286 = vmatprep.subr.mxu0 0.0
  %287 = vmatpush1.msra.mxu0 0.0
  %288 = vmatprep.subr.mxu0 0.0
  %289 = vmatpush1.msra.mxu0 0.0
  %290 = vmatprep.subr.mxu0 0.0
  %291 = vmatpush1.msra.mxu0 0.0
  %292 = vmatprep.subr.mxu0 0.0
  %293 = vmatpush1.msra.mxu0 0.0
  %294 = vmatprep.subr.mxu0 0.0
  %295 = vmatpush1.msra.mxu0 0.0
  %296 = vmatprep.subr.mxu0 0.0
  %297 = vmatpush1.msra.mxu0 0.0
  %298 = vmatprep.subr.mxu0 0.0
  %299 = vmatpush1.msra.mxu0 0.0
  %300 = vmatprep.subr.mxu0 0.0
  %301 = vmatpush1.msra.mxu0 0.0
  %302 = vmatprep.subr.mxu0 0.0
  %303 = vmatpush1.msra.mxu0 0.0
  %304 = vmatprep.subr.mxu0 0.0
  %305 = vmatpush1.msra.mxu0 0.0
  %306 = vmatprep.subr.mxu0 0.0
  %307 = vmatpush1.msra.mxu0 0.0
  %308 = vmatprep.subr.mxu0 0.0
  %309 = vmatpush1.msra.mxu0 0.0
  %310 = vmatprep.subr.mxu0 0.0
  %311 = vmatpush1.msra.mxu0 0.0
  %312 = vmatprep.subr.mxu0 0.0
  %313 = vmatpush1.msra.mxu0 0.0
  %314 = vmatprep.subr.mxu0 0.0
  %315 = vmatpush1.msra.mxu0 0.0
  %316 = vmatprep.subr.mxu0 0.0
  %317 = vmatpush1.msra.mxu0 0.0
  %318 = vmatprep.subr.mxu0 0.0
  %319 = vmatpush1.msra.mxu0 0.0
  %320 = vmatprep.subr.mxu0 0.0
  %321 = vmatpush1.msra.mxu0 0.0
  %322 = vmatprep.subr.mxu0 0.0
  %323 = vmatpush1.msra.mxu0 0.0
  %324 = vmatprep.mubr.f32.mxu0 0.0
  %325 = vmatmul.mubr.f32.gmra.mrb[0].mxu0 %v255
  %v326 = vpop.f32.mrb[0].mxu0
  %v327 = vadd.f32 %v252, %v326
  %v328 = vpop.f32.mrb[0].mxu0
  %329 = vmatprep.mubr.f32.mxu0 0.0
  %330 = vmatmul.mubr.f32.gmra.mrb[0].mxu0 %v159
  %v331 = vpop.f32.mrb[0].mxu0
  %v332 = vadd.f32 %v252, %v331
  %v333 = vpop.f32.mrb[0].mxu0
  %334 = vmatprep.mubr.f32.mxu0 0.0
  %335 = vmatmul.mubr.f32.gmra.mrb[0].mxu0 %v258
  %v336 = vpop.f32.mrb[0].mxu0
  %v337 = vadd.f32 %v252, %v336
  %v338 = vpop.f32.mrb[0].mxu0
  %339 = vmatprep.mubr.f32.mxu0 0.0
  %340 = vmatmul.mubr.f32.gmra.mrb[0].mxu0 %v162
  %v341 = vpop.f32.mrb[0].mxu0
  %v342 = vadd.f32 %v252, %v341
  %v343 = vpop.f32.mrb[0].mxu0
  %344 = vdwg.mxu0
  %v345 = vld [vmem:[%s8] sm:$0xff]
  %v346 = vld [vmem:[%s8 + $0x8] sm:$0xff]
  %v347 = vld [vmem:[%s8 + $0x10] sm:$0xff]
  %v348 = vld [vmem:[%s8 + $0x18] sm:$0xff]
  %vm349 = vcmask 64512
  %v351 = vsel %vm349, %v239, 0
  %v354 = vsel %vm349, %v327, 0
  %v357 = vsel %vm349, %v332, 0
  %359 = vmatprep.subr.mxu0 0.0
  %360 = vmatpush1.xpose.msra.mxu0 %v354
  %361 = vmatprep.subr.mxu0 0.0
  %362 = vmatpush1.xpose.msra.mxu0 %v357
  %363 = vmatprep.subr.mxu0 0.0
  %364 = vmatpush1.xpose.msra.mxu0 0.0
  %365 = vmatprep.subr.mxu0 0.0
  %366 = vmatpush1.xpose.msra.mxu0 0.0
  %367 = vmatprep.subr.mxu0 0.0
  %368 = vmatpush1.xpose.msra.mxu0 0.0
  %369 = vmatprep.subr.mxu0 0.0
  %370 = vmatpush1.xpose.msra.mxu0 0.0
  %371 = vmatprep.subr.mxu0 0.0
  %372 = vmatpush1.xpose.msra.mxu0 0.0
  %373 = vmatprep.subr.mxu0 0.0
  %374 = vmatpush1.xpose.msra.mxu0 0.0
  %375 = vmatprep.subr.mxu0 0.0
  %376 = vmatpush1.xpose.msra.mxu0 0.0
  %377 = vmatprep.subr.mxu0 0.0
  %378 = vmatpush1.xpose.msra.mxu0 0.0
  %379 = vmatprep.subr.mxu0 0.0
  %380 = vmatpush1.xpose.msra.mxu0 0.0
  %381 = vmatprep.subr.mxu0 0.0
  %382 = vmatpush1.xpose.msra.mxu0 0.0
  %383 = vmatprep.subr.mxu0 0.0
  %384 = vmatpush1.xpose.msra.mxu0 0.0
  %385 = vmatprep.subr.mxu0 0.0
  %386 = vmatpush1.xpose.msra.mxu0 0.0
  %387 = vmatprep.subr.mxu0 0.0
  %388 = vmatpush1.xpose.msra.mxu0 0.0
  %389 = vmatprep.subr.mxu0 0.0
  %390 = vmatpush1.xpose.msra.mxu0 0.0
  %391 = vmatprep.subr.mxu0 0.0
  %392 = vmatpush1.xpose.msra.mxu0 0.0
  %393 = vmatprep.subr.mxu0 0.0
  %394 = vmatpush1.xpose.msra.mxu0 0.0
  %395 = vmatprep.subr.mxu0 0.0
  %396 = vmatpush1.xpose.msra.mxu0 0.0
  %397 = vmatprep.subr.mxu0 0.0
  %398 = vmatpush1.xpose.msra.mxu0 0.0
  %399 = vmatprep.subr.mxu0 0.0
  %400 = vmatpush1.xpose.msra.mxu0 0.0
  %401 = vmatprep.subr.mxu0 0.0
  %402 = vmatpush1.xpose.msra.mxu0 0.0
  %403 = vmatprep.subr.mxu0 0.0
  %404 = vmatpush1.xpose.msra.mxu0 0.0
  %405 = vmatprep.subr.mxu0 0.0
  %406 = vmatpush1.xpose.msra.mxu0 0.0
  %407 = vmatprep.subr.mxu0 0.0
  %408 = vmatpush1.xpose.msra.mxu0 0.0
  %409 = vmatprep.subr.mxu0 0.0
  %410 = vmatpush1.xpose.msra.mxu0 0.0
  %411 = vmatprep.subr.mxu0 0.0
  %412 = vmatpush1.xpose.msra.mxu0 0.0
  %413 = vmatprep.subr.mxu0 0.0
  %414 = vmatpush1.xpose.msra.mxu0 0.0
  %415 = vmatprep.subr.mxu0 0.0
  %416 = vmatpush1.xpose.msra.mxu0 0.0
  %417 = vmatprep.subr.mxu0 0.0
  %418 = vmatpush1.xpose.msra.mxu0 0.0
  %419 = vmatprep.subr.mxu0 0.0
  %420 = vmatpush1.xpose.msra.mxu0 0.0
  %421 = vmatprep.subr.mxu0 0.0
  %422 = vmatpush1.xpose.msra.mxu0 0.0
  %423 = vmatprep.mubr.f32.mxu0 0.0
  %424 = vmatmul.mubr.f32.gmra.mrb[0].mxu0 %v351
  %v425 = vpop.f32.mrb[0].mxu0
  %v426 = vadd.f32 0.0, %v425
  %v427 = vpop.f32.mrb[0].mxu0
  %428 = vdwg.mxu0
  %v430 = vsel %vm349, %v240, 0
  %v433 = vsel %vm349, %v337, 0
  %v436 = vsel %vm349, %v342, 0
  %438 = vmatprep.subr.mxu0 0.0
  %439 = vmatpush1.xpose.msra.mxu0 %v433
  %440 = vmatprep.subr.mxu0 0.0
  %441 = vmatpush1.xpose.msra.mxu0 %v436
  %442 = vmatprep.subr.mxu0 0.0
  %443 = vmatpush1.xpose.msra.mxu0 0.0
  %444 = vmatprep.subr.mxu0 0.0
  %445 = vmatpush1.xpose.msra.mxu0 0.0
  %446 = vmatprep.subr.mxu0 0.0
  %447 = vmatpush1.xpose.msra.mxu0 0.0
  %448 = vmatprep.subr.mxu0 0.0
  %449 = vmatpush1.xpose.msra.mxu0 0.0
  %450 = vmatprep.subr.mxu0 0.0
  %451 = vmatpush1.xpose.msra.mxu0 0.0
  %452 = vmatprep.subr.mxu0 0.0
  %453 = vmatpush1.xpose.msra.mxu0 0.0
  %454 = vmatprep.subr.mxu0 0.0
  %455 = vmatpush1.xpose.msra.mxu0 0.0
  %456 = vmatprep.subr.mxu0 0.0
  %457 = vmatpush1.xpose.msra.mxu0 0.0
  %458 = vmatprep.subr.mxu0 0.0
  %459 = vmatpush1.xpose.msra.mxu0 0.0
  %460 = vmatprep.subr.mxu0 0.0
  %461 = vmatpush1.xpose.msra.mxu0 0.0
  %462 = vmatprep.subr.mxu0 0.0
  %463 = vmatpush1.xpose.msra.mxu0 0.0
  %464 = vmatprep.subr.mxu0 0.0
  %465 = vmatpush1.xpose.msra.mxu0 0.0
  %466 = vmatprep.subr.mxu0 0.0
  %467 = vmatpush1.xpose.msra.mxu0 0.0
  %468 = vmatprep.subr.mxu0 0.0
  %469 = vmatpush1.xpose.msra.mxu0 0.0
  %470 = vmatprep.subr.mxu0 0.0
  %471 = vmatpush1.xpose.msra.mxu0 0.0
  %472 = vmatprep.subr.mxu0 0.0
  %473 = vmatpush1.xpose.msra.mxu0 0.0
  %474 = vmatprep.subr.mxu0 0.0
  %475 = vmatpush1.xpose.msra.mxu0 0.0
  %476 = vmatprep.subr.mxu0 0.0
  %477 = vmatpush1.xpose.msra.mxu0 0.0
  %478 = vmatprep.subr.mxu0 0.0
  %479 = vmatpush1.xpose.msra.mxu0 0.0
  %480 = vmatprep.subr.mxu0 0.0
  %481 = vmatpush1.xpose.msra.mxu0 0.0
  %482 = vmatprep.subr.mxu0 0.0
  %483 = vmatpush1.xpose.msra.mxu0 0.0
  %484 = vmatprep.subr.mxu0 0.0
  %485 = vmatpush1.xpose.msra.mxu0 0.0
  %486 = vmatprep.subr.mxu0 0.0
  %487 = vmatpush1.xpose.msra.mxu0 0.0
  %488 = vmatprep.subr.mxu0 0.0
  %489 = vmatpush1.xpose.msra.mxu0 0.0
  %490 = vmatprep.subr.mxu0 0.0
  %491 = vmatpush1.xpose.msra.mxu0 0.0
  %492 = vmatprep.subr.mxu0 0.0
  %493 = vmatpush1.xpose.msra.mxu0 0.0
  %494 = vmatprep.subr.mxu0 0.0
  %495 = vmatpush1.xpose.msra.mxu0 0.0
  %496 = vmatprep.subr.mxu0 0.0
  %497 = vmatpush1.xpose.msra.mxu0 0.0
  %498 = vmatprep.subr.mxu0 0.0
  %499 = vmatpush1.xpose.msra.mxu0 0.0
  %500 = vmatprep.subr.mxu0 0.0
  %501 = vmatpush1.xpose.msra.mxu0 0.0
  %502 = vmatprep.mubr.f32.mxu0 0.0
  %503 = vmatmul.mubr.f32.gmra.mrb[0].mxu0 %v430
  %v504 = vpop.f32.mrb[0].mxu0
  %v505 = vadd.f32 0.0, %v504
  %v506 = vpop.f32.mrb[0].mxu0
  %507 = vdwg.mxu0
  %v508 = vsel %vm64, %v426, -inf
  %509 = vmax.xlane.f32.xlu0 %v508
  %v510 = vpop.xlane.xlu0 %509
  %v511 = vsel %vm64, %v505, -inf
  %512 = vmax.xlane.f32.xlu0 %v511
  %v513 = vpop.xlane.xlu0 %512
  %v514 = vsub.f32 %v426, %v510
  %v515 = vsub.f32 %v505, %v513
  %v516 = vmul.f32 %v514, 1.442695
  %v517 = vpow.pop %v516
  %v518 = vmul.f32 %v515, 1.442695
  %v519 = vpow.pop %v518
  %v520 = vsel %vm64, %v517, 0.0
  %521 = vadd.xlane.f32.xlu0 %v520
  %v522 = vpop.xlane.xlu0 %521
  %v523 = vsel %vm64, %v519, 0.0
  %524 = vadd.xlane.f32.xlu0 %v523
  %v525 = vpop.xlane.xlu0 %524
  %v526 = vrcp.pop %v522
  %v527 = vrcp.pop %v525
  %v528 = vmul.f32 %v517, %v526
  %v529 = vmul.f32 %v519, %v527
  %530 = vrot.lane.b32.xlu0 %v327, 96
  %v531 = vpop.permute.xlu0 %530
  %532 = vrot.lane.b32.xlu0 %v332, 96
  %v533 = vpop.permute.xlu0 %532
  %v537 = vsel %vm64, %v528, 0
  %539 = vmatprep.subr.mxu0 0.0
  %540 = vmatpush1.msra.mxu0 %v531
  %541 = vmatprep.subr.mxu0 0.0
  %542 = vmatpush1.msra.mxu0 %v533
  %543 = vmatprep.subr.mxu0 0.0
  %544 = vmatpush1.msra.mxu0 0.0
  %545 = vmatprep.subr.mxu0 0.0
  %546 = vmatpush1.msra.mxu0 0.0
  %547 = vmatprep.subr.mxu0 0.0
  %548 = vmatpush1.msra.mxu0 0.0
  %549 = vmatprep.subr.mxu0 0.0
  %550 = vmatpush1.msra.mxu0 0.0
  %551 = vmatprep.subr.mxu0 0.0
  %552 = vmatpush1.msra.mxu0 0.0
  %553 = vmatprep.subr.mxu0 0.0
  %554 = vmatpush1.msra.mxu0 0.0
  %555 = vmatprep.subr.mxu0 0.0
  %556 = vmatpush1.msra.mxu0 0.0
  %557 = vmatprep.subr.mxu0 0.0
  %558 = vmatpush1.msra.mxu0 0.0
  %559 = vmatprep.subr.mxu0 0.0
  %560 = vmatpush1.msra.mxu0 0.0
  %561 = vmatprep.subr.mxu0 0.0
  %562 = vmatpush1.msra.mxu0 0.0
  %563 = vmatprep.subr.mxu0 0.0
  %564 = vmatpush1.msra.mxu0 0.0
  %565 = vmatprep.subr.mxu0 0.0
  %566 = vmatpush1.msra.mxu0 0.0
  %567 = vmatprep.subr.mxu0 0.0
  %568 = vmatpush1.msra.mxu0 0.0
  %569 = vmatprep.subr.mxu0 0.0
  %570 = vmatpush1.msra.mxu0 0.0
  %571 = vmatprep.subr.mxu0 0.0
  %572 = vmatpush1.msra.mxu0 0.0
  %573 = vmatprep.subr.mxu0 0.0
  %574 = vmatpush1.msra.mxu0 0.0
  %575 = vmatprep.subr.mxu0 0.0
  %576 = vmatpush1.msra.mxu0 0.0
  %577 = vmatprep.subr.mxu0 0.0
  %578 = vmatpush1.msra.mxu0 0.0
  %579 = vmatprep.subr.mxu0 0.0
  %580 = vmatpush1.msra.mxu0 0.0
  %581 = vmatprep.subr.mxu0 0.0
  %582 = vmatpush1.msra.mxu0 0.0
  %583 = vmatprep.subr.mxu0 0.0
  %584 = vmatpush1.msra.mxu0 0.0
  %585 = vmatprep.subr.mxu0 0.0
  %586 = vmatpush1.msra.mxu0 0.0
  %587 = vmatprep.subr.mxu0 0.0
  %588 = vmatpush1.msra.mxu0 0.0
  %589 = vmatprep.subr.mxu0 0.0
  %590 = vmatpush1.msra.mxu0 0.0
  %591 = vmatprep.subr.mxu0 0.0
  %592 = vmatpush1.msra.mxu0 0.0
  %593 = vmatprep.subr.mxu0 0.0
  %594 = vmatpush1.msra.mxu0 0.0
  %595 = vmatprep.subr.mxu0 0.0
  %596 = vmatpush1.msra.mxu0 0.0
  %597 = vmatprep.subr.mxu0 0.0
  %598 = vmatpush1.msra.mxu0 0.0
  %599 = vmatprep.subr.mxu0 0.0
  %600 = vmatpush1.msra.mxu0 0.0
  %601 = vmatprep.subr.mxu0 0.0
  %602 = vmatpush1.msra.mxu0 0.0
  %603 = vmatprep.mubr.f32.mxu0 0.0
  %604 = vmatmul.mubr.f32.gmra.mrb[0].mxu0 %v537
  %v605 = vpop.f32.mrb[0].mxu0
  %v606 = vadd.f32 0.0, %v605
  %v607 = vpop.f32.mrb[0].mxu0
  %608 = vdwg.mxu0
  %609 = vrot.lane.b32.xlu0 %v337, 96
  %v610 = vpop.permute.xlu0 %609
  %611 = vrot.lane.b32.xlu0 %v342, 96
  %v612 = vpop.permute.xlu0 %611
  %v616 = vsel %vm64, %v529, 0
  %618 = vmatprep.subr.mxu0 0.0
  %619 = vmatpush1.msra.mxu0 %v610
  %620 = vmatprep.subr.mxu0 0.0
  %621 = vmatpush1.msra.mxu0 %v612
  %622 = vmatprep.subr.mxu0 0.0
  %623 = vmatpush1.msra.mxu0 0.0
  %624 = vmatprep.subr.mxu0 0.0
  %625 = vmatpush1.msra.mxu0 0.0
  %626 = vmatprep.subr.mxu0 0.0
  %627 = vmatpush1.msra.mxu0 0.0
  %628 = vmatprep.subr.mxu0 0.0
  %629 = vmatpush1.msra.mxu0 0.0
  %630 = vmatprep.subr.mxu0 0.0
  %631 = vmatpush1.msra.mxu0 0.0
  %632 = vmatprep.subr.mxu0 0.0
  %633 = vmatpush1.msra.mxu0 0.0
  %634 = vmatprep.subr.mxu0 0.0
  %635 = vmatpush1.msra.mxu0 0.0
  %636 = vmatprep.subr.mxu0 0.0
  %637 = vmatpush1.msra.mxu0 0.0
  %638 = vmatprep.subr.mxu0 0.0
  %639 = vmatpush1.msra.mxu0 0.0
  %640 = vmatprep.subr.mxu0 0.0
  %641 = vmatpush1.msra.mxu0 0.0
  %642 = vmatprep.subr.mxu0 0.0
  %643 = vmatpush1.msra.mxu0 0.0
  %644 = vmatprep.subr.mxu0 0.0
  %645 = vmatpush1.msra.mxu0 0.0
  %646 = vmatprep.subr.mxu0 0.0
  %647 = vmatpush1.msra.mxu0 0.0
  %648 = vmatprep.subr.mxu0 0.0
  %649 = vmatpush1.msra.mxu0 0.0
  %650 = vmatprep.subr.mxu0 0.0
  %651 = vmatpush1.msra.mxu0 0.0
  %652 = vmatprep.subr.mxu0 0.0
  %653 = vmatpush1.msra.mxu0 0.0
  %654 = vmatprep.subr.mxu0 0.0
  %655 = vmatpush1.msra.mxu0 0.0
  %656 = vmatprep.subr.mxu0 0.0
  %657 = vmatpush1.msra.mxu0 0.0
  %658 = vmatprep.subr.mxu0 0.0
  %659 = vmatpush1.msra.mxu0 0.0
  %660 = vmatprep.subr.mxu0 0.0
  %661 = vmatpush1.msra.mxu0 0.0
  %662 = vmatprep.subr.mxu0 0.0
  %663 = vmatpush1.msra.mxu0 0.0
  %664 = vmatprep.subr.mxu0 0.0
  %665 = vmatpush1.msra.mxu0 0.0
  %666 = vmatprep.subr.mxu0 0.0
  %667 = vmatpush1.msra.mxu0 0.0
  %668 = vmatprep.subr.mxu0 0.0
  %669 = vmatpush1.msra.mxu0 0.0
  %670 = vmatprep.subr.mxu0 0.0
  %671 = vmatpush1.msra.mxu0 0.0
  %672 = vmatprep.subr.mxu0 0.0
  %673 = vmatpush1.msra.mxu0 0.0
  %674 = vmatprep.subr.mxu0 0.0
  %675 = vmatpush1.msra.mxu0 0.0
  %676 = vmatprep.subr.mxu0 0.0
  %677 = vmatpush1.msra.mxu0 0.0
  %678 = vmatprep.subr.mxu0 0.0
  %679 = vmatpush1.msra.mxu0 0.0
  %680 = vmatprep.subr.mxu0 0.0
  %681 = vmatpush1.msra.mxu0 0.0
  %682 = vmatprep.mubr.f32.mxu0 0.0
  %683 = vmatmul.mubr.f32.gmra.mrb[0].mxu0 %v616
  %v684 = vpop.f32.mrb[0].mxu0
  %v685 = vadd.f32 0.0, %v684
  %v686 = vpop.f32.mrb[0].mxu0
  %687 = vdwg.mxu0
  %688 = vrot.lane.b32.xlu0 %v239, 120
  %v689 = vpop.permute.xlu0 %688
  %690 = vrot.lane.b32.xlu0 %v327, 120
  %v691 = vpop.permute.xlu0 %690
  %692 = vrot.lane.b32.xlu0 %v332, 120
  %v693 = vpop.permute.xlu0 %692
  %v694 = vsel %vm349, %v689, 0
  %v696 = vsel %vm349, %v691, 0
  %v698 = vsel %vm349, %v693, 0
  %700 = vmatprep.subr.mxu0 0.0
  %701 = vmatpush1.xpose.msra.mxu0 %v696
  %702 = vmatprep.subr.mxu0 0.0
  %703 = vmatpush1.xpose.msra.mxu0 %v698
  %704 = vmatprep.subr.mxu0 0.0
  %705 = vmatpush1.xpose.msra.mxu0 0.0
  %706 = vmatprep.subr.mxu0 0.0
  %707 = vmatpush1.xpose.msra.mxu0 0.0
  %708 = vmatprep.subr.mxu0 0.0
  %709 = vmatpush1.xpose.msra.mxu0 0.0
  %710 = vmatprep.subr.mxu0 0.0
  %711 = vmatpush1.xpose.msra.mxu0 0.0
  %712 = vmatprep.subr.mxu0 0.0
  %713 = vmatpush1.xpose.msra.mxu0 0.0
  %714 = vmatprep.subr.mxu0 0.0
  %715 = vmatpush1.xpose.msra.mxu0 0.0
  %716 = vmatprep.subr.mxu0 0.0
  %717 = vmatpush1.xpose.msra.mxu0 0.0
  %718 = vmatprep.subr.mxu0 0.0
  %719 = vmatpush1.xpose.msra.mxu0 0.0
  %720 = vmatprep.subr.mxu0 0.0
  %721 = vmatpush1.xpose.msra.mxu0 0.0
  %722 = vmatprep.subr.mxu0 0.0
  %723 = vmatpush1.xpose.msra.mxu0 0.0
  %724 = vmatprep.subr.mxu0 0.0
  %725 = vmatpush1.xpose.msra.mxu0 0.0
  %726 = vmatprep.subr.mxu0 0.0
  %727 = vmatpush1.xpose.msra.mxu0 0.0
  %728 = vmatprep.subr.mxu0 0.0
  %729 = vmatpush1.xpose.msra.mxu0 0.0
  %730 = vmatprep.subr.mxu0 0.0
  %731 = vmatpush1.xpose.msra.mxu0 0.0
  %732 = vmatprep.subr.mxu0 0.0
  %733 = vmatpush1.xpose.msra.mxu0 0.0
  %734 = vmatprep.subr.mxu0 0.0
  %735 = vmatpush1.xpose.msra.mxu0 0.0
  %736 = vmatprep.subr.mxu0 0.0
  %737 = vmatpush1.xpose.msra.mxu0 0.0
  %738 = vmatprep.subr.mxu0 0.0
  %739 = vmatpush1.xpose.msra.mxu0 0.0
  %740 = vmatprep.subr.mxu0 0.0
  %741 = vmatpush1.xpose.msra.mxu0 0.0
  %742 = vmatprep.subr.mxu0 0.0
  %743 = vmatpush1.xpose.msra.mxu0 0.0
  %744 = vmatprep.subr.mxu0 0.0
  %745 = vmatpush1.xpose.msra.mxu0 0.0
  %746 = vmatprep.subr.mxu0 0.0
  %747 = vmatpush1.xpose.msra.mxu0 0.0
  %748 = vmatprep.subr.mxu0 0.0
  %749 = vmatpush1.xpose.msra.mxu0 0.0
  %750 = vmatprep.subr.mxu0 0.0
  %751 = vmatpush1.xpose.msra.mxu0 0.0
  %752 = vmatprep.subr.mxu0 0.0
  %753 = vmatpush1.xpose.msra.mxu0 0.0
  %754 = vmatprep.subr.mxu0 0.0
  %755 = vmatpush1.xpose.msra.mxu0 0.0
  %756 = vmatprep.subr.mxu0 0.0
  %757 = vmatpush1.xpose.msra.mxu0 0.0
  %758 = vmatprep.subr.mxu0 0.0
  %759 = vmatpush1.xpose.msra.mxu0 0.0
  %760 = vmatprep.subr.mxu0 0.0
  %761 = vmatpush1.xpose.msra.mxu0 0.0
  %762 = vmatprep.subr.mxu0 0.0
  %763 = vmatpush1.xpose.msra.mxu0 0.0
  %764 = vmatprep.mubr.f32.mxu0 0.0
  %765 = vmatmul.mubr.f32.gmra.mrb[0].mxu0 %v694
  %v766 = vpop.f32.mrb[0].mxu0
  %v767 = vadd.f32 0.0, %v766
  %v768 = vpop.f32.mrb[0].mxu0
  %769 = vdwg.mxu0
  %770 = vrot.lane.b32.xlu0 %v240, 120
  %v771 = vpop.permute.xlu0 %770
  %772 = vrot.lane.b32.xlu0 %v337, 120
  %v773 = vpop.permute.xlu0 %772
  %774 = vrot.lane.b32.xlu0 %v342, 120
  %v775 = vpop.permute.xlu0 %774
  %v776 = vsel %vm349, %v771, 0
  %v778 = vsel %vm349, %v773, 0
  %v780 = vsel %vm349, %v775, 0
  %782 = vmatprep.subr.mxu0 0.0
  %783 = vmatpush1.xpose.msra.mxu0 %v778
  %784 = vmatprep.subr.mxu0 0.0
  %785 = vmatpush1.xpose.msra.mxu0 %v780
  %786 = vmatprep.subr.mxu0 0.0
  %787 = vmatpush1.xpose.msra.mxu0 0.0
  %788 = vmatprep.subr.mxu0 0.0
  %789 = vmatpush1.xpose.msra.mxu0 0.0
  %790 = vmatprep.subr.mxu0 0.0
  %791 = vmatpush1.xpose.msra.mxu0 0.0
  %792 = vmatprep.subr.mxu0 0.0
  %793 = vmatpush1.xpose.msra.mxu0 0.0
  %794 = vmatprep.subr.mxu0 0.0
  %795 = vmatpush1.xpose.msra.mxu0 0.0
  %796 = vmatprep.subr.mxu0 0.0
  %797 = vmatpush1.xpose.msra.mxu0 0.0
  %798 = vmatprep.subr.mxu0 0.0
  %799 = vmatpush1.xpose.msra.mxu0 0.0
  %800 = vmatprep.subr.mxu0 0.0
  %801 = vmatpush1.xpose.msra.mxu0 0.0
  %802 = vmatprep.subr.mxu0 0.0
  %803 = vmatpush1.xpose.msra.mxu0 0.0
  %804 = vmatprep.subr.mxu0 0.0
  %805 = vmatpush1.xpose.msra.mxu0 0.0
  %806 = vmatprep.subr.mxu0 0.0
  %807 = vmatpush1.xpose.msra.mxu0 0.0
  %808 = vmatprep.subr.mxu0 0.0
  %809 = vmatpush1.xpose.msra.mxu0 0.0
  %810 = vmatprep.subr.mxu0 0.0
  %811 = vmatpush1.xpose.msra.mxu0 0.0
  %812 = vmatprep.subr.mxu0 0.0
  %813 = vmatpush1.xpose.msra.mxu0 0.0
  %814 = vmatprep.subr.mxu0 0.0
  %815 = vmatpush1.xpose.msra.mxu0 0.0
  %816 = vmatprep.subr.mxu0 0.0
  %817 = vmatpush1.xpose.msra.mxu0 0.0
  %818 = vmatprep.subr.mxu0 0.0
  %819 = vmatpush1.xpose.msra.mxu0 0.0
  %820 = vmatprep.subr.mxu0 0.0
  %821 = vmatpush1.xpose.msra.mxu0 0.0
  %822 = vmatprep.subr.mxu0 0.0
  %823 = vmatpush1.xpose.msra.mxu0 0.0
  %824 = vmatprep.subr.mxu0 0.0
  %825 = vmatpush1.xpose.msra.mxu0 0.0
  %826 = vmatprep.subr.mxu0 0.0
  %827 = vmatpush1.xpose.msra.mxu0 0.0
  %828 = vmatprep.subr.mxu0 0.0
  %829 = vmatpush1.xpose.msra.mxu0 0.0
  %830 = vmatprep.subr.mxu0 0.0
  %831 = vmatpush1.xpose.msra.mxu0 0.0
  %832 = vmatprep.subr.mxu0 0.0
  %833 = vmatpush1.xpose.msra.mxu0 0.0
  %834 = vmatprep.subr.mxu0 0.0
  %835 = vmatpush1.xpose.msra.mxu0 0.0
  %836 = vmatprep.subr.mxu0 0.0
  %837 = vmatpush1.xpose.msra.mxu0 0.0
  %838 = vmatprep.subr.mxu0 0.0
  %839 = vmatpush1.xpose.msra.mxu0 0.0
  %840 = vmatprep.subr.mxu0 0.0
  %841 = vmatpush1.xpose.msra.mxu0 0.0
  %842 = vmatprep.subr.mxu0 0.0
  %843 = vmatpush1.xpose.msra.mxu0 0.0
  %844 = vmatprep.subr.mxu0 0.0
  %845 = vmatpush1.xpose.msra.mxu0 0.0
  %846 = vmatprep.mubr.f32.mxu0 0.0
  %847 = vmatmul.mubr.f32.gmra.mrb[0].mxu0 %v776
  %v848 = vpop.f32.mrb[0].mxu0
  %v849 = vadd.f32 0.0, %v848
  %v850 = vpop.f32.mrb[0].mxu0
  %851 = vdwg.mxu0
  %v852 = vsel %vm64, %v767, -inf
  %853 = vmax.xlane.f32.xlu0 %v852
  %v854 = vpop.xlane.xlu0 %853
  %v855 = vsel %vm64, %v849, -inf
  %856 = vmax.xlane.f32.xlu0 %v855
  %v857 = vpop.xlane.xlu0 %856
  %v858 = vsub.f32 %v767, %v854
  %v859 = vsub.f32 %v849, %v857
  %v860 = vmul.f32 %v858, 1.442695
  %v861 = vpow.pop %v860
  %v862 = vmul.f32 %v859, 1.442695
  %v863 = vpow.pop %v862
  %v864 = vsel %vm64, %v861, 0.0
  %865 = vadd.xlane.f32.xlu0 %v864
  %v866 = vpop.xlane.xlu0 %865
  %v867 = vsel %vm64, %v863, 0.0
  %868 = vadd.xlane.f32.xlu0 %v867
  %v869 = vpop.xlane.xlu0 %868
  %v870 = vrcp.pop %v866
  %v871 = vrcp.pop %v869
  %v872 = vmul.f32 %v861, %v870
  %v873 = vmul.f32 %v863, %v871
  %874 = vrot.lane.b32.xlu0 %v327, 88
  %v875 = vpop.permute.xlu0 %874
  %876 = vrot.lane.b32.xlu0 %v332, 88
  %v877 = vpop.permute.xlu0 %876
  %v881 = vsel %vm64, %v872, 0
  %883 = vmatprep.subr.mxu0 0.0
  %884 = vmatpush1.msra.mxu0 %v875
  %885 = vmatprep.subr.mxu0 0.0
  %886 = vmatpush1.msra.mxu0 %v877
  %887 = vmatprep.subr.mxu0 0.0
  %888 = vmatpush1.msra.mxu0 0.0
  %889 = vmatprep.subr.mxu0 0.0
  %890 = vmatpush1.msra.mxu0 0.0
  %891 = vmatprep.subr.mxu0 0.0
  %892 = vmatpush1.msra.mxu0 0.0
  %893 = vmatprep.subr.mxu0 0.0
  %894 = vmatpush1.msra.mxu0 0.0
  %895 = vmatprep.subr.mxu0 0.0
  %896 = vmatpush1.msra.mxu0 0.0
  %897 = vmatprep.subr.mxu0 0.0
  %898 = vmatpush1.msra.mxu0 0.0
  %899 = vmatprep.subr.mxu0 0.0
  %900 = vmatpush1.msra.mxu0 0.0
  %901 = vmatprep.subr.mxu0 0.0
  %902 = vmatpush1.msra.mxu0 0.0
  %903 = vmatprep.subr.mxu0 0.0
  %904 = vmatpush1.msra.mxu0 0.0
  %905 = vmatprep.subr.mxu0 0.0
  %906 = vmatpush1.msra.mxu0 0.0
  %907 = vmatprep.subr.mxu0 0.0
  %908 = vmatpush1.msra.mxu0 0.0
  %909 = vmatprep.subr.mxu0 0.0
  %910 = vmatpush1.msra.mxu0 0.0
  %911 = vmatprep.subr.mxu0 0.0
  %912 = vmatpush1.msra.mxu0 0.0
  %913 = vmatprep.subr.mxu0 0.0
  %914 = vmatpush1.msra.mxu0 0.0
  %915 = vmatprep.subr.mxu0 0.0
  %916 = vmatpush1.msra.mxu0 0.0
  %917 = vmatprep.subr.mxu0 0.0
  %918 = vmatpush1.msra.mxu0 0.0
  %919 = vmatprep.subr.mxu0 0.0
  %920 = vmatpush1.msra.mxu0 0.0
  %921 = vmatprep.subr.mxu0 0.0
  %922 = vmatpush1.msra.mxu0 0.0
  %923 = vmatprep.subr.mxu0 0.0
  %924 = vmatpush1.msra.mxu0 0.0
  %925 = vmatprep.subr.mxu0 0.0
  %926 = vmatpush1.msra.mxu0 0.0
  %927 = vmatprep.subr.mxu0 0.0
  %928 = vmatpush1.msra.mxu0 0.0
  %929 = vmatprep.subr.mxu0 0.0
  %930 = vmatpush1.msra.mxu0 0.0
  %931 = vmatprep.subr.mxu0 0.0
  %932 = vmatpush1.msra.mxu0 0.0
  %933 = vmatprep.subr.mxu0 0.0
  %934 = vmatpush1.msra.mxu0 0.0
  %935 = vmatprep.subr.mxu0 0.0
  %936 = vmatpush1.msra.mxu0 0.0
  %937 = vmatprep.subr.mxu0 0.0
  %938 = vmatpush1.msra.mxu0 0.0
  %939 = vmatprep.subr.mxu0 0.0
  %940 = vmatpush1.msra.mxu0 0.0
  %941 = vmatprep.subr.mxu0 0.0
  %942 = vmatpush1.msra.mxu0 0.0
  %943 = vmatprep.subr.mxu0 0.0
  %944 = vmatpush1.msra.mxu0 0.0
  %945 = vmatprep.subr.mxu0 0.0
  %946 = vmatpush1.msra.mxu0 0.0
  %947 = vmatprep.mubr.f32.mxu0 0.0
  %948 = vmatmul.mubr.f32.gmra.mrb[0].mxu0 %v881
  %v949 = vpop.f32.mrb[0].mxu0
  %v950 = vadd.f32 0.0, %v949
  %v951 = vpop.f32.mrb[0].mxu0
  %952 = vdwg.mxu0
  %953 = vrot.lane.b32.xlu0 %v337, 88
  %v954 = vpop.permute.xlu0 %953
  %955 = vrot.lane.b32.xlu0 %v342, 88
  %v956 = vpop.permute.xlu0 %955
  %v960 = vsel %vm64, %v873, 0
  %962 = vmatprep.subr.mxu0 0.0
  %963 = vmatpush1.msra.mxu0 %v954
  %964 = vmatprep.subr.mxu0 0.0
  %965 = vmatpush1.msra.mxu0 %v956
  %966 = vmatprep.subr.mxu0 0.0
  %967 = vmatpush1.msra.mxu0 0.0
  %968 = vmatprep.subr.mxu0 0.0
  %969 = vmatpush1.msra.mxu0 0.0
  %970 = vmatprep.subr.mxu0 0.0
  %971 = vmatpush1.msra.mxu0 0.0
  %972 = vmatprep.subr.mxu0 0.0
  %973 = vmatpush1.msra.mxu0 0.0
  %974 = vmatprep.subr.mxu0 0.0
  %975 = vmatpush1.msra.mxu0 0.0
  %976 = vmatprep.subr.mxu0 0.0
  %977 = vmatpush1.msra.mxu0 0.0
  %978 = vmatprep.subr.mxu0 0.0
  %979 = vmatpush1.msra.mxu0 0.0
  %980 = vmatprep.subr.mxu0 0.0
  %981 = vmatpush1.msra.mxu0 0.0
  %982 = vmatprep.subr.mxu0 0.0
  %983 = vmatpush1.msra.mxu0 0.0
  %984 = vmatprep.subr.mxu0 0.0
  %985 = vmatpush1.msra.mxu0 0.0
  %986 = vmatprep.subr.mxu0 0.0
  %987 = vmatpush1.msra.mxu0 0.0
  %988 = vmatprep.subr.mxu0 0.0
  %989 = vmatpush1.msra.mxu0 0.0
  %990 = vmatprep.subr.mxu0 0.0
  %991 = vmatpush1.msra.mxu0 0.0
  %992 = vmatprep.subr.mxu0 0.0
  %993 = vmatpush1.msra.mxu0 0.0
  %994 = vmatprep.subr.mxu0 0.0
  %995 = vmatpush1.msra.mxu0 0.0
  %996 = vmatprep.subr.mxu0 0.0
  %997 = vmatpush1.msra.mxu0 0.0
  %998 = vmatprep.subr.mxu0 0.0
  %999 = vmatpush1.msra.mxu0 0.0
  %1000 = vmatprep.subr.mxu0 0.0
  %1001 = vmatpush1.msra.mxu0 0.0
  %1002 = vmatprep.subr.mxu0 0.0
  %1003 = vmatpush1.msra.mxu0 0.0
  %1004 = vmatprep.subr.mxu0 0.0
  %1005 = vmatpush1.msra.mxu0 0.0
  %1006 = vmatprep.subr.mxu0 0.0
  %1007 = vmatpush1.msra.mxu0 0.0
  %1008 = vmatprep.subr.mxu0 0.0
  %1009 = vmatpush1.msra.mxu0 0.0
  %1010 = vmatprep.subr.mxu0 0.0
  %1011 = vmatpush1.msra.mxu0 0.0
  %1012 = vmatprep.subr.mxu0 0.0
  %1013 = vmatpush1.msra.mxu0 0.0
  %1014 = vmatprep.subr.mxu0 0.0
  %1015 = vmatpush1.msra.mxu0 0.0
  %1016 = vmatprep.subr.mxu0 0.0
  %1017 = vmatpush1.msra.mxu0 0.0
  %1018 = vmatprep.subr.mxu0 0.0
  %1019 = vmatpush1.msra.mxu0 0.0
  %1020 = vmatprep.subr.mxu0 0.0
  %1021 = vmatpush1.msra.mxu0 0.0
  %1022 = vmatprep.subr.mxu0 0.0
  %1023 = vmatpush1.msra.mxu0 0.0
  %1024 = vmatprep.subr.mxu0 0.0
  %1025 = vmatpush1.msra.mxu0 0.0
  %1026 = vmatprep.mubr.f32.mxu0 0.0
  %1027 = vmatmul.mubr.f32.gmra.mrb[0].mxu0 %v960
  %v1028 = vpop.f32.mrb[0].mxu0
  %v1029 = vadd.f32 0.0, %v1028
  %v1030 = vpop.f32.mrb[0].mxu0
  %1031 = vdwg.mxu0
  %v1033 = vsel %vm349, %v950, 0
  %v1036 = vsel %vm349, %v1029, 0
  %1038 = vmatprep.subr.mxu0 0.0
  %1039 = vmatpush1.msra.mxu0 %v346
  %1040 = vmatprep.subr.mxu0 0.0
  %1041 = vmatpush1.msra.mxu0 0.0
  %1042 = vmatprep.subr.mxu0 0.0
  %1043 = vmatpush1.msra.mxu0 0.0
  %1044 = vmatprep.subr.mxu0 0.0
  %1045 = vmatpush1.msra.mxu0 0.0
  %1046 = vmatprep.subr.mxu0 0.0
  %1047 = vmatpush1.msra.mxu0 0.0
  %1048 = vmatprep.subr.mxu0 0.0
  %1049 = vmatpush1.msra.mxu0 0.0
  %1050 = vmatprep.subr.mxu0 0.0
  %1051 = vmatpush1.msra.mxu0 0.0
  %1052 = vmatprep.subr.mxu0 0.0
  %1053 = vmatpush1.msra.mxu0 0.0
  %1054 = vmatprep.subr.mxu0 0.0
  %1055 = vmatpush1.msra.mxu0 0.0
  %1056 = vmatprep.subr.mxu0 0.0
  %1057 = vmatpush1.msra.mxu0 0.0
  %1058 = vmatprep.subr.mxu0 0.0
  %1059 = vmatpush1.msra.mxu0 0.0
  %1060 = vmatprep.subr.mxu0 0.0
  %1061 = vmatpush1.msra.mxu0 0.0
  %1062 = vmatprep.subr.mxu0 0.0
  %1063 = vmatpush1.msra.mxu0 0.0
  %1064 = vmatprep.subr.mxu0 0.0
  %1065 = vmatpush1.msra.mxu0 0.0
  %1066 = vmatprep.subr.mxu0 0.0
  %1067 = vmatpush1.msra.mxu0 0.0
  %1068 = vmatprep.subr.mxu0 0.0
  %1069 = vmatpush1.msra.mxu0 0.0
  %1070 = vmatprep.subr.mxu0 0.0
  %1071 = vmatpush1.msra.mxu0 0.0
  %1072 = vmatprep.subr.mxu0 0.0
  %1073 = vmatpush1.msra.mxu0 0.0
  %1074 = vmatprep.subr.mxu0 0.0
  %1075 = vmatpush1.msra.mxu0 0.0
  %1076 = vmatprep.subr.mxu0 0.0
  %1077 = vmatpush1.msra.mxu0 0.0
  %1078 = vmatprep.subr.mxu0 0.0
  %1079 = vmatpush1.msra.mxu0 0.0
  %1080 = vmatprep.subr.mxu0 0.0
  %1081 = vmatpush1.msra.mxu0 0.0
  %1082 = vmatprep.subr.mxu0 0.0
  %1083 = vmatpush1.msra.mxu0 0.0
  %1084 = vmatprep.subr.mxu0 0.0
  %1085 = vmatpush1.msra.mxu0 0.0
  %1086 = vmatprep.subr.mxu0 0.0
  %1087 = vmatpush1.msra.mxu0 0.0
  %1088 = vmatprep.subr.mxu0 0.0
  %1089 = vmatpush1.msra.mxu0 0.0
  %1090 = vmatprep.subr.mxu0 0.0
  %1091 = vmatpush1.msra.mxu0 0.0
  %1092 = vmatprep.subr.mxu0 0.0
  %1093 = vmatpush1.msra.mxu0 0.0
  %1094 = vmatprep.subr.mxu0 0.0
  %1095 = vmatpush1.msra.mxu0 0.0
  %1096 = vmatprep.subr.mxu0 0.0
  %1097 = vmatpush1.msra.mxu0 0.0
  %1098 = vmatprep.subr.mxu0 0.0
  %1099 = vmatpush1.msra.mxu0 0.0
  %1100 = vmatprep.subr.mxu0 0.0
  %1101 = vmatpush1.msra.mxu0 0.0
  %1102 = vmatprep.mubr.f32.mxu0 0.0
  %1103 = vmatmul.mubr.f32.gmra.mrb[0].mxu0 %v1033
  %v1104 = vpop.f32.mrb[0].mxu0
  %v1105 = vadd.f32 0.0, %v1104
  %v1106 = vpop.f32.mrb[0].mxu0
  %1107 = vmatprep.mubr.f32.mxu0 0.0
  %1108 = vmatmul.mubr.f32.gmra.mrb[0].mxu0 %v1036
  %v1109 = vpop.f32.mrb[0].mxu0
  %v1110 = vadd.f32 0.0, %v1109
  %v1111 = vpop.f32.mrb[0].mxu0
  %1112 = vdwg.mxu0
  %v1114 = vsel %vm349, %v606, 0
  %v1117 = vsel %vm349, %v685, 0
  %1119 = vmatprep.subr.mxu0 0.0
  %1120 = vmatpush1.msra.mxu0 %v345
  %1121 = vmatprep.subr.mxu0 0.0
  %1122 = vmatpush1.msra.mxu0 0.0
  %1123 = vmatprep.subr.mxu0 0.0
  %1124 = vmatpush1.msra.mxu0 0.0
  %1125 = vmatprep.subr.mxu0 0.0
  %1126 = vmatpush1.msra.mxu0 0.0
  %1127 = vmatprep.subr.mxu0 0.0
  %1128 = vmatpush1.msra.mxu0 0.0
  %1129 = vmatprep.subr.mxu0 0.0
  %1130 = vmatpush1.msra.mxu0 0.0
  %1131 = vmatprep.subr.mxu0 0.0
  %1132 = vmatpush1.msra.mxu0 0.0
  %1133 = vmatprep.subr.mxu0 0.0
  %1134 = vmatpush1.msra.mxu0 0.0
  %1135 = vmatprep.subr.mxu0 0.0
  %1136 = vmatpush1.msra.mxu0 0.0
  %1137 = vmatprep.subr.mxu0 0.0
  %1138 = vmatpush1.msra.mxu0 0.0
  %1139 = vmatprep.subr.mxu0 0.0
  %1140 = vmatpush1.msra.mxu0 0.0
  %1141 = vmatprep.subr.mxu0 0.0
  %1142 = vmatpush1.msra.mxu0 0.0
  %1143 = vmatprep.subr.mxu0 0.0
  %1144 = vmatpush1.msra.mxu0 0.0
  %1145 = vmatprep.subr.mxu0 0.0
  %1146 = vmatpush1.msra.mxu0 0.0
  %1147 = vmatprep.subr.mxu0 0.0
  %1148 = vmatpush1.msra.mxu0 0.0
  %1149 = vmatprep.subr.mxu0 0.0
  %1150 = vmatpush1.msra.mxu0 0.0
  %1151 = vmatprep.subr.mxu0 0.0
  %1152 = vmatpush1.msra.mxu0 0.0
  %1153 = vmatprep.subr.mxu0 0.0
  %1154 = vmatpush1.msra.mxu0 0.0
  %1155 = vmatprep.subr.mxu0 0.0
  %1156 = vmatpush1.msra.mxu0 0.0
  %1157 = vmatprep.subr.mxu0 0.0
  %1158 = vmatpush1.msra.mxu0 0.0
  %1159 = vmatprep.subr.mxu0 0.0
  %1160 = vmatpush1.msra.mxu0 0.0
  %1161 = vmatprep.subr.mxu0 0.0
  %1162 = vmatpush1.msra.mxu0 0.0
  %1163 = vmatprep.subr.mxu0 0.0
  %1164 = vmatpush1.msra.mxu0 0.0
  %1165 = vmatprep.subr.mxu0 0.0
  %1166 = vmatpush1.msra.mxu0 0.0
  %1167 = vmatprep.subr.mxu0 0.0
  %1168 = vmatpush1.msra.mxu0 0.0
  %1169 = vmatprep.subr.mxu0 0.0
  %1170 = vmatpush1.msra.mxu0 0.0
  %1171 = vmatprep.subr.mxu0 0.0
  %1172 = vmatpush1.msra.mxu0 0.0
  %1173 = vmatprep.subr.mxu0 0.0
  %1174 = vmatpush1.msra.mxu0 0.0
  %1175 = vmatprep.subr.mxu0 0.0
  %1176 = vmatpush1.msra.mxu0 0.0
  %1177 = vmatprep.subr.mxu0 0.0
  %1178 = vmatpush1.msra.mxu0 0.0
  %1179 = vmatprep.subr.mxu0 0.0
  %1180 = vmatpush1.msra.mxu0 0.0
  %1181 = vmatprep.subr.mxu0 0.0
  %1182 = vmatpush1.msra.mxu0 0.0
  %1183 = vmatprep.mubr.f32.mxu0 0.0
  %1184 = vmatmul.mubr.f32.gmra.mrb[0].mxu0 %v1114
  %v1185 = vpop.f32.mrb[0].mxu0
  %v1186 = vadd.f32 %v1105, %v1185
  %v1187 = vpop.f32.mrb[0].mxu0
  %1188 = vmatprep.mubr.f32.mxu0 0.0
  %1189 = vmatmul.mubr.f32.gmra.mrb[0].mxu0 %v1117
  %v1190 = vpop.f32.mrb[0].mxu0
  %v1191 = vadd.f32 %v1110, %v1190
  %v1192 = vpop.f32.mrb[0].mxu0
  %1193 = vdwg.mxu0
  %1194 = vrot.lane.b32.xlu0 %v239, 112
  %v1195 = vpop.permute.xlu0 %1194
  %1196 = vrot.lane.b32.xlu0 %v327, 112
  %v1197 = vpop.permute.xlu0 %1196
  %1198 = vrot.lane.b32.xlu0 %v332, 112
  %v1199 = vpop.permute.xlu0 %1198
  %v1200 = vsel %vm349, %v1195, 0
  %v1202 = vsel %vm349, %v1197, 0
  %v1204 = vsel %vm349, %v1199, 0
  %1206 = vmatprep.subr.mxu0 0.0
  %1207 = vmatpush1.xpose.msra.mxu0 %v1202
  %1208 = vmatprep.subr.mxu0 0.0
  %1209 = vmatpush1.xpose.msra.mxu0 %v1204
  %1210 = vmatprep.subr.mxu0 0.0
  %1211 = vmatpush1.xpose.msra.mxu0 0.0
  %1212 = vmatprep.subr.mxu0 0.0
  %1213 = vmatpush1.xpose.msra.mxu0 0.0
  %1214 = vmatprep.subr.mxu0 0.0
  %1215 = vmatpush1.xpose.msra.mxu0 0.0
  %1216 = vmatprep.subr.mxu0 0.0
  %1217 = vmatpush1.xpose.msra.mxu0 0.0
  %1218 = vmatprep.subr.mxu0 0.0
  %1219 = vmatpush1.xpose.msra.mxu0 0.0
  %1220 = vmatprep.subr.mxu0 0.0
  %1221 = vmatpush1.xpose.msra.mxu0 0.0
  %1222 = vmatprep.subr.mxu0 0.0
  %1223 = vmatpush1.xpose.msra.mxu0 0.0
  %1224 = vmatprep.subr.mxu0 0.0
  %1225 = vmatpush1.xpose.msra.mxu0 0.0
  %1226 = vmatprep.subr.mxu0 0.0
  %1227 = vmatpush1.xpose.msra.mxu0 0.0
  %1228 = vmatprep.subr.mxu0 0.0
  %1229 = vmatpush1.xpose.msra.mxu0 0.0
  %1230 = vmatprep.subr.mxu0 0.0
  %1231 = vmatpush1.xpose.msra.mxu0 0.0
  %1232 = vmatprep.subr.mxu0 0.0
  %1233 = vmatpush1.xpose.msra.mxu0 0.0
  %1234 = vmatprep.subr.mxu0 0.0
  %1235 = vmatpush1.xpose.msra.mxu0 0.0
  %1236 = vmatprep.subr.mxu0 0.0
  %1237 = vmatpush1.xpose.msra.mxu0 0.0
  %1238 = vmatprep.subr.mxu0 0.0
  %1239 = vmatpush1.xpose.msra.mxu0 0.0
  %1240 = vmatprep.subr.mxu0 0.0
  %1241 = vmatpush1.xpose.msra.mxu0 0.0
  %1242 = vmatprep.subr.mxu0 0.0
  %1243 = vmatpush1.xpose.msra.mxu0 0.0
  %1244 = vmatprep.subr.mxu0 0.0
  %1245 = vmatpush1.xpose.msra.mxu0 0.0
  %1246 = vmatprep.subr.mxu0 0.0
  %1247 = vmatpush1.xpose.msra.mxu0 0.0
  %1248 = vmatprep.subr.mxu0 0.0
  %1249 = vmatpush1.xpose.msra.mxu0 0.0
  %1250 = vmatprep.subr.mxu0 0.0
  %1251 = vmatpush1.xpose.msra.mxu0 0.0
  %1252 = vmatprep.subr.mxu0 0.0
  %1253 = vmatpush1.xpose.msra.mxu0 0.0
  %1254 = vmatprep.subr.mxu0 0.0
  %1255 = vmatpush1.xpose.msra.mxu0 0.0
  %1256 = vmatprep.subr.mxu0 0.0
  %1257 = vmatpush1.xpose.msra.mxu0 0.0
  %1258 = vmatprep.subr.mxu0 0.0
  %1259 = vmatpush1.xpose.msra.mxu0 0.0
  %1260 = vmatprep.subr.mxu0 0.0
  %1261 = vmatpush1.xpose.msra.mxu0 0.0
  %1262 = vmatprep.subr.mxu0 0.0
  %1263 = vmatpush1.xpose.msra.mxu0 0.0
  %1264 = vmatprep.subr.mxu0 0.0
  %1265 = vmatpush1.xpose.msra.mxu0 0.0
  %1266 = vmatprep.subr.mxu0 0.0
  %1267 = vmatpush1.xpose.msra.mxu0 0.0
  %1268 = vmatprep.subr.mxu0 0.0
  %1269 = vmatpush1.xpose.msra.mxu0 0.0
  %1270 = vmatprep.mubr.f32.mxu0 0.0
  %1271 = vmatmul.mubr.f32.gmra.mrb[0].mxu0 %v1200
  %v1272 = vpop.f32.mrb[0].mxu0
  %v1273 = vadd.f32 0.0, %v1272
  %v1274 = vpop.f32.mrb[0].mxu0
  %1275 = vdwg.mxu0
  %1276 = vrot.lane.b32.xlu0 %v240, 112
  %v1277 = vpop.permute.xlu0 %1276
  %1278 = vrot.lane.b32.xlu0 %v337, 112
  %v1279 = vpop.permute.xlu0 %1278
  %1280 = vrot.lane.b32.xlu0 %v342, 112
  %v1281 = vpop.permute.xlu0 %1280
  %v1282 = vsel %vm349, %v1277, 0
  %v1284 = vsel %vm349, %v1279, 0
  %v1286 = vsel %vm349, %v1281, 0
  %1288 = vmatprep.subr.mxu0 0.0
  %1289 = vmatpush1.xpose.msra.mxu0 %v1284
  %1290 = vmatprep.subr.mxu0 0.0
  %1291 = vmatpush1.xpose.msra.mxu0 %v1286
  %1292 = vmatprep.subr.mxu0 0.0
  %1293 = vmatpush1.xpose.msra.mxu0 0.0
  %1294 = vmatprep.subr.mxu0 0.0
  %1295 = vmatpush1.xpose.msra.mxu0 0.0
  %1296 = vmatprep.subr.mxu0 0.0
  %1297 = vmatpush1.xpose.msra.mxu0 0.0
  %1298 = vmatprep.subr.mxu0 0.0
  %1299 = vmatpush1.xpose.msra.mxu0 0.0
  %1300 = vmatprep.subr.mxu0 0.0
  %1301 = vmatpush1.xpose.msra.mxu0 0.0
  %1302 = vmatprep.subr.mxu0 0.0
  %1303 = vmatpush1.xpose.msra.mxu0 0.0
  %1304 = vmatprep.subr.mxu0 0.0
  %1305 = vmatpush1.xpose.msra.mxu0 0.0
  %1306 = vmatprep.subr.mxu0 0.0
  %1307 = vmatpush1.xpose.msra.mxu0 0.0
  %1308 = vmatprep.subr.mxu0 0.0
  %1309 = vmatpush1.xpose.msra.mxu0 0.0
  %1310 = vmatprep.subr.mxu0 0.0
  %1311 = vmatpush1.xpose.msra.mxu0 0.0
  %1312 = vmatprep.subr.mxu0 0.0
  %1313 = vmatpush1.xpose.msra.mxu0 0.0
  %1314 = vmatprep.subr.mxu0 0.0
  %1315 = vmatpush1.xpose.msra.mxu0 0.0
  %1316 = vmatprep.subr.mxu0 0.0
  %1317 = vmatpush1.xpose.msra.mxu0 0.0
  %1318 = vmatprep.subr.mxu0 0.0
  %1319 = vmatpush1.xpose.msra.mxu0 0.0
  %1320 = vmatprep.subr.mxu0 0.0
  %1321 = vmatpush1.xpose.msra.mxu0 0.0
  %1322 = vmatprep.subr.mxu0 0.0
  %1323 = vmatpush1.xpose.msra.mxu0 0.0
  %1324 = vmatprep.subr.mxu0 0.0
  %1325 = vmatpush1.xpose.msra.mxu0 0.0
  %1326 = vmatprep.subr.mxu0 0.0
  %1327 = vmatpush1.xpose.msra.mxu0 0.0
  %1328 = vmatprep.subr.mxu0 0.0
  %1329 = vmatpush1.xpose.msra.mxu0 0.0
  %1330 = vmatprep.subr.mxu0 0.0
  %1331 = vmatpush1.xpose.msra.mxu0 0.0
  %1332 = vmatprep.subr.mxu0 0.0
  %1333 = vmatpush1.xpose.msra.mxu0 0.0
  %1334 = vmatprep.subr.mxu0 0.0
  %1335 = vmatpush1.xpose.msra.mxu0 0.0
  %1336 = vmatprep.subr.mxu0 0.0
  %1337 = vmatpush1.xpose.msra.mxu0 0.0
  %1338 = vmatprep.subr.mxu0 0.0
  %1339 = vmatpush1.xpose.msra.mxu0 0.0
  %1340 = vmatprep.subr.mxu0 0.0
  %1341 = vmatpush1.xpose.msra.mxu0 0.0
  %1342 = vmatprep.subr.mxu0 0.0
  %1343 = vmatpush1.xpose.msra.mxu0 0.0
  %1344 = vmatprep.subr.mxu0 0.0
  %1345 = vmatpush1.xpose.msra.mxu0 0.0
  %1346 = vmatprep.subr.mxu0 0.0
  %1347 = vmatpush1.xpose.msra.mxu0 0.0
  %1348 = vmatprep.subr.mxu0 0.0
  %1349 = vmatpush1.xpose.msra.mxu0 0.0
  %1350 = vmatprep.subr.mxu0 0.0
  %1351 = vmatpush1.xpose.msra.mxu0 0.0
  %1352 = vmatprep.mubr.f32.mxu0 0.0
  %1353 = vmatmul.mubr.f32.gmra.mrb[0].mxu0 %v1282
  %v1354 = vpop.f32.mrb[0].mxu0
  %v1355 = vadd.f32 0.0, %v1354
  %v1356 = vpop.f32.mrb[0].mxu0
  %1357 = vdwg.mxu0
  %v1358 = vsel %vm64, %v1273, -inf
  %1359 = vmax.xlane.f32.xlu0 %v1358
  %v1360 = vpop.xlane.xlu0 %1359
  %v1361 = vsel %vm64, %v1355, -inf
  %1362 = vmax.xlane.f32.xlu0 %v1361
  %v1363 = vpop.xlane.xlu0 %1362
  %v1364 = vsub.f32 %v1273, %v1360
  %v1365 = vsub.f32 %v1355, %v1363
  %v1366 = vmul.f32 %v1364, 1.442695
  %v1367 = vpow.pop %v1366
  %v1368 = vmul.f32 %v1365, 1.442695
  %v1369 = vpow.pop %v1368
  %v1370 = vsel %vm64, %v1367, 0.0
  %1371 = vadd.xlane.f32.xlu0 %v1370
  %v1372 = vpop.xlane.xlu0 %1371
  %v1373 = vsel %vm64, %v1369, 0.0
  %1374 = vadd.xlane.f32.xlu0 %v1373
  %v1375 = vpop.xlane.xlu0 %1374
  %v1376 = vrcp.pop %v1372
  %v1377 = vrcp.pop %v1375
  %v1378 = vmul.f32 %v1367, %v1376
  %v1379 = vmul.f32 %v1369, %v1377
  %1380 = vrot.lane.b32.xlu0 %v327, 80
  %v1381 = vpop.permute.xlu0 %1380
  %1382 = vrot.lane.b32.xlu0 %v332, 80
  %v1383 = vpop.permute.xlu0 %1382
  %v1387 = vsel %vm64, %v1378, 0
  %1389 = vmatprep.subr.mxu0 0.0
  %1390 = vmatpush1.msra.mxu0 %v1381
  %1391 = vmatprep.subr.mxu0 0.0
  %1392 = vmatpush1.msra.mxu0 %v1383
  %1393 = vmatprep.subr.mxu0 0.0
  %1394 = vmatpush1.msra.mxu0 0.0
  %1395 = vmatprep.subr.mxu0 0.0
  %1396 = vmatpush1.msra.mxu0 0.0
  %1397 = vmatprep.subr.mxu0 0.0
  %1398 = vmatpush1.msra.mxu0 0.0
  %1399 = vmatprep.subr.mxu0 0.0
  %1400 = vmatpush1.msra.mxu0 0.0
  %1401 = vmatprep.subr.mxu0 0.0
  %1402 = vmatpush1.msra.mxu0 0.0
  %1403 = vmatprep.subr.mxu0 0.0
  %1404 = vmatpush1.msra.mxu0 0.0
  %1405 = vmatprep.subr.mxu0 0.0
  %1406 = vmatpush1.msra.mxu0 0.0
  %1407 = vmatprep.subr.mxu0 0.0
  %1408 = vmatpush1.msra.mxu0 0.0
  %1409 = vmatprep.subr.mxu0 0.0
  %1410 = vmatpush1.msra.mxu0 0.0
  %1411 = vmatprep.subr.mxu0 0.0
  %1412 = vmatpush1.msra.mxu0 0.0
  %1413 = vmatprep.subr.mxu0 0.0
  %1414 = vmatpush1.msra.mxu0 0.0
  %1415 = vmatprep.subr.mxu0 0.0
  %1416 = vmatpush1.msra.mxu0 0.0
  %1417 = vmatprep.subr.mxu0 0.0
  %1418 = vmatpush1.msra.mxu0 0.0
  %1419 = vmatprep.subr.mxu0 0.0
  %1420 = vmatpush1.msra.mxu0 0.0
  %1421 = vmatprep.subr.mxu0 0.0
  %1422 = vmatpush1.msra.mxu0 0.0
  %1423 = vmatprep.subr.mxu0 0.0
  %1424 = vmatpush1.msra.mxu0 0.0
  %1425 = vmatprep.subr.mxu0 0.0
  %1426 = vmatpush1.msra.mxu0 0.0
  %1427 = vmatprep.subr.mxu0 0.0
  %1428 = vmatpush1.msra.mxu0 0.0
  %1429 = vmatprep.subr.mxu0 0.0
  %1430 = vmatpush1.msra.mxu0 0.0
  %1431 = vmatprep.subr.mxu0 0.0
  %1432 = vmatpush1.msra.mxu0 0.0
  %1433 = vmatprep.subr.mxu0 0.0
  %1434 = vmatpush1.msra.mxu0 0.0
  %1435 = vmatprep.subr.mxu0 0.0
  %1436 = vmatpush1.msra.mxu0 0.0
  %1437 = vmatprep.subr.mxu0 0.0
  %1438 = vmatpush1.msra.mxu0 0.0
  %1439 = vmatprep.subr.mxu0 0.0
  %1440 = vmatpush1.msra.mxu0 0.0
  %1441 = vmatprep.subr.mxu0 0.0
  %1442 = vmatpush1.msra.mxu0 0.0
  %1443 = vmatprep.subr.mxu0 0.0
  %1444 = vmatpush1.msra.mxu0 0.0
  %1445 = vmatprep.subr.mxu0 0.0
  %1446 = vmatpush1.msra.mxu0 0.0
  %1447 = vmatprep.subr.mxu0 0.0
  %1448 = vmatpush1.msra.mxu0 0.0
  %1449 = vmatprep.subr.mxu0 0.0
  %1450 = vmatpush1.msra.mxu0 0.0
  %1451 = vmatprep.subr.mxu0 0.0
  %1452 = vmatpush1.msra.mxu0 0.0
  %1453 = vmatprep.mubr.f32.mxu0 0.0
  %1454 = vmatmul.mubr.f32.gmra.mrb[0].mxu0 %v1387
  %v1455 = vpop.f32.mrb[0].mxu0
  %v1456 = vadd.f32 0.0, %v1455
  %v1457 = vpop.f32.mrb[0].mxu0
  %1458 = vdwg.mxu0
  %1459 = vrot.lane.b32.xlu0 %v337, 80
  %v1460 = vpop.permute.xlu0 %1459
  %1461 = vrot.lane.b32.xlu0 %v342, 80
  %v1462 = vpop.permute.xlu0 %1461
  %v1466 = vsel %vm64, %v1379, 0
  %1468 = vmatprep.subr.mxu0 0.0
  %1469 = vmatpush1.msra.mxu0 %v1460
  %1470 = vmatprep.subr.mxu0 0.0
  %1471 = vmatpush1.msra.mxu0 %v1462
  %1472 = vmatprep.subr.mxu0 0.0
  %1473 = vmatpush1.msra.mxu0 0.0
  %1474 = vmatprep.subr.mxu0 0.0
  %1475 = vmatpush1.msra.mxu0 0.0
  %1476 = vmatprep.subr.mxu0 0.0
  %1477 = vmatpush1.msra.mxu0 0.0
  %1478 = vmatprep.subr.mxu0 0.0
  %1479 = vmatpush1.msra.mxu0 0.0
  %1480 = vmatprep.subr.mxu0 0.0
  %1481 = vmatpush1.msra.mxu0 0.0
  %1482 = vmatprep.subr.mxu0 0.0
  %1483 = vmatpush1.msra.mxu0 0.0
  %1484 = vmatprep.subr.mxu0 0.0
  %1485 = vmatpush1.msra.mxu0 0.0
  %1486 = vmatprep.subr.mxu0 0.0
  %1487 = vmatpush1.msra.mxu0 0.0
  %1488 = vmatprep.subr.mxu0 0.0
  %1489 = vmatpush1.msra.mxu0 0.0
  %1490 = vmatprep.subr.mxu0 0.0
  %1491 = vmatpush1.msra.mxu0 0.0
  %1492 = vmatprep.subr.mxu0 0.0
  %1493 = vmatpush1.msra.mxu0 0.0
  %1494 = vmatprep.subr.mxu0 0.0
  %1495 = vmatpush1.msra.mxu0 0.0
  %1496 = vmatprep.subr.mxu0 0.0
  %1497 = vmatpush1.msra.mxu0 0.0
  %1498 = vmatprep.subr.mxu0 0.0
  %1499 = vmatpush1.msra.mxu0 0.0
  %1500 = vmatprep.subr.mxu0 0.0
  %1501 = vmatpush1.msra.mxu0 0.0
  %1502 = vmatprep.subr.mxu0 0.0
  %1503 = vmatpush1.msra.mxu0 0.0
  %1504 = vmatprep.subr.mxu0 0.0
  %1505 = vmatpush1.msra.mxu0 0.0
  %1506 = vmatprep.subr.mxu0 0.0
  %1507 = vmatpush1.msra.mxu0 0.0
  %1508 = vmatprep.subr.mxu0 0.0
  %1509 = vmatpush1.msra.mxu0 0.0
  %1510 = vmatprep.subr.mxu0 0.0
  %1511 = vmatpush1.msra.mxu0 0.0
  %1512 = vmatprep.subr.mxu0 0.0
  %1513 = vmatpush1.msra.mxu0 0.0
  %1514 = vmatprep.subr.mxu0 0.0
  %1515 = vmatpush1.msra.mxu0 0.0
  %1516 = vmatprep.subr.mxu0 0.0
  %1517 = vmatpush1.msra.mxu0 0.0
  %1518 = vmatprep.subr.mxu0 0.0
  %1519 = vmatpush1.msra.mxu0 0.0
  %1520 = vmatprep.subr.mxu0 0.0
  %1521 = vmatpush1.msra.mxu0 0.0
  %1522 = vmatprep.subr.mxu0 0.0
  %1523 = vmatpush1.msra.mxu0 0.0
  %1524 = vmatprep.subr.mxu0 0.0
  %1525 = vmatpush1.msra.mxu0 0.0
  %1526 = vmatprep.subr.mxu0 0.0
  %1527 = vmatpush1.msra.mxu0 0.0
  %1528 = vmatprep.subr.mxu0 0.0
  %1529 = vmatpush1.msra.mxu0 0.0
  %1530 = vmatprep.subr.mxu0 0.0
  %1531 = vmatpush1.msra.mxu0 0.0
  %1532 = vmatprep.mubr.f32.mxu0 0.0
  %1533 = vmatmul.mubr.f32.gmra.mrb[0].mxu0 %v1466
  %v1534 = vpop.f32.mrb[0].mxu0
  %v1535 = vadd.f32 0.0, %v1534
  %v1536 = vpop.f32.mrb[0].mxu0
  %1537 = vdwg.mxu0
  %v1539 = vsel %vm349, %v1456, 0
  %v1542 = vsel %vm349, %v1535, 0
  %1544 = vmatprep.subr.mxu0 0.0
  %1545 = vmatpush1.msra.mxu0 %v347
  %1546 = vmatprep.subr.mxu0 0.0
  %1547 = vmatpush1.msra.mxu0 0.0
  %1548 = vmatprep.subr.mxu0 0.0
  %1549 = vmatpush1.msra.mxu0 0.0
  %1550 = vmatprep.subr.mxu0 0.0
  %1551 = vmatpush1.msra.mxu0 0.0
  %1552 = vmatprep.subr.mxu0 0.0
  %1553 = vmatpush1.msra.mxu0 0.0
  %1554 = vmatprep.subr.mxu0 0.0
  %1555 = vmatpush1.msra.mxu0 0.0
  %1556 = vmatprep.subr.mxu0 0.0
  %1557 = vmatpush1.msra.mxu0 0.0
  %1558 = vmatprep.subr.mxu0 0.0
  %1559 = vmatpush1.msra.mxu0 0.0
  %1560 = vmatprep.subr.mxu0 0.0
  %1561 = vmatpush1.msra.mxu0 0.0
  %1562 = vmatprep.subr.mxu0 0.0
  %1563 = vmatpush1.msra.mxu0 0.0
  %1564 = vmatprep.subr.mxu0 0.0
  %1565 = vmatpush1.msra.mxu0 0.0
  %1566 = vmatprep.subr.mxu0 0.0
  %1567 = vmatpush1.msra.mxu0 0.0
  %1568 = vmatprep.subr.mxu0 0.0
  %1569 = vmatpush1.msra.mxu0 0.0
  %1570 = vmatprep.subr.mxu0 0.0
  %1571 = vmatpush1.msra.mxu0 0.0
  %1572 = vmatprep.subr.mxu0 0.0
  %1573 = vmatpush1.msra.mxu0 0.0
  %1574 = vmatprep.subr.mxu0 0.0
  %1575 = vmatpush1.msra.mxu0 0.0
  %1576 = vmatprep.subr.mxu0 0.0
  %1577 = vmatpush1.msra.mxu0 0.0
  %1578 = vmatprep.subr.mxu0 0.0
  %1579 = vmatpush1.msra.mxu0 0.0
  %1580 = vmatprep.subr.mxu0 0.0
  %1581 = vmatpush1.msra.mxu0 0.0
  %1582 = vmatprep.subr.mxu0 0.0
  %1583 = vmatpush1.msra.mxu0 0.0
  %1584 = vmatprep.subr.mxu0 0.0
  %1585 = vmatpush1.msra.mxu0 0.0
  %1586 = vmatprep.subr.mxu0 0.0
  %1587 = vmatpush1.msra.mxu0 0.0
  %1588 = vmatprep.subr.mxu0 0.0
  %1589 = vmatpush1.msra.mxu0 0.0
  %1590 = vmatprep.subr.mxu0 0.0
  %1591 = vmatpush1.msra.mxu0 0.0
  %1592 = vmatprep.subr.mxu0 0.0
  %1593 = vmatpush1.msra.mxu0 0.0
  %1594 = vmatprep.subr.mxu0 0.0
  %1595 = vmatpush1.msra.mxu0 0.0
  %1596 = vmatprep.subr.mxu0 0.0
  %1597 = vmatpush1.msra.mxu0 0.0
  %1598 = vmatprep.subr.mxu0 0.0
  %1599 = vmatpush1.msra.mxu0 0.0
  %1600 = vmatprep.subr.mxu0 0.0
  %1601 = vmatpush1.msra.mxu0 0.0
  %1602 = vmatprep.subr.mxu0 0.0
  %1603 = vmatpush1.msra.mxu0 0.0
  %1604 = vmatprep.subr.mxu0 0.0
  %1605 = vmatpush1.msra.mxu0 0.0
  %1606 = vmatprep.subr.mxu0 0.0
  %1607 = vmatpush1.msra.mxu0 0.0
  %1608 = vmatprep.mubr.f32.mxu0 0.0
  %1609 = vmatmul.mubr.f32.gmra.mrb[0].mxu0 %v1539
  %v1610 = vpop.f32.mrb[0].mxu0
  %v1611 = vadd.f32 0.0, %v1610
  %v1612 = vpop.f32.mrb[0].mxu0
  %1613 = vmatprep.mubr.f32.mxu0 0.0
  %1614 = vmatmul.mubr.f32.gmra.mrb[0].mxu0 %v1542
  %v1615 = vpop.f32.mrb[0].mxu0
  %v1616 = vadd.f32 0.0, %v1615
  %v1617 = vpop.f32.mrb[0].mxu0
  %1618 = vdwg.mxu0
  %v1619 = vadd.f32 %v1186, %v1611
  %v1620 = vadd.f32 %v1191, %v1616
  %1621 = vrot.lane.b32.xlu0 %v239, 104
  %v1622 = vpop.permute.xlu0 %1621
  %1623 = vrot.lane.b32.xlu0 %v327, 104
  %v1624 = vpop.permute.xlu0 %1623
  %1625 = vrot.lane.b32.xlu0 %v332, 104
  %v1626 = vpop.permute.xlu0 %1625
  %v1627 = vsel %vm349, %v1622, 0
  %v1629 = vsel %vm349, %v1624, 0
  %v1631 = vsel %vm349, %v1626, 0
  %1633 = vmatprep.subr.mxu0 0.0
  %1634 = vmatpush1.xpose.msra.mxu0 %v1629
  %1635 = vmatprep.subr.mxu0 0.0
  %1636 = vmatpush1.xpose.msra.mxu0 %v1631
  %1637 = vmatprep.subr.mxu0 0.0
  %1638 = vmatpush1.xpose.msra.mxu0 0.0
  %1639 = vmatprep.subr.mxu0 0.0
  %1640 = vmatpush1.xpose.msra.mxu0 0.0
  %1641 = vmatprep.subr.mxu0 0.0
  %1642 = vmatpush1.xpose.msra.mxu0 0.0
  %1643 = vmatprep.subr.mxu0 0.0
  %1644 = vmatpush1.xpose.msra.mxu0 0.0
  %1645 = vmatprep.subr.mxu0 0.0
  %1646 = vmatpush1.xpose.msra.mxu0 0.0
  %1647 = vmatprep.subr.mxu0 0.0
  %1648 = vmatpush1.xpose.msra.mxu0 0.0
  %1649 = vmatprep.subr.mxu0 0.0
  %1650 = vmatpush1.xpose.msra.mxu0 0.0
  %1651 = vmatprep.subr.mxu0 0.0
  %1652 = vmatpush1.xpose.msra.mxu0 0.0
  %1653 = vmatprep.subr.mxu0 0.0
  %1654 = vmatpush1.xpose.msra.mxu0 0.0
  %1655 = vmatprep.subr.mxu0 0.0
  %1656 = vmatpush1.xpose.msra.mxu0 0.0
  %1657 = vmatprep.subr.mxu0 0.0
  %1658 = vmatpush1.xpose.msra.mxu0 0.0
  %1659 = vmatprep.subr.mxu0 0.0
  %1660 = vmatpush1.xpose.msra.mxu0 0.0
  %1661 = vmatprep.subr.mxu0 0.0
  %1662 = vmatpush1.xpose.msra.mxu0 0.0
  %1663 = vmatprep.subr.mxu0 0.0
  %1664 = vmatpush1.xpose.msra.mxu0 0.0
  %1665 = vmatprep.subr.mxu0 0.0
  %1666 = vmatpush1.xpose.msra.mxu0 0.0
  %1667 = vmatprep.subr.mxu0 0.0
  %1668 = vmatpush1.xpose.msra.mxu0 0.0
  %1669 = vmatprep.subr.mxu0 0.0
  %1670 = vmatpush1.xpose.msra.mxu0 0.0
  %1671 = vmatprep.subr.mxu0 0.0
  %1672 = vmatpush1.xpose.msra.mxu0 0.0
  %1673 = vmatprep.subr.mxu0 0.0
  %1674 = vmatpush1.xpose.msra.mxu0 0.0
  %1675 = vmatprep.subr.mxu0 0.0
  %1676 = vmatpush1.xpose.msra.mxu0 0.0
  %1677 = vmatprep.subr.mxu0 0.0
  %1678 = vmatpush1.xpose.msra.mxu0 0.0
  %1679 = vmatprep.subr.mxu0 0.0
  %1680 = vmatpush1.xpose.msra.mxu0 0.0
  %1681 = vmatprep.subr.mxu0 0.0
  %1682 = vmatpush1.xpose.msra.mxu0 0.0
  %1683 = vmatprep.subr.mxu0 0.0
  %1684 = vmatpush1.xpose.msra.mxu0 0.0
  %1685 = vmatprep.subr.mxu0 0.0
  %1686 = vmatpush1.xpose.msra.mxu0 0.0
  %1687 = vmatprep.subr.mxu0 0.0
  %1688 = vmatpush1.xpose.msra.mxu0 0.0
  %1689 = vmatprep.subr.mxu0 0.0
  %1690 = vmatpush1.xpose.msra.mxu0 0.0
  %1691 = vmatprep.subr.mxu0 0.0
  %1692 = vmatpush1.xpose.msra.mxu0 0.0
  %1693 = vmatprep.subr.mxu0 0.0
  %1694 = vmatpush1.xpose.msra.mxu0 0.0
  %1695 = vmatprep.subr.mxu0 0.0
  %1696 = vmatpush1.xpose.msra.mxu0 0.0
  %1697 = vmatprep.mubr.f32.mxu0 0.0
  %1698 = vmatmul.mubr.f32.gmra.mrb[0].mxu0 %v1627
  %v1699 = vpop.f32.mrb[0].mxu0
  %v1700 = vadd.f32 0.0, %v1699
  %v1701 = vpop.f32.mrb[0].mxu0
  %1702 = vdwg.mxu0
  %1703 = vrot.lane.b32.xlu0 %v240, 104
  %v1704 = vpop.permute.xlu0 %1703
  %1705 = vrot.lane.b32.xlu0 %v337, 104
  %v1706 = vpop.permute.xlu0 %1705
  %1707 = vrot.lane.b32.xlu0 %v342, 104
  %v1708 = vpop.permute.xlu0 %1707
  %v1709 = vsel %vm349, %v1704, 0
  %v1711 = vsel %vm349, %v1706, 0
  %v1713 = vsel %vm349, %v1708, 0
  %1715 = vmatprep.subr.mxu0 0.0
  %1716 = vmatpush1.xpose.msra.mxu0 %v1711
  %1717 = vmatprep.subr.mxu0 0.0
  %1718 = vmatpush1.xpose.msra.mxu0 %v1713
  %1719 = vmatprep.subr.mxu0 0.0
  %1720 = vmatpush1.xpose.msra.mxu0 0.0
  %1721 = vmatprep.subr.mxu0 0.0
  %1722 = vmatpush1.xpose.msra.mxu0 0.0
  %1723 = vmatprep.subr.mxu0 0.0
  %1724 = vmatpush1.xpose.msra.mxu0 0.0
  %1725 = vmatprep.subr.mxu0 0.0
  %1726 = vmatpush1.xpose.msra.mxu0 0.0
  %1727 = vmatprep.subr.mxu0 0.0
  %1728 = vmatpush1.xpose.msra.mxu0 0.0
  %1729 = vmatprep.subr.mxu0 0.0
  %1730 = vmatpush1.xpose.msra.mxu0 0.0
  %1731 = vmatprep.subr.mxu0 0.0
  %1732 = vmatpush1.xpose.msra.mxu0 0.0
  %1733 = vmatprep.subr.mxu0 0.0
  %1734 = vmatpush1.xpose.msra.mxu0 0.0
  %1735 = vmatprep.subr.mxu0 0.0
  %1736 = vmatpush1.xpose.msra.mxu0 0.0
  %1737 = vmatprep.subr.mxu0 0.0
  %1738 = vmatpush1.xpose.msra.mxu0 0.0
  %1739 = vmatprep.subr.mxu0 0.0
  %1740 = vmatpush1.xpose.msra.mxu0 0.0
  %1741 = vmatprep.subr.mxu0 0.0
  %1742 = vmatpush1.xpose.msra.mxu0 0.0
  %1743 = vmatprep.subr.mxu0 0.0
  %1744 = vmatpush1.xpose.msra.mxu0 0.0
  %1745 = vmatprep.subr.mxu0 0.0
  %1746 = vmatpush1.xpose.msra.mxu0 0.0
  %1747 = vmatprep.subr.mxu0 0.0
  %1748 = vmatpush1.xpose.msra.mxu0 0.0
  %1749 = vmatprep.subr.mxu0 0.0
  %1750 = vmatpush1.xpose.msra.mxu0 0.0
  %1751 = vmatprep.subr.mxu0 0.0
  %1752 = vmatpush1.xpose.msra.mxu0 0.0
  %1753 = vmatprep.subr.mxu0 0.0
  %1754 = vmatpush1.xpose.msra.mxu0 0.0
  %1755 = vmatprep.subr.mxu0 0.0
  %1756 = vmatpush1.xpose.msra.mxu0 0.0
  %1757 = vmatprep.subr.mxu0 0.0
  %1758 = vmatpush1.xpose.msra.mxu0 0.0
  %1759 = vmatprep.subr.mxu0 0.0
  %1760 = vmatpush1.xpose.msra.mxu0 0.0
  %1761 = vmatprep.subr.mxu0 0.0
  %1762 = vmatpush1.xpose.msra.mxu0 0.0
  %1763 = vmatprep.subr.mxu0 0.0
  %1764 = vmatpush1.xpose.msra.mxu0 0.0
  %1765 = vmatprep.subr.mxu0 0.0
  %1766 = vmatpush1.xpose.msra.mxu0 0.0
  %1767 = vmatprep.subr.mxu0 0.0
  %1768 = vmatpush1.xpose.msra.mxu0 0.0
  %1769 = vmatprep.subr.mxu0 0.0
  %1770 = vmatpush1.xpose.msra.mxu0 0.0
  %1771 = vmatprep.subr.mxu0 0.0
  %1772 = vmatpush1.xpose.msra.mxu0 0.0
  %1773 = vmatprep.subr.mxu0 0.0
  %1774 = vmatpush1.xpose.msra.mxu0 0.0
  %1775 = vmatprep.subr.mxu0 0.0
  %1776 = vmatpush1.xpose.msra.mxu0 0.0
  %1777 = vmatprep.subr.mxu0 0.0
  %1778 = vmatpush1.xpose.msra.mxu0 0.0
  %1779 = vmatprep.mubr.f32.mxu0 0.0
  %1780 = vmatmul.mubr.f32.gmra.mrb[0].mxu0 %v1709
  %v1781 = vpop.f32.mrb[0].mxu0
  %v1782 = vadd.f32 0.0, %v1781
  %v1783 = vpop.f32.mrb[0].mxu0
  %1784 = vdwg.mxu0
  %v1785 = vsel %vm64, %v1700, -inf
  %1786 = vmax.xlane.f32.xlu0 %v1785
  %v1787 = vpop.xlane.xlu0 %1786
  %v1788 = vsel %vm64, %v1782, -inf
  %1789 = vmax.xlane.f32.xlu0 %v1788
  %v1790 = vpop.xlane.xlu0 %1789
  %v1791 = vsub.f32 %v1700, %v1787
  %v1792 = vsub.f32 %v1782, %v1790
  %v1793 = vmul.f32 %v1791, 1.442695
  %v1794 = vpow.pop %v1793
  %v1795 = vmul.f32 %v1792, 1.442695
  %v1796 = vpow.pop %v1795
  %v1797 = vsel %vm64, %v1794, 0.0
  %1798 = vadd.xlane.f32.xlu0 %v1797
  %v1799 = vpop.xlane.xlu0 %1798
  %v1800 = vsel %vm64, %v1796, 0.0
  %1801 = vadd.xlane.f32.xlu0 %v1800
  %v1802 = vpop.xlane.xlu0 %1801
  %v1803 = vrcp.pop %v1799
  %v1804 = vrcp.pop %v1802
  %v1805 = vmul.f32 %v1794, %v1803
  %v1806 = vmul.f32 %v1796, %v1804
  %1807 = vrot.lane.b32.xlu0 %v327, 72
  %v1808 = vpop.permute.xlu0 %1807
  %1809 = vrot.lane.b32.xlu0 %v332, 72
  %v1810 = vpop.permute.xlu0 %1809
  %v1814 = vsel %vm64, %v1805, 0
  %1816 = vmatprep.subr.mxu0 0.0
  %1817 = vmatpush1.msra.mxu0 %v1808
  %1818 = vmatprep.subr.mxu0 0.0
  %1819 = vmatpush1.msra.mxu0 %v1810
  %1820 = vmatprep.subr.mxu0 0.0
  %1821 = vmatpush1.msra.mxu0 0.0
  %1822 = vmatprep.subr.mxu0 0.0
  %1823 = vmatpush1.msra.mxu0 0.0
  %1824 = vmatprep.subr.mxu0 0.0
  %1825 = vmatpush1.msra.mxu0 0.0
  %1826 = vmatprep.subr.mxu0 0.0
  %1827 = vmatpush1.msra.mxu0 0.0
  %1828 = vmatprep.subr.mxu0 0.0
  %1829 = vmatpush1.msra.mxu0 0.0
  %1830 = vmatprep.subr.mxu0 0.0
  %1831 = vmatpush1.msra.mxu0 0.0
  %1832 = vmatprep.subr.mxu0 0.0
  %1833 = vmatpush1.msra.mxu0 0.0
  %1834 = vmatprep.subr.mxu0 0.0
  %1835 = vmatpush1.msra.mxu0 0.0
  %1836 = vmatprep.subr.mxu0 0.0
  %1837 = vmatpush1.msra.mxu0 0.0
  %1838 = vmatprep.subr.mxu0 0.0
  %1839 = vmatpush1.msra.mxu0 0.0
  %1840 = vmatprep.subr.mxu0 0.0
  %1841 = vmatpush1.msra.mxu0 0.0
  %1842 = vmatprep.subr.mxu0 0.0
  %1843 = vmatpush1.msra.mxu0 0.0
  %1844 = vmatprep.subr.mxu0 0.0
  %1845 = vmatpush1.msra.mxu0 0.0
  %1846 = vmatprep.subr.mxu0 0.0
  %1847 = vmatpush1.msra.mxu0 0.0
  %1848 = vmatprep.subr.mxu0 0.0
  %1849 = vmatpush1.msra.mxu0 0.0
  %1850 = vmatprep.subr.mxu0 0.0
  %1851 = vmatpush1.msra.mxu0 0.0
  %1852 = vmatprep.subr.mxu0 0.0
  %1853 = vmatpush1.msra.mxu0 0.0
  %1854 = vmatprep.subr.mxu0 0.0
  %1855 = vmatpush1.msra.mxu0 0.0
  %1856 = vmatprep.subr.mxu0 0.0
  %1857 = vmatpush1.msra.mxu0 0.0
  %1858 = vmatprep.subr.mxu0 0.0
  %1859 = vmatpush1.msra.mxu0 0.0
  %1860 = vmatprep.subr.mxu0 0.0
  %1861 = vmatpush1.msra.mxu0 0.0
  %1862 = vmatprep.subr.mxu0 0.0
  %1863 = vmatpush1.msra.mxu0 0.0
  %1864 = vmatprep.subr.mxu0 0.0
  %1865 = vmatpush1.msra.mxu0 0.0
  %1866 = vmatprep.subr.mxu0 0.0
  %1867 = vmatpush1.msra.mxu0 0.0
  %1868 = vmatprep.subr.mxu0 0.0
  %1869 = vmatpush1.msra.mxu0 0.0
  %1870 = vmatprep.subr.mxu0 0.0
  %1871 = vmatpush1.msra.mxu0 0.0
  %1872 = vmatprep.subr.mxu0 0.0
  %1873 = vmatpush1.msra.mxu0 0.0
  %1874 = vmatprep.subr.mxu0 0.0
  %1875 = vmatpush1.msra.mxu0 0.0
  %1876 = vmatprep.subr.mxu0 0.0
  %1877 = vmatpush1.msra.mxu0 0.0
  %1878 = vmatprep.subr.mxu0 0.0
  %1879 = vmatpush1.msra.mxu0 0.0
  %1880 = vmatprep.mubr.f32.mxu0 0.0
  %1881 = vmatmul.mubr.f32.gmra.mrb[0].mxu0 %v1814
  %v1882 = vpop.f32.mrb[0].mxu0
  %v1883 = vadd.f32 0.0, %v1882
  %v1884 = vpop.f32.mrb[0].mxu0
  %1885 = vdwg.mxu0
  %1886 = vrot.lane.b32.xlu0 %v337, 72
  %v1887 = vpop.permute.xlu0 %1886
  %1888 = vrot.lane.b32.xlu0 %v342, 72
  %v1889 = vpop.permute.xlu0 %1888
  %v1893 = vsel %vm64, %v1806, 0
  %1895 = vmatprep.subr.mxu0 0.0
  %1896 = vmatpush1.msra.mxu0 %v1887
  %1897 = vmatprep.subr.mxu0 0.0
  %1898 = vmatpush1.msra.mxu0 %v1889
  %1899 = vmatprep.subr.mxu0 0.0
  %1900 = vmatpush1.msra.mxu0 0.0
  %1901 = vmatprep.subr.mxu0 0.0
  %1902 = vmatpush1.msra.mxu0 0.0
  %1903 = vmatprep.subr.mxu0 0.0
  %1904 = vmatpush1.msra.mxu0 0.0
  %1905 = vmatprep.subr.mxu0 0.0
  %1906 = vmatpush1.msra.mxu0 0.0
  %1907 = vmatprep.subr.mxu0 0.0
  %1908 = vmatpush1.msra.mxu0 0.0
  %1909 = vmatprep.subr.mxu0 0.0
  %1910 = vmatpush1.msra.mxu0 0.0
  %1911 = vmatprep.subr.mxu0 0.0
  %1912 = vmatpush1.msra.mxu0 0.0
  %1913 = vmatprep.subr.mxu0 0.0
  %1914 = vmatpush1.msra.mxu0 0.0
  %1915 = vmatprep.subr.mxu0 0.0
  %1916 = vmatpush1.msra.mxu0 0.0
  %1917 = vmatprep.subr.mxu0 0.0
  %1918 = vmatpush1.msra.mxu0 0.0
  %1919 = vmatprep.subr.mxu0 0.0
  %1920 = vmatpush1.msra.mxu0 0.0
  %1921 = vmatprep.subr.mxu0 0.0
  %1922 = vmatpush1.msra.mxu0 0.0
  %1923 = vmatprep.subr.mxu0 0.0
  %1924 = vmatpush1.msra.mxu0 0.0
  %1925 = vmatprep.subr.mxu0 0.0
  %1926 = vmatpush1.msra.mxu0 0.0
  %1927 = vmatprep.subr.mxu0 0.0
  %1928 = vmatpush1.msra.mxu0 0.0
  %1929 = vmatprep.subr.mxu0 0.0
  %1930 = vmatpush1.msra.mxu0 0.0
  %1931 = vmatprep.subr.mxu0 0.0
  %1932 = vmatpush1.msra.mxu0 0.0
  %1933 = vmatprep.subr.mxu0 0.0
  %1934 = vmatpush1.msra.mxu0 0.0
  %1935 = vmatprep.subr.mxu0 0.0
  %1936 = vmatpush1.msra.mxu0 0.0
  %1937 = vmatprep.subr.mxu0 0.0
  %1938 = vmatpush1.msra.mxu0 0.0
  %1939 = vmatprep.subr.mxu0 0.0
  %1940 = vmatpush1.msra.mxu0 0.0
  %1941 = vmatprep.subr.mxu0 0.0
  %1942 = vmatpush1.msra.mxu0 0.0
  %1943 = vmatprep.subr.mxu0 0.0
  %1944 = vmatpush1.msra.mxu0 0.0
  %1945 = vmatprep.subr.mxu0 0.0
  %1946 = vmatpush1.msra.mxu0 0.0
  %1947 = vmatprep.subr.mxu0 0.0
  %1948 = vmatpush1.msra.mxu0 0.0
  %1949 = vmatprep.subr.mxu0 0.0
  %1950 = vmatpush1.msra.mxu0 0.0
  %1951 = vmatprep.subr.mxu0 0.0
  %1952 = vmatpush1.msra.mxu0 0.0
  %1953 = vmatprep.subr.mxu0 0.0
  %1954 = vmatpush1.msra.mxu0 0.0
  %1955 = vmatprep.subr.mxu0 0.0
  %1956 = vmatpush1.msra.mxu0 0.0
  %1957 = vmatprep.subr.mxu0 0.0
  %1958 = vmatpush1.msra.mxu0 0.0
  %1959 = vmatprep.mubr.f32.mxu0 0.0
  %1960 = vmatmul.mubr.f32.gmra.mrb[0].mxu0 %v1893
  %v1961 = vpop.f32.mrb[0].mxu0
  %v1962 = vadd.f32 0.0, %v1961
  %v1963 = vpop.f32.mrb[0].mxu0
  %1964 = vdwg.mxu0
  %v1966 = vsel %vm349, %v1883, 0
  %v1969 = vsel %vm349, %v1962, 0
  %1971 = vmatprep.subr.mxu0 0.0
  %1972 = vmatpush1.msra.mxu0 %v348
  %1973 = vmatprep.subr.mxu0 0.0
  %1974 = vmatpush1.msra.mxu0 0.0
  %1975 = vmatprep.subr.mxu0 0.0
  %1976 = vmatpush1.msra.mxu0 0.0
  %1977 = vmatprep.subr.mxu0 0.0
  %1978 = vmatpush1.msra.mxu0 0.0
  %1979 = vmatprep.subr.mxu0 0.0
  %1980 = vmatpush1.msra.mxu0 0.0
  %1981 = vmatprep.subr.mxu0 0.0
  %1982 = vmatpush1.msra.mxu0 0.0
  %1983 = vmatprep.subr.mxu0 0.0
  %1984 = vmatpush1.msra.mxu0 0.0
  %1985 = vmatprep.subr.mxu0 0.0
  %1986 = vmatpush1.msra.mxu0 0.0
  %1987 = vmatprep.subr.mxu0 0.0
  %1988 = vmatpush1.msra.mxu0 0.0
  %1989 = vmatprep.subr.mxu0 0.0
  %1990 = vmatpush1.msra.mxu0 0.0
  %1991 = vmatprep.subr.mxu0 0.0
  %1992 = vmatpush1.msra.mxu0 0.0
  %1993 = vmatprep.subr.mxu0 0.0
  %1994 = vmatpush1.msra.mxu0 0.0
  %1995 = vmatprep.subr.mxu0 0.0
  %1996 = vmatpush1.msra.mxu0 0.0
  %1997 = vmatprep.subr.mxu0 0.0
  %1998 = vmatpush1.msra.mxu0 0.0
  %1999 = vmatprep.subr.mxu0 0.0
  %2000 = vmatpush1.msra.mxu0 0.0
  %2001 = vmatprep.subr.mxu0 0.0
  %2002 = vmatpush1.msra.mxu0 0.0
  %2003 = vmatprep.subr.mxu0 0.0
  %2004 = vmatpush1.msra.mxu0 0.0
  %2005 = vmatprep.subr.mxu0 0.0
  %2006 = vmatpush1.msra.mxu0 0.0
  %2007 = vmatprep.subr.mxu0 0.0
  %2008 = vmatpush1.msra.mxu0 0.0
  %2009 = vmatprep.subr.mxu0 0.0
  %2010 = vmatpush1.msra.mxu0 0.0
  %2011 = vmatprep.subr.mxu0 0.0
  %2012 = vmatpush1.msra.mxu0 0.0
  %2013 = vmatprep.subr.mxu0 0.0
  %2014 = vmatpush1.msra.mxu0 0.0
  %2015 = vmatprep.subr.mxu0 0.0
  %2016 = vmatpush1.msra.mxu0 0.0
  %2017 = vmatprep.subr.mxu0 0.0
  %2018 = vmatpush1.msra.mxu0 0.0
  %2019 = vmatprep.subr.mxu0 0.0
  %2020 = vmatpush1.msra.mxu0 0.0
  %2021 = vmatprep.subr.mxu0 0.0
  %2022 = vmatpush1.msra.mxu0 0.0
  %2023 = vmatprep.subr.mxu0 0.0
  %2024 = vmatpush1.msra.mxu0 0.0
  %2025 = vmatprep.subr.mxu0 0.0
  %2026 = vmatpush1.msra.mxu0 0.0
  %2027 = vmatprep.subr.mxu0 0.0
  %2028 = vmatpush1.msra.mxu0 0.0
  %2029 = vmatprep.subr.mxu0 0.0
  %2030 = vmatpush1.msra.mxu0 0.0
  %2031 = vmatprep.subr.mxu0 0.0
  %2032 = vmatpush1.msra.mxu0 0.0
  %2033 = vmatprep.subr.mxu0 0.0
  %2034 = vmatpush1.msra.mxu0 0.0
  %2035 = vmatprep.mubr.f32.mxu0 0.0
  %2036 = vmatmul.mubr.f32.gmra.mrb[0].mxu0 %v1966
  %v2037 = vpop.f32.mrb[0].mxu0
  %v2038 = vadd.f32 0.0, %v2037
  %v2039 = vpop.f32.mrb[0].mxu0
  %2040 = vmatprep.mubr.f32.mxu0 0.0
  %2041 = vmatmul.mubr.f32.gmra.mrb[0].mxu0 %v1969
  %v2042 = vpop.f32.mrb[0].mxu0
  %v2043 = vadd.f32 0.0, %v2042
  %v2044 = vpop.f32.mrb[0].mxu0
  %2045 = vdwg.mxu0
  %v2046 = vadd.f32 %v1619, %v2038
  %v2047 = vadd.f32 %v1620, %v2043
  %v2048 = vld [vmem:[%s9] sm:$0x1]
  %v2050 = vlaneseq
  %v2051 = vshrl.u32 %v2050, 7
  %v2052 = vsub.s32 0, %v2051
  %v2053 = vrot.slane %v2048, %v2052
  %v2055 = vadd.f32 %v2046, %v2053
  %v2056 = vadd.f32 %v2047, %v2053
  %v2057 = vadd.f32 %v138, %v2055
  %v2058 = vadd.f32 %v143, %v2056
  %v2059 = vld [vmem:[%s10] sm:$0x3]
  %v2060 = vsel %vm157, %v2057, 0.0
  %2061 = vadd.xlane.f32.xlu0 %v2060
  %v2062 = vpop.xlane.xlu0 %2061
  %v2063 = vsel %vm157, %v2058, 0.0
  %2064 = vadd.xlane.f32.xlu0 %v2063
  %v2065 = vpop.xlane.xlu0 %2064
  %v2066 = vrcp.pop 32.0
  %v2067 = vmul.f32 %v2062, %v2066
  %v2068 = vmul.f32 %v2065, %v2066
  %v2069 = vsub.f32 %v2057, %v2067
  %v2070 = vsub.f32 %v2058, %v2068
  %v2071 = vmul.f32 %v2069, %v2069
  %v2072 = vmul.f32 %v2070, %v2070
  %v2073 = vsel %vm157, %v2071, 0.0
  %2074 = vadd.xlane.f32.xlu0 %v2073
  %v2075 = vpop.xlane.xlu0 %2074
  %v2076 = vsel %vm157, %v2072, 0.0
  %2077 = vadd.xlane.f32.xlu0 %v2076
  %v2078 = vpop.xlane.xlu0 %2077
  %v2079 = vmul.f32 %v2075, %v2066
  %v2080 = vmul.f32 %v2078, %v2066
  %v2081 = vadd.f32 %v2079, 1e-05
  %v2082 = vadd.f32 %v2080, 1e-05
  %v2083 = vrsqrt.pop %v2081
  %v2084 = vrsqrt.pop %v2082
  %v2085 = vmul.f32 %v2069, %v2083
  %v2086 = vmul.f32 %v2070, %v2084
  %v2087 = vlaneseq
  %v2088 = vshrl.u32 %v2087, 7
  %v2089 = vsub.s32 0, %v2088
  %v2090 = vrot.slane %v2059, %v2089
  %v2091 = vmul.f32 %v2085, %v2090
  %v2092 = vmul.f32 %v2086, %v2090
  %v2093 = vlaneseq
  %v2094 = vshrl.u32 %v2093, 7
  %v2095 = vsub.s32 1, %v2094
  %v2096 = vrot.slane %v2059, %v2095
  %v2097 = vadd.f32 %v2091, %v2096
  %v2098 = vadd.f32 %v2092, %v2096
  %v2099 = vld [vmem:[%s12] sm:$0xff]
  %v2100 = vld [vmem:[%s12 + $0x8] sm:$0xff]
  %v2101 = vld [vmem:[%s12 + $0x10] sm:$0xff]
  %v2102 = vld [vmem:[%s12 + $0x18] sm:$0xff]
  %v2103 = vld [vmem:[%s12 + $0x20] sm:$0xff]
  %v2104 = vld [vmem:[%s12 + $0x28] sm:$0xff]
  %v2105 = vld [vmem:[%s12 + $0x30] sm:$0xff]
  %v2106 = vld [vmem:[%s12 + $0x38] sm:$0xff]
  %v2107 = vld [vmem:[%s12 + $0x40] sm:$0xff]
  %v2108 = vld [vmem:[%s12 + $0x48] sm:$0xff]
  %v2109 = vld [vmem:[%s12 + $0x50] sm:$0xff]
  %v2110 = vld [vmem:[%s12 + $0x58] sm:$0xff]
  %v2111 = vld [vmem:[%s12 + $0x60] sm:$0xff]
  %v2112 = vld [vmem:[%s12 + $0x68] sm:$0xff]
  %v2113 = vld [vmem:[%s12 + $0x70] sm:$0xff]
  %v2114 = vld [vmem:[%s12 + $0x78] sm:$0xff]
  %v2115 = vld [vmem:[%s12 + $0x80] sm:$0xff]
  %v2116 = vld [vmem:[%s12 + $0x88] sm:$0xff]
  %v2117 = vld [vmem:[%s12 + $0x90] sm:$0xff]
  %v2118 = vld [vmem:[%s12 + $0x98] sm:$0xff]
  %v2119 = vld [vmem:[%s12 + $0xa0] sm:$0xff]
  %v2120 = vld [vmem:[%s12 + $0xa8] sm:$0xff]
  %v2121 = vld [vmem:[%s12 + $0xb0] sm:$0xff]
  %v2122 = vld [vmem:[%s12 + $0xb8] sm:$0xff]
  %v2123 = vld [vmem:[%s12 + $0xc0] sm:$0xff]
  %v2124 = vld [vmem:[%s12 + $0xc8] sm:$0xff]
  %v2125 = vld [vmem:[%s12 + $0xd0] sm:$0xff]
  %v2126 = vld [vmem:[%s12 + $0xd8] sm:$0xff]
  %v2127 = vld [vmem:[%s12 + $0xe0] sm:$0xff]
  %v2128 = vld [vmem:[%s12 + $0xe8] sm:$0xff]
  %v2129 = vld [vmem:[%s12 + $0xf0] sm:$0xff]
  %v2130 = vld [vmem:[%s12 + $0xf8] sm:$0xff]
  %v2131 = vld [vmem:[%s13] sm:$0xff]
  %v2133 = vlaneseq
  %v2134 = vshrl.u32 %v2133, 7
  %v2135 = vsub.s32 0, %v2134
  %v2136 = vrot.slane %v2131, %v2135
  %v2137 = vlaneseq
  %v2138 = vshrl.u32 %v2137, 7
  %v2139 = vsub.s32 1, %v2138
  %v2140 = vrot.slane %v2131, %v2139
  %v2141 = vlaneseq
  %v2142 = vshrl.u32 %v2141, 7
  %v2143 = vsub.s32 2, %v2142
  %v2144 = vrot.slane %v2131, %v2143
  %v2145 = vlaneseq
  %v2146 = vshrl.u32 %v2145, 7
  %v2147 = vsub.s32 3, %v2146
  %v2148 = vrot.slane %v2131, %v2147
  %v2149 = vlaneseq
  %v2150 = vshrl.u32 %v2149, 7
  %v2151 = vsub.s32 4, %v2150
  %v2152 = vrot.slane %v2131, %v2151
  %v2153 = vlaneseq
  %v2154 = vshrl.u32 %v2153, 7
  %v2155 = vsub.s32 5, %v2154
  %v2156 = vrot.slane %v2131, %v2155
  %v2157 = vlaneseq
  %v2158 = vshrl.u32 %v2157, 7
  %v2159 = vsub.s32 6, %v2158
  %v2160 = vrot.slane %v2131, %v2159
  %v2161 = vlaneseq
  %v2162 = vshrl.u32 %v2161, 7
  %v2163 = vsub.s32 7, %v2162
  %v2164 = vrot.slane %v2131, %v2163
  %v2174 = vsel %vm157, %v2097, 0
  %v2177 = vsel %vm157, %v2098, 0
  %2179 = vmatprep.subr.mxu0 %v2100
  %2180 = vmatpush1.msra.mxu0 %v2099
  %2181 = vmatprep.subr.mxu0 %v2108
  %2182 = vmatpush1.msra.mxu0 %v2107
  %2183 = vmatprep.subr.mxu0 %v2116
  %2184 = vmatpush1.msra.mxu0 %v2115
  %2185 = vmatprep.subr.mxu0 %v2124
  %2186 = vmatpush1.msra.mxu0 %v2123
  %2187 = vmatprep.subr.mxu0 0.0
  %2188 = vmatpush1.msra.mxu0 0.0
  %2189 = vmatprep.subr.mxu0 0.0
  %2190 = vmatpush1.msra.mxu0 0.0
  %2191 = vmatprep.subr.mxu0 0.0
  %2192 = vmatpush1.msra.mxu0 0.0
  %2193 = vmatprep.subr.mxu0 0.0
  %2194 = vmatpush1.msra.mxu0 0.0
  %2195 = vmatprep.subr.mxu0 0.0
  %2196 = vmatpush1.msra.mxu0 0.0
  %2197 = vmatprep.subr.mxu0 0.0
  %2198 = vmatpush1.msra.mxu0 0.0
  %2199 = vmatprep.subr.mxu0 0.0
  %2200 = vmatpush1.msra.mxu0 0.0
  %2201 = vmatprep.subr.mxu0 0.0
  %2202 = vmatpush1.msra.mxu0 0.0
  %2203 = vmatprep.subr.mxu0 0.0
  %2204 = vmatpush1.msra.mxu0 0.0
  %2205 = vmatprep.subr.mxu0 0.0
  %2206 = vmatpush1.msra.mxu0 0.0
  %2207 = vmatprep.subr.mxu0 0.0
  %2208 = vmatpush1.msra.mxu0 0.0
  %2209 = vmatprep.subr.mxu0 0.0
  %2210 = vmatpush1.msra.mxu0 0.0
  %2211 = vmatprep.subr.mxu0 0.0
  %2212 = vmatpush1.msra.mxu0 0.0
  %2213 = vmatprep.subr.mxu0 0.0
  %2214 = vmatpush1.msra.mxu0 0.0
  %2215 = vmatprep.subr.mxu0 0.0
  %2216 = vmatpush1.msra.mxu0 0.0
  %2217 = vmatprep.subr.mxu0 0.0
  %2218 = vmatpush1.msra.mxu0 0.0
  %2219 = vmatprep.subr.mxu0 0.0
  %2220 = vmatpush1.msra.mxu0 0.0
  %2221 = vmatprep.subr.mxu0 0.0
  %2222 = vmatpush1.msra.mxu0 0.0
  %2223 = vmatprep.subr.mxu0 0.0
  %2224 = vmatpush1.msra.mxu0 0.0
  %2225 = vmatprep.subr.mxu0 0.0
  %2226 = vmatpush1.msra.mxu0 0.0
  %2227 = vmatprep.subr.mxu0 0.0
  %2228 = vmatpush1.msra.mxu0 0.0
  %2229 = vmatprep.subr.mxu0 0.0
  %2230 = vmatpush1.msra.mxu0 0.0
  %2231 = vmatprep.subr.mxu0 0.0
  %2232 = vmatpush1.msra.mxu0 0.0
  %2233 = vmatprep.subr.mxu0 0.0
  %2234 = vmatpush1.msra.mxu0 0.0
  %2235 = vmatprep.subr.mxu0 0.0
  %2236 = vmatpush1.msra.mxu0 0.0
  %2237 = vmatprep.subr.mxu0 0.0
  %2238 = vmatpush1.msra.mxu0 0.0
  %2239 = vmatprep.subr.mxu0 0.0
  %2240 = vmatpush1.msra.mxu0 0.0
  %2241 = vmatprep.subr.mxu0 0.0
  %2242 = vmatpush1.msra.mxu0 0.0
  %2243 = vmatprep.mubr.f32.mxu0 0.0
  %2244 = vmatmul.mubr.f32.gmra.mrb[0].mxu0 %v2174
  %v2245 = vpop.f32.mrb[0].mxu0
  %v2246 = vadd.f32 %v2136, %v2245
  %v2247 = vpop.f32.mrb[0].mxu0
  %v2248 = vadd.f32 %v2140, %v2247
  %2249 = vmatprep.mubr.f32.mxu0 0.0
  %2250 = vmatmul.mubr.f32.gmra.mrb[0].mxu0 %v2177
  %v2251 = vpop.f32.mrb[0].mxu0
  %v2252 = vadd.f32 %v2136, %v2251
  %v2253 = vpop.f32.mrb[0].mxu0
  %v2254 = vadd.f32 %v2140, %v2253
  %2255 = vdwg.mxu0
  %2256 = vmatprep.subr.mxu0 %v2102
  %2257 = vmatpush1.msra.mxu0 %v2101
  %2258 = vmatprep.subr.mxu0 %v2110
  %2259 = vmatpush1.msra.mxu0 %v2109
  %2260 = vmatprep.subr.mxu0 %v2118
  %2261 = vmatpush1.msra.mxu0 %v2117
  %2262 = vmatprep.subr.mxu0 %v2126
  %2263 = vmatpush1.msra.mxu0 %v2125
  %2264 = vmatprep.subr.mxu0 0.0
  %2265 = vmatpush1.msra.mxu0 0.0
  %2266 = vmatprep.subr.mxu0 0.0
  %2267 = vmatpush1.msra.mxu0 0.0
  %2268 = vmatprep.subr.mxu0 0.0
  %2269 = vmatpush1.msra.mxu0 0.0
  %2270 = vmatprep.subr.mxu0 0.0
  %2271 = vmatpush1.msra.mxu0 0.0
  %2272 = vmatprep.subr.mxu0 0.0
  %2273 = vmatpush1.msra.mxu0 0.0
  %2274 = vmatprep.subr.mxu0 0.0
  %2275 = vmatpush1.msra.mxu0 0.0
  %2276 = vmatprep.subr.mxu0 0.0
  %2277 = vmatpush1.msra.mxu0 0.0
  %2278 = vmatprep.subr.mxu0 0.0
  %2279 = vmatpush1.msra.mxu0 0.0
  %2280 = vmatprep.subr.mxu0 0.0
  %2281 = vmatpush1.msra.mxu0 0.0
  %2282 = vmatprep.subr.mxu0 0.0
  %2283 = vmatpush1.msra.mxu0 0.0
  %2284 = vmatprep.subr.mxu0 0.0
  %2285 = vmatpush1.msra.mxu0 0.0
  %2286 = vmatprep.subr.mxu0 0.0
  %2287 = vmatpush1.msra.mxu0 0.0
  %2288 = vmatprep.subr.mxu0 0.0
  %2289 = vmatpush1.msra.mxu0 0.0
  %2290 = vmatprep.subr.mxu0 0.0
  %2291 = vmatpush1.msra.mxu0 0.0
  %2292 = vmatprep.subr.mxu0 0.0
  %2293 = vmatpush1.msra.mxu0 0.0
  %2294 = vmatprep.subr.mxu0 0.0
  %2295 = vmatpush1.msra.mxu0 0.0
  %2296 = vmatprep.subr.mxu0 0.0
  %2297 = vmatpush1.msra.mxu0 0.0
  %2298 = vmatprep.subr.mxu0 0.0
  %2299 = vmatpush1.msra.mxu0 0.0
  %2300 = vmatprep.subr.mxu0 0.0
  %2301 = vmatpush1.msra.mxu0 0.0
  %2302 = vmatprep.subr.mxu0 0.0
  %2303 = vmatpush1.msra.mxu0 0.0
  %2304 = vmatprep.subr.mxu0 0.0
  %2305 = vmatpush1.msra.mxu0 0.0
  %2306 = vmatprep.subr.mxu0 0.0
  %2307 = vmatpush1.msra.mxu0 0.0
  %2308 = vmatprep.subr.mxu0 0.0
  %2309 = vmatpush1.msra.mxu0 0.0
  %2310 = vmatprep.subr.mxu0 0.0
  %2311 = vmatpush1.msra.mxu0 0.0
  %2312 = vmatprep.subr.mxu0 0.0
  %2313 = vmatpush1.msra.mxu0 0.0
  %2314 = vmatprep.subr.mxu0 0.0
  %2315 = vmatpush1.msra.mxu0 0.0
  %2316 = vmatprep.subr.mxu0 0.0
  %2317 = vmatpush1.msra.mxu0 0.0
  %2318 = vmatprep.subr.mxu0 0.0
  %2319 = vmatpush1.msra.mxu0 0.0
  %2320 = vmatprep.mubr.f32.mxu0 0.0
  %2321 = vmatmul.mubr.f32.gmra.mrb[0].mxu0 %v2174
  %v2322 = vpop.f32.mrb[0].mxu0
  %v2323 = vadd.f32 %v2144, %v2322
  %v2324 = vpop.f32.mrb[0].mxu0
  %v2325 = vadd.f32 %v2148, %v2324
  %2326 = vmatprep.mubr.f32.mxu0 0.0
  %2327 = vmatmul.mubr.f32.gmra.mrb[0].mxu0 %v2177
  %v2328 = vpop.f32.mrb[0].mxu0
  %v2329 = vadd.f32 %v2144, %v2328
  %v2330 = vpop.f32.mrb[0].mxu0
  %v2331 = vadd.f32 %v2148, %v2330
  %2332 = vdwg.mxu0
  %2333 = vmatprep.subr.mxu0 %v2104
  %2334 = vmatpush1.msra.mxu0 %v2103
  %2335 = vmatprep.subr.mxu0 %v2112
  %2336 = vmatpush1.msra.mxu0 %v2111
  %2337 = vmatprep.subr.mxu0 %v2120
  %2338 = vmatpush1.msra.mxu0 %v2119
  %2339 = vmatprep.subr.mxu0 %v2128
  %2340 = vmatpush1.msra.mxu0 %v2127
  %2341 = vmatprep.subr.mxu0 0.0
  %2342 = vmatpush1.msra.mxu0 0.0
  %2343 = vmatprep.subr.mxu0 0.0
  %2344 = vmatpush1.msra.mxu0 0.0
  %2345 = vmatprep.subr.mxu0 0.0
  %2346 = vmatpush1.msra.mxu0 0.0
  %2347 = vmatprep.subr.mxu0 0.0
  %2348 = vmatpush1.msra.mxu0 0.0
  %2349 = vmatprep.subr.mxu0 0.0
  %2350 = vmatpush1.msra.mxu0 0.0
  %2351 = vmatprep.subr.mxu0 0.0
  %2352 = vmatpush1.msra.mxu0 0.0
  %2353 = vmatprep.subr.mxu0 0.0
  %2354 = vmatpush1.msra.mxu0 0.0
  %2355 = vmatprep.subr.mxu0 0.0
  %2356 = vmatpush1.msra.mxu0 0.0
  %2357 = vmatprep.subr.mxu0 0.0
  %2358 = vmatpush1.msra.mxu0 0.0
  %2359 = vmatprep.subr.mxu0 0.0
  %2360 = vmatpush1.msra.mxu0 0.0
  %2361 = vmatprep.subr.mxu0 0.0
  %2362 = vmatpush1.msra.mxu0 0.0
  %2363 = vmatprep.subr.mxu0 0.0
  %2364 = vmatpush1.msra.mxu0 0.0
  %2365 = vmatprep.subr.mxu0 0.0
  %2366 = vmatpush1.msra.mxu0 0.0
  %2367 = vmatprep.subr.mxu0 0.0
  %2368 = vmatpush1.msra.mxu0 0.0
  %2369 = vmatprep.subr.mxu0 0.0
  %2370 = vmatpush1.msra.mxu0 0.0
  %2371 = vmatprep.subr.mxu0 0.0
  %2372 = vmatpush1.msra.mxu0 0.0
  %2373 = vmatprep.subr.mxu0 0.0
  %2374 = vmatpush1.msra.mxu0 0.0
  %2375 = vmatprep.subr.mxu0 0.0
  %2376 = vmatpush1.msra.mxu0 0.0
  %2377 = vmatprep.subr.mxu0 0.0
  %2378 = vmatpush1.msra.mxu0 0.0
  %2379 = vmatprep.subr.mxu0 0.0
  %2380 = vmatpush1.msra.mxu0 0.0
  %2381 = vmatprep.subr.mxu0 0.0
  %2382 = vmatpush1.msra.mxu0 0.0
  %2383 = vmatprep.subr.mxu0 0.0
  %2384 = vmatpush1.msra.mxu0 0.0
  %2385 = vmatprep.subr.mxu0 0.0
  %2386 = vmatpush1.msra.mxu0 0.0
  %2387 = vmatprep.subr.mxu0 0.0
  %2388 = vmatpush1.msra.mxu0 0.0
  %2389 = vmatprep.subr.mxu0 0.0
  %2390 = vmatpush1.msra.mxu0 0.0
  %2391 = vmatprep.subr.mxu0 0.0
  %2392 = vmatpush1.msra.mxu0 0.0
  %2393 = vmatprep.subr.mxu0 0.0
  %2394 = vmatpush1.msra.mxu0 0.0
  %2395 = vmatprep.subr.mxu0 0.0
  %2396 = vmatpush1.msra.mxu0 0.0
  %2397 = vmatprep.mubr.f32.mxu0 0.0
  %2398 = vmatmul.mubr.f32.gmra.mrb[0].mxu0 %v2174
  %v2399 = vpop.f32.mrb[0].mxu0
  %v2400 = vadd.f32 %v2152, %v2399
  %v2401 = vpop.f32.mrb[0].mxu0
  %v2402 = vadd.f32 %v2156, %v2401
  %2403 = vmatprep.mubr.f32.mxu0 0.0
  %2404 = vmatmul.mubr.f32.gmra.mrb[0].mxu0 %v2177
  %v2405 = vpop.f32.mrb[0].mxu0
  %v2406 = vadd.f32 %v2152, %v2405
  %v2407 = vpop.f32.mrb[0].mxu0
  %v2408 = vadd.f32 %v2156, %v2407
  %2409 = vdwg.mxu0
  %2410 = vmatprep.subr.mxu0 %v2106
  %2411 = vmatpush1.msra.mxu0 %v2105
  %2412 = vmatprep.subr.mxu0 %v2114
  %2413 = vmatpush1.msra.mxu0 %v2113
  %2414 = vmatprep.subr.mxu0 %v2122
  %2415 = vmatpush1.msra.mxu0 %v2121
  %2416 = vmatprep.subr.mxu0 %v2130
  %2417 = vmatpush1.msra.mxu0 %v2129
  %2418 = vmatprep.subr.mxu0 0.0
  %2419 = vmatpush1.msra.mxu0 0.0
  %2420 = vmatprep.subr.mxu0 0.0
  %2421 = vmatpush1.msra.mxu0 0.0
  %2422 = vmatprep.subr.mxu0 0.0
  %2423 = vmatpush1.msra.mxu0 0.0
  %2424 = vmatprep.subr.mxu0 0.0
  %2425 = vmatpush1.msra.mxu0 0.0
  %2426 = vmatprep.subr.mxu0 0.0
  %2427 = vmatpush1.msra.mxu0 0.0
  %2428 = vmatprep.subr.mxu0 0.0
  %2429 = vmatpush1.msra.mxu0 0.0
  %2430 = vmatprep.subr.mxu0 0.0
  %2431 = vmatpush1.msra.mxu0 0.0
  %2432 = vmatprep.subr.mxu0 0.0
  %2433 = vmatpush1.msra.mxu0 0.0
  %2434 = vmatprep.subr.mxu0 0.0
  %2435 = vmatpush1.msra.mxu0 0.0
  %2436 = vmatprep.subr.mxu0 0.0
  %2437 = vmatpush1.msra.mxu0 0.0
  %2438 = vmatprep.subr.mxu0 0.0
  %2439 = vmatpush1.msra.mxu0 0.0
  %2440 = vmatprep.subr.mxu0 0.0
  %2441 = vmatpush1.msra.mxu0 0.0
  %2442 = vmatprep.subr.mxu0 0.0
  %2443 = vmatpush1.msra.mxu0 0.0
  %2444 = vmatprep.subr.mxu0 0.0
  %2445 = vmatpush1.msra.mxu0 0.0
  %2446 = vmatprep.subr.mxu0 0.0
  %2447 = vmatpush1.msra.mxu0 0.0
  %2448 = vmatprep.subr.mxu0 0.0
  %2449 = vmatpush1.msra.mxu0 0.0
  %2450 = vmatprep.subr.mxu0 0.0
  %2451 = vmatpush1.msra.mxu0 0.0
  %2452 = vmatprep.subr.mxu0 0.0
  %2453 = vmatpush1.msra.mxu0 0.0
  %2454 = vmatprep.subr.mxu0 0.0
  %2455 = vmatpush1.msra.mxu0 0.0
  %2456 = vmatprep.subr.mxu0 0.0
  %2457 = vmatpush1.msra.mxu0 0.0
  %2458 = vmatprep.subr.mxu0 0.0
  %2459 = vmatpush1.msra.mxu0 0.0
  %2460 = vmatprep.subr.mxu0 0.0
  %2461 = vmatpush1.msra.mxu0 0.0
  %2462 = vmatprep.subr.mxu0 0.0
  %2463 = vmatpush1.msra.mxu0 0.0
  %2464 = vmatprep.subr.mxu0 0.0
  %2465 = vmatpush1.msra.mxu0 0.0
  %2466 = vmatprep.subr.mxu0 0.0
  %2467 = vmatpush1.msra.mxu0 0.0
  %2468 = vmatprep.subr.mxu0 0.0
  %2469 = vmatpush1.msra.mxu0 0.0
  %2470 = vmatprep.subr.mxu0 0.0
  %2471 = vmatpush1.msra.mxu0 0.0
  %2472 = vmatprep.subr.mxu0 0.0
  %2473 = vmatpush1.msra.mxu0 0.0
  %2474 = vmatprep.mubr.f32.mxu0 0.0
  %2475 = vmatmul.mubr.f32.gmra.mrb[0].mxu0 %v2174
  %v2476 = vpop.f32.mrb[0].mxu0
  %v2477 = vadd.f32 %v2160, %v2476
  %v2478 = vpop.f32.mrb[0].mxu0
  %v2479 = vadd.f32 %v2164, %v2478
  %2480 = vmatprep.mubr.f32.mxu0 0.0
  %2481 = vmatmul.mubr.f32.gmra.mrb[0].mxu0 %v2177
  %v2482 = vpop.f32.mrb[0].mxu0
  %v2483 = vadd.f32 %v2160, %v2482
  %v2484 = vpop.f32.mrb[0].mxu0
  %v2485 = vadd.f32 %v2164, %v2484
  %2486 = vdwg.mxu0
  %v2487 = vmax.f32 %v2246, 0.0
  %v2488 = vmax.f32 %v2248, 0.0
  %v2489 = vmax.f32 %v2323, 0.0
  %v2490 = vmax.f32 %v2325, 0.0
  %v2491 = vmax.f32 %v2400, 0.0
  %v2492 = vmax.f32 %v2402, 0.0
  %v2493 = vmax.f32 %v2477, 0.0
  %v2494 = vmax.f32 %v2479, 0.0
  %v2495 = vmax.f32 %v2252, 0.0
  %v2496 = vmax.f32 %v2254, 0.0
  %v2497 = vmax.f32 %v2329, 0.0
  %v2498 = vmax.f32 %v2331, 0.0
  %v2499 = vmax.f32 %v2406, 0.0
  %v2500 = vmax.f32 %v2408, 0.0
  %v2501 = vmax.f32 %v2483, 0.0
  %v2502 = vmax.f32 %v2485, 0.0
  %v2503 = vld [vmem:[%s14] sm:$0xff]
  %v2504 = vld [vmem:[%s14 + $0x8] sm:$0xff]
  %v2505 = vld [vmem:[%s14 + $0x10] sm:$0xff]
  %v2506 = vld [vmem:[%s14 + $0x18] sm:$0xff]
  %v2507 = vld [vmem:[%s14 + $0x20] sm:$0xff]
  %v2508 = vld [vmem:[%s14 + $0x28] sm:$0xff]
  %v2509 = vld [vmem:[%s14 + $0x30] sm:$0xff]
  %v2510 = vld [vmem:[%s14 + $0x38] sm:$0xff]
  %v2511 = vld [vmem:[%s14 + $0x40] sm:$0xff]
  %v2512 = vld [vmem:[%s14 + $0x48] sm:$0xff]
  %v2513 = vld [vmem:[%s14 + $0x50] sm:$0xff]
  %v2514 = vld [vmem:[%s14 + $0x58] sm:$0xff]
  %v2515 = vld [vmem:[%s14 + $0x60] sm:$0xff]
  %v2516 = vld [vmem:[%s14 + $0x68] sm:$0xff]
  %v2517 = vld [vmem:[%s14 + $0x70] sm:$0xff]
  %v2518 = vld [vmem:[%s14 + $0x78] sm:$0xff]
  %v2519 = vld [vmem:[%s14 + $0x80] sm:$0xff]
  %v2520 = vld [vmem:[%s14 + $0x88] sm:$0xff]
  %v2521 = vld [vmem:[%s14 + $0x90] sm:$0xff]
  %v2522 = vld [vmem:[%s14 + $0x98] sm:$0xff]
  %v2523 = vld [vmem:[%s14 + $0xa0] sm:$0xff]
  %v2524 = vld [vmem:[%s14 + $0xa8] sm:$0xff]
  %v2525 = vld [vmem:[%s14 + $0xb0] sm:$0xff]
  %v2526 = vld [vmem:[%s14 + $0xb8] sm:$0xff]
  %v2527 = vld [vmem:[%s14 + $0xc0] sm:$0xff]
  %v2528 = vld [vmem:[%s14 + $0xc8] sm:$0xff]
  %v2529 = vld [vmem:[%s14 + $0xd0] sm:$0xff]
  %v2530 = vld [vmem:[%s14 + $0xd8] sm:$0xff]
  %v2531 = vld [vmem:[%s14 + $0xe0] sm:$0xff]
  %v2532 = vld [vmem:[%s14 + $0xe8] sm:$0xff]
  %v2533 = vld [vmem:[%s14 + $0xf0] sm:$0xff]
  %v2534 = vld [vmem:[%s14 + $0xf8] sm:$0xff]
  %v2535 = vld [vmem:[%s14 + $0x100] sm:$0xff]
  %v2536 = vld [vmem:[%s14 + $0x108] sm:$0xff]
  %v2537 = vld [vmem:[%s14 + $0x110] sm:$0xff]
  %v2538 = vld [vmem:[%s14 + $0x118] sm:$0xff]
  %v2539 = vld [vmem:[%s14 + $0x120] sm:$0xff]
  %v2540 = vld [vmem:[%s14 + $0x128] sm:$0xff]
  %v2541 = vld [vmem:[%s14 + $0x130] sm:$0xff]
  %v2542 = vld [vmem:[%s14 + $0x138] sm:$0xff]
  %v2543 = vld [vmem:[%s14 + $0x140] sm:$0xff]
  %v2544 = vld [vmem:[%s14 + $0x148] sm:$0xff]
  %v2545 = vld [vmem:[%s14 + $0x150] sm:$0xff]
  %v2546 = vld [vmem:[%s14 + $0x158] sm:$0xff]
  %v2547 = vld [vmem:[%s14 + $0x160] sm:$0xff]
  %v2548 = vld [vmem:[%s14 + $0x168] sm:$0xff]
  %v2549 = vld [vmem:[%s14 + $0x170] sm:$0xff]
  %v2550 = vld [vmem:[%s14 + $0x178] sm:$0xff]
  %v2551 = vld [vmem:[%s14 + $0x180] sm:$0xff]
  %v2552 = vld [vmem:[%s14 + $0x188] sm:$0xff]
  %v2553 = vld [vmem:[%s14 + $0x190] sm:$0xff]
  %v2554 = vld [vmem:[%s14 + $0x198] sm:$0xff]
  %v2555 = vld [vmem:[%s14 + $0x1a0] sm:$0xff]
  %v2556 = vld [vmem:[%s14 + $0x1a8] sm:$0xff]
  %v2557 = vld [vmem:[%s14 + $0x1b0] sm:$0xff]
  %v2558 = vld [vmem:[%s14 + $0x1b8] sm:$0xff]
  %v2559 = vld [vmem:[%s14 + $0x1c0] sm:$0xff]
  %v2560 = vld [vmem:[%s14 + $0x1c8] sm:$0xff]
  %v2561 = vld [vmem:[%s14 + $0x1d0] sm:$0xff]
  %v2562 = vld [vmem:[%s14 + $0x1d8] sm:$0xff]
  %v2563 = vld [vmem:[%s14 + $0x1e0] sm:$0xff]
  %v2564 = vld [vmem:[%s14 + $0x1e8] sm:$0xff]
  %v2565 = vld [vmem:[%s14 + $0x1f0] sm:$0xff]
  %v2566 = vld [vmem:[%s14 + $0x1f8] sm:$0xff]
  %v2567 = vld [vmem:[%s14 + $0x200] sm:$0xff]
  %v2568 = vld [vmem:[%s14 + $0x208] sm:$0xff]
  %v2569 = vld [vmem:[%s14 + $0x210] sm:$0xff]
  %v2570 = vld [vmem:[%s14 + $0x218] sm:$0xff]
  %v2571 = vld [vmem:[%s14 + $0x220] sm:$0xff]
  %v2572 = vld [vmem:[%s14 + $0x228] sm:$0xff]
  %v2573 = vld [vmem:[%s14 + $0x230] sm:$0xff]
  %v2574 = vld [vmem:[%s14 + $0x238] sm:$0xff]
  %v2575 = vld [vmem:[%s14 + $0x240] sm:$0xff]
  %v2576 = vld [vmem:[%s14 + $0x248] sm:$0xff]
  %v2577 = vld [vmem:[%s14 + $0x250] sm:$0xff]
  %v2578 = vld [vmem:[%s14 + $0x258] sm:$0xff]
  %v2579 = vld [vmem:[%s14 + $0x260] sm:$0xff]
  %v2580 = vld [vmem:[%s14 + $0x268] sm:$0xff]
  %v2581 = vld [vmem:[%s14 + $0x270] sm:$0xff]
  %v2582 = vld [vmem:[%s14 + $0x278] sm:$0xff]
  %v2583 = vld [vmem:[%s14 + $0x280] sm:$0xff]
  %v2584 = vld [vmem:[%s14 + $0x288] sm:$0xff]
  %v2585 = vld [vmem:[%s14 + $0x290] sm:$0xff]
  %v2586 = vld [vmem:[%s14 + $0x298] sm:$0xff]
  %v2587 = vld [vmem:[%s14 + $0x2a0] sm:$0xff]
  %v2588 = vld [vmem:[%s14 + $0x2a8] sm:$0xff]
  %v2589 = vld [vmem:[%s14 + $0x2b0] sm:$0xff]
  %v2590 = vld [vmem:[%s14 + $0x2b8] sm:$0xff]
  %v2591 = vld [vmem:[%s14 + $0x2c0] sm:$0xff]
  %v2592 = vld [vmem:[%s14 + $0x2c8] sm:$0xff]
  %v2593 = vld [vmem:[%s14 + $0x2d0] sm:$0xff]
  %v2594 = vld [vmem:[%s14 + $0x2d8] sm:$0xff]
  %v2595 = vld [vmem:[%s14 + $0x2e0] sm:$0xff]
  %v2596 = vld [vmem:[%s14 + $0x2e8] sm:$0xff]
  %v2597 = vld [vmem:[%s14 + $0x2f0] sm:$0xff]
  %v2598 = vld [vmem:[%s14 + $0x2f8] sm:$0xff]
  %v2599 = vld [vmem:[%s14 + $0x300] sm:$0xff]
  %v2600 = vld [vmem:[%s14 + $0x308] sm:$0xff]
  %v2601 = vld [vmem:[%s14 + $0x310] sm:$0xff]
  %v2602 = vld [vmem:[%s14 + $0x318] sm:$0xff]
  %v2603 = vld [vmem:[%s14 + $0x320] sm:$0xff]
  %v2604 = vld [vmem:[%s14 + $0x328] sm:$0xff]
  %v2605 = vld [vmem:[%s14 + $0x330] sm:$0xff]
  %v2606 = vld [vmem:[%s14 + $0x338] sm:$0xff]
  %v2607 = vld [vmem:[%s14 + $0x340] sm:$0xff]
  %v2608 = vld [vmem:[%s14 + $0x348] sm:$0xff]
  %v2609 = vld [vmem:[%s14 + $0x350] sm:$0xff]
  %v2610 = vld [vmem:[%s14 + $0x358] sm:$0xff]
  %v2611 = vld [vmem:[%s14 + $0x360] sm:$0xff]
  %v2612 = vld [vmem:[%s14 + $0x368] sm:$0xff]
  %v2613 = vld [vmem:[%s14 + $0x370] sm:$0xff]
  %v2614 = vld [vmem:[%s14 + $0x378] sm:$0xff]
  %v2615 = vld [vmem:[%s14 + $0x380] sm:$0xff]
  %v2616 = vld [vmem:[%s14 + $0x388] sm:$0xff]
  %v2617 = vld [vmem:[%s14 + $0x390] sm:$0xff]
  %v2618 = vld [vmem:[%s14 + $0x398] sm:$0xff]
  %v2619 = vld [vmem:[%s14 + $0x3a0] sm:$0xff]
  %v2620 = vld [vmem:[%s14 + $0x3a8] sm:$0xff]
  %v2621 = vld [vmem:[%s14 + $0x3b0] sm:$0xff]
  %v2622 = vld [vmem:[%s14 + $0x3b8] sm:$0xff]
  %v2623 = vld [vmem:[%s14 + $0x3c0] sm:$0xff]
  %v2624 = vld [vmem:[%s14 + $0x3c8] sm:$0xff]
  %v2625 = vld [vmem:[%s14 + $0x3d0] sm:$0xff]
  %v2626 = vld [vmem:[%s14 + $0x3d8] sm:$0xff]
  %v2627 = vld [vmem:[%s14 + $0x3e0] sm:$0xff]
  %v2628 = vld [vmem:[%s14 + $0x3e8] sm:$0xff]
  %v2629 = vld [vmem:[%s14 + $0x3f0] sm:$0xff]
  %v2630 = vld [vmem:[%s14 + $0x3f8] sm:$0xff]
  %v2631 = vld [vmem:[%s15] sm:$0x1]
  %v2633 = vlaneseq
  %v2634 = vshrl.u32 %v2633, 7
  %v2635 = vsub.s32 0, %v2634
  %v2636 = vrot.slane %v2631, %v2635
  %2638 = vmatprep.subr.mxu0 0.0
  %2639 = vmatpush1.msra.mxu0 %v2503
  %2640 = vmatprep.subr.mxu0 0.0
  %2641 = vmatpush1.msra.mxu0 %v2504
  %2642 = vmatprep.subr.mxu0 0.0
  %2643 = vmatpush1.msra.mxu0 %v2505
  %2644 = vmatprep.subr.mxu0 0.0
  %2645 = vmatpush1.msra.mxu0 %v2506
  %2646 = vmatprep.subr.mxu0 0.0
  %2647 = vmatpush1.msra.mxu0 %v2507
  %2648 = vmatprep.subr.mxu0 0.0
  %2649 = vmatpush1.msra.mxu0 %v2508
  %2650 = vmatprep.subr.mxu0 0.0
  %2651 = vmatpush1.msra.mxu0 %v2509
  %2652 = vmatprep.subr.mxu0 0.0
  %2653 = vmatpush1.msra.mxu0 %v2510
  %2654 = vmatprep.subr.mxu0 0.0
  %2655 = vmatpush1.msra.mxu0 %v2511
  %2656 = vmatprep.subr.mxu0 0.0
  %2657 = vmatpush1.msra.mxu0 %v2512
  %2658 = vmatprep.subr.mxu0 0.0
  %2659 = vmatpush1.msra.mxu0 %v2513
  %2660 = vmatprep.subr.mxu0 0.0
  %2661 = vmatpush1.msra.mxu0 %v2514
  %2662 = vmatprep.subr.mxu0 0.0
  %2663 = vmatpush1.msra.mxu0 %v2515
  %2664 = vmatprep.subr.mxu0 0.0
  %2665 = vmatpush1.msra.mxu0 %v2516
  %2666 = vmatprep.subr.mxu0 0.0
  %2667 = vmatpush1.msra.mxu0 %v2517
  %2668 = vmatprep.subr.mxu0 0.0
  %2669 = vmatpush1.msra.mxu0 %v2518
  %2670 = vmatprep.subr.mxu0 0.0
  %2671 = vmatpush1.msra.mxu0 %v2519
  %2672 = vmatprep.subr.mxu0 0.0
  %2673 = vmatpush1.msra.mxu0 %v2520
  %2674 = vmatprep.subr.mxu0 0.0
  %2675 = vmatpush1.msra.mxu0 %v2521
  %2676 = vmatprep.subr.mxu0 0.0
  %2677 = vmatpush1.msra.mxu0 %v2522
  %2678 = vmatprep.subr.mxu0 0.0
  %2679 = vmatpush1.msra.mxu0 %v2523
  %2680 = vmatprep.subr.mxu0 0.0
  %2681 = vmatpush1.msra.mxu0 %v2524
  %2682 = vmatprep.subr.mxu0 0.0
  %2683 = vmatpush1.msra.mxu0 %v2525
  %2684 = vmatprep.subr.mxu0 0.0
  %2685 = vmatpush1.msra.mxu0 %v2526
  %2686 = vmatprep.subr.mxu0 0.0
  %2687 = vmatpush1.msra.mxu0 %v2527
  %2688 = vmatprep.subr.mxu0 0.0
  %2689 = vmatpush1.msra.mxu0 %v2528
  %2690 = vmatprep.subr.mxu0 0.0
  %2691 = vmatpush1.msra.mxu0 %v2529
  %2692 = vmatprep.subr.mxu0 0.0
  %2693 = vmatpush1.msra.mxu0 %v2530
  %2694 = vmatprep.subr.mxu0 0.0
  %2695 = vmatpush1.msra.mxu0 %v2531
  %2696 = vmatprep.subr.mxu0 0.0
  %2697 = vmatpush1.msra.mxu0 %v2532
  %2698 = vmatprep.subr.mxu0 0.0
  %2699 = vmatpush1.msra.mxu0 %v2533
  %2700 = vmatprep.subr.mxu0 0.0
  %2701 = vmatpush1.msra.mxu0 %v2534
  %2702 = vmatprep.mubr.f32.mxu0 %v2488
  %2703 = vmatmul.mubr.f32.gmra.mrb[0].mxu0 %v2487
  %v2704 = vpop.f32.mrb[0].mxu0
  %v2705 = vadd.f32 %v2636, %v2704
  %v2706 = vpop.f32.mrb[0].mxu0
  %2707 = vmatprep.mubr.f32.mxu0 %v2496
  %2708 = vmatmul.mubr.f32.gmra.mrb[0].mxu0 %v2495
  %v2709 = vpop.f32.mrb[0].mxu0
  %v2710 = vadd.f32 %v2636, %v2709
  %v2711 = vpop.f32.mrb[0].mxu0
  %2712 = vdwg.mxu0
  %2713 = vmatprep.subr.mxu0 0.0
  %2714 = vmatpush1.msra.mxu0 %v2535
  %2715 = vmatprep.subr.mxu0 0.0
  %2716 = vmatpush1.msra.mxu0 %v2536
  %2717 = vmatprep.subr.mxu0 0.0
  %2718 = vmatpush1.msra.mxu0 %v2537
  %2719 = vmatprep.subr.mxu0 0.0
  %2720 = vmatpush1.msra.mxu0 %v2538
  %2721 = vmatprep.subr.mxu0 0.0
  %2722 = vmatpush1.msra.mxu0 %v2539
  %2723 = vmatprep.subr.mxu0 0.0
  %2724 = vmatpush1.msra.mxu0 %v2540
  %2725 = vmatprep.subr.mxu0 0.0
  %2726 = vmatpush1.msra.mxu0 %v2541
  %2727 = vmatprep.subr.mxu0 0.0
  %2728 = vmatpush1.msra.mxu0 %v2542
  %2729 = vmatprep.subr.mxu0 0.0
  %2730 = vmatpush1.msra.mxu0 %v2543
  %2731 = vmatprep.subr.mxu0 0.0
  %2732 = vmatpush1.msra.mxu0 %v2544
  %2733 = vmatprep.subr.mxu0 0.0
  %2734 = vmatpush1.msra.mxu0 %v2545
  %2735 = vmatprep.subr.mxu0 0.0
  %2736 = vmatpush1.msra.mxu0 %v2546
  %2737 = vmatprep.subr.mxu0 0.0
  %2738 = vmatpush1.msra.mxu0 %v2547
  %2739 = vmatprep.subr.mxu0 0.0
  %2740 = vmatpush1.msra.mxu0 %v2548
  %2741 = vmatprep.subr.mxu0 0.0
  %2742 = vmatpush1.msra.mxu0 %v2549
  %2743 = vmatprep.subr.mxu0 0.0
  %2744 = vmatpush1.msra.mxu0 %v2550
  %2745 = vmatprep.subr.mxu0 0.0
  %2746 = vmatpush1.msra.mxu0 %v2551
  %2747 = vmatprep.subr.mxu0 0.0
  %2748 = vmatpush1.msra.mxu0 %v2552
  %2749 = vmatprep.subr.mxu0 0.0
  %2750 = vmatpush1.msra.mxu0 %v2553
  %2751 = vmatprep.subr.mxu0 0.0
  %2752 = vmatpush1.msra.mxu0 %v2554
  %2753 = vmatprep.subr.mxu0 0.0
  %2754 = vmatpush1.msra.mxu0 %v2555
  %2755 = vmatprep.subr.mxu0 0.0
  %2756 = vmatpush1.msra.mxu0 %v2556
  %2757 = vmatprep.subr.mxu0 0.0
  %2758 = vmatpush1.msra.mxu0 %v2557
  %2759 = vmatprep.subr.mxu0 0.0
  %2760 = vmatpush1.msra.mxu0 %v2558
  %2761 = vmatprep.subr.mxu0 0.0
  %2762 = vmatpush1.msra.mxu0 %v2559
  %2763 = vmatprep.subr.mxu0 0.0
  %2764 = vmatpush1.msra.mxu0 %v2560
  %2765 = vmatprep.subr.mxu0 0.0
  %2766 = vmatpush1.msra.mxu0 %v2561
  %2767 = vmatprep.subr.mxu0 0.0
  %2768 = vmatpush1.msra.mxu0 %v2562
  %2769 = vmatprep.subr.mxu0 0.0
  %2770 = vmatpush1.msra.mxu0 %v2563
  %2771 = vmatprep.subr.mxu0 0.0
  %2772 = vmatpush1.msra.mxu0 %v2564
  %2773 = vmatprep.subr.mxu0 0.0
  %2774 = vmatpush1.msra.mxu0 %v2565
  %2775 = vmatprep.subr.mxu0 0.0
  %2776 = vmatpush1.msra.mxu0 %v2566
  %2777 = vmatprep.mubr.f32.mxu0 %v2490
  %2778 = vmatmul.mubr.f32.gmra.mrb[0].mxu0 %v2489
  %v2779 = vpop.f32.mrb[0].mxu0
  %v2780 = vadd.f32 %v2705, %v2779
  %v2781 = vpop.f32.mrb[0].mxu0
  %2782 = vmatprep.mubr.f32.mxu0 %v2498
  %2783 = vmatmul.mubr.f32.gmra.mrb[0].mxu0 %v2497
  %v2784 = vpop.f32.mrb[0].mxu0
  %v2785 = vadd.f32 %v2710, %v2784
  %v2786 = vpop.f32.mrb[0].mxu0
  %2787 = vdwg.mxu0
  %2788 = vmatprep.subr.mxu0 0.0
  %2789 = vmatpush1.msra.mxu0 %v2567
  %2790 = vmatprep.subr.mxu0 0.0
  %2791 = vmatpush1.msra.mxu0 %v2568
  %2792 = vmatprep.subr.mxu0 0.0
  %2793 = vmatpush1.msra.mxu0 %v2569
  %2794 = vmatprep.subr.mxu0 0.0
  %2795 = vmatpush1.msra.mxu0 %v2570
  %2796 = vmatprep.subr.mxu0 0.0
  %2797 = vmatpush1.msra.mxu0 %v2571
  %2798 = vmatprep.subr.mxu0 0.0
  %2799 = vmatpush1.msra.mxu0 %v2572
  %2800 = vmatprep.subr.mxu0 0.0
  %2801 = vmatpush1.msra.mxu0 %v2573
  %2802 = vmatprep.subr.mxu0 0.0
  %2803 = vmatpush1.msra.mxu0 %v2574
  %2804 = vmatprep.subr.mxu0 0.0
  %2805 = vmatpush1.msra.mxu0 %v2575
  %2806 = vmatprep.subr.mxu0 0.0
  %2807 = vmatpush1.msra.mxu0 %v2576
  %2808 = vmatprep.subr.mxu0 0.0
  %2809 = vmatpush1.msra.mxu0 %v2577
  %2810 = vmatprep.subr.mxu0 0.0
  %2811 = vmatpush1.msra.mxu0 %v2578
  %2812 = vmatprep.subr.mxu0 0.0
  %2813 = vmatpush1.msra.mxu0 %v2579
  %2814 = vmatprep.subr.mxu0 0.0
  %2815 = vmatpush1.msra.mxu0 %v2580
  %2816 = vmatprep.subr.mxu0 0.0
  %2817 = vmatpush1.msra.mxu0 %v2581
  %2818 = vmatprep.subr.mxu0 0.0
  %2819 = vmatpush1.msra.mxu0 %v2582
  %2820 = vmatprep.subr.mxu0 0.0
  %2821 = vmatpush1.msra.mxu0 %v2583
  %2822 = vmatprep.subr.mxu0 0.0
  %2823 = vmatpush1.msra.mxu0 %v2584
  %2824 = vmatprep.subr.mxu0 0.0
  %2825 = vmatpush1.msra.mxu0 %v2585
  %2826 = vmatprep.subr.mxu0 0.0
  %2827 = vmatpush1.msra.mxu0 %v2586
  %2828 = vmatprep.subr.mxu0 0.0
  %2829 = vmatpush1.msra.mxu0 %v2587
  %2830 = vmatprep.subr.mxu0 0.0
  %2831 = vmatpush1.msra.mxu0 %v2588
  %2832 = vmatprep.subr.mxu0 0.0
  %2833 = vmatpush1.msra.mxu0 %v2589
  %2834 = vmatprep.subr.mxu0 0.0
  %2835 = vmatpush1.msra.mxu0 %v2590
  %2836 = vmatprep.subr.mxu0 0.0
  %2837 = vmatpush1.msra.mxu0 %v2591
  %2838 = vmatprep.subr.mxu0 0.0
  %2839 = vmatpush1.msra.mxu0 %v2592
  %2840 = vmatprep.subr.mxu0 0.0
  %2841 = vmatpush1.msra.mxu0 %v2593
  %2842 = vmatprep.subr.mxu0 0.0
  %2843 = vmatpush1.msra.mxu0 %v2594
  %2844 = vmatprep.subr.mxu0 0.0
  %2845 = vmatpush1.msra.mxu0 %v2595
  %2846 = vmatprep.subr.mxu0 0.0
  %2847 = vmatpush1.msra.mxu0 %v2596
  %2848 = vmatprep.subr.mxu0 0.0
  %2849 = vmatpush1.msra.mxu0 %v2597
  %2850 = vmatprep.subr.mxu0 0.0
  %2851 = vmatpush1.msra.mxu0 %v2598
  %2852 = vmatprep.mubr.f32.mxu0 %v2492
  %2853 = vmatmul.mubr.f32.gmra.mrb[0].mxu0 %v2491
  %v2854 = vpop.f32.mrb[0].mxu0
  %v2855 = vadd.f32 %v2780, %v2854
  %v2856 = vpop.f32.mrb[0].mxu0
  %2857 = vmatprep.mubr.f32.mxu0 %v2500
  %2858 = vmatmul.mubr.f32.gmra.mrb[0].mxu0 %v2499
  %v2859 = vpop.f32.mrb[0].mxu0
  %v2860 = vadd.f32 %v2785, %v2859
  %v2861 = vpop.f32.mrb[0].mxu0
  %2862 = vdwg.mxu0
  %2863 = vmatprep.subr.mxu0 0.0
  %2864 = vmatpush1.msra.mxu0 %v2599
  %2865 = vmatprep.subr.mxu0 0.0
  %2866 = vmatpush1.msra.mxu0 %v2600
  %2867 = vmatprep.subr.mxu0 0.0
  %2868 = vmatpush1.msra.mxu0 %v2601
  %2869 = vmatprep.subr.mxu0 0.0
  %2870 = vmatpush1.msra.mxu0 %v2602
  %2871 = vmatprep.subr.mxu0 0.0
  %2872 = vmatpush1.msra.mxu0 %v2603
  %2873 = vmatprep.subr.mxu0 0.0
  %2874 = vmatpush1.msra.mxu0 %v2604
  %2875 = vmatprep.subr.mxu0 0.0
  %2876 = vmatpush1.msra.mxu0 %v2605
  %2877 = vmatprep.subr.mxu0 0.0
  %2878 = vmatpush1.msra.mxu0 %v2606
  %2879 = vmatprep.subr.mxu0 0.0
  %2880 = vmatpush1.msra.mxu0 %v2607
  %2881 = vmatprep.subr.mxu0 0.0
  %2882 = vmatpush1.msra.mxu0 %v2608
  %2883 = vmatprep.subr.mxu0 0.0
  %2884 = vmatpush1.msra.mxu0 %v2609
  %2885 = vmatprep.subr.mxu0 0.0
  %2886 = vmatpush1.msra.mxu0 %v2610
  %2887 = vmatprep.subr.mxu0 0.0
  %2888 = vmatpush1.msra.mxu0 %v2611
  %2889 = vmatprep.subr.mxu0 0.0
  %2890 = vmatpush1.msra.mxu0 %v2612
  %2891 = vmatprep.subr.mxu0 0.0
  %2892 = vmatpush1.msra.mxu0 %v2613
  %2893 = vmatprep.subr.mxu0 0.0
  %2894 = vmatpush1.msra.mxu0 %v2614
  %2895 = vmatprep.subr.mxu0 0.0
  %2896 = vmatpush1.msra.mxu0 %v2615
  %2897 = vmatprep.subr.mxu0 0.0
  %2898 = vmatpush1.msra.mxu0 %v2616
  %2899 = vmatprep.subr.mxu0 0.0
  %2900 = vmatpush1.msra.mxu0 %v2617
  %2901 = vmatprep.subr.mxu0 0.0
  %2902 = vmatpush1.msra.mxu0 %v2618
  %2903 = vmatprep.subr.mxu0 0.0
  %2904 = vmatpush1.msra.mxu0 %v2619
  %2905 = vmatprep.subr.mxu0 0.0
  %2906 = vmatpush1.msra.mxu0 %v2620
  %2907 = vmatprep.subr.mxu0 0.0
  %2908 = vmatpush1.msra.mxu0 %v2621
  %2909 = vmatprep.subr.mxu0 0.0
  %2910 = vmatpush1.msra.mxu0 %v2622
  %2911 = vmatprep.subr.mxu0 0.0
  %2912 = vmatpush1.msra.mxu0 %v2623
  %2913 = vmatprep.subr.mxu0 0.0
  %2914 = vmatpush1.msra.mxu0 %v2624
  %2915 = vmatprep.subr.mxu0 0.0
  %2916 = vmatpush1.msra.mxu0 %v2625
  %2917 = vmatprep.subr.mxu0 0.0
  %2918 = vmatpush1.msra.mxu0 %v2626
  %2919 = vmatprep.subr.mxu0 0.0
  %2920 = vmatpush1.msra.mxu0 %v2627
  %2921 = vmatprep.subr.mxu0 0.0
  %2922 = vmatpush1.msra.mxu0 %v2628
  %2923 = vmatprep.subr.mxu0 0.0
  %2924 = vmatpush1.msra.mxu0 %v2629
  %2925 = vmatprep.subr.mxu0 0.0
  %2926 = vmatpush1.msra.mxu0 %v2630
  %2927 = vmatprep.mubr.f32.mxu0 %v2494
  %2928 = vmatmul.mubr.f32.gmra.mrb[0].mxu0 %v2493
  %v2929 = vpop.f32.mrb[0].mxu0
  %v2930 = vadd.f32 %v2855, %v2929
  %v2931 = vpop.f32.mrb[0].mxu0
  %2932 = vmatprep.mubr.f32.mxu0 %v2502
  %2933 = vmatmul.mubr.f32.gmra.mrb[0].mxu0 %v2501
  %v2934 = vpop.f32.mrb[0].mxu0
  %v2935 = vadd.f32 %v2860, %v2934
  %v2936 = vpop.f32.mrb[0].mxu0
  %2937 = vdwg.mxu0
  %v2938 = vadd.f32 %v2097, %v2930
  %v2939 = vadd.f32 %v2098, %v2935
  %v2940 = vld [vmem:[%s11] sm:$0x3]
  %v2941 = vsel %vm157, %v2938, 0.0
  %2942 = vadd.xlane.f32.xlu0 %v2941
  %v2943 = vpop.xlane.xlu0 %2942
  %v2944 = vsel %vm157, %v2939, 0.0
  %2945 = vadd.xlane.f32.xlu0 %v2944
  %v2946 = vpop.xlane.xlu0 %2945
  %v2947 = vmul.f32 %v2943, %v2066
  %v2948 = vmul.f32 %v2946, %v2066
  %v2949 = vsub.f32 %v2938, %v2947
  %v2950 = vsub.f32 %v2939, %v2948
  %v2951 = vmul.f32 %v2949, %v2949
  %v2952 = vmul.f32 %v2950, %v2950
  %v2953 = vsel %vm157, %v2951, 0.0
  %2954 = vadd.xlane.f32.xlu0 %v2953
  %v2955 = vpop.xlane.xlu0 %2954
  %v2956 = vsel %vm157, %v2952, 0.0
  %2957 = vadd.xlane.f32.xlu0 %v2956
  %v2958 = vpop.xlane.xlu0 %2957
  %v2959 = vmul.f32 %v2955, %v2066
  %v2960 = vmul.f32 %v2958, %v2066
  %v2961 = vadd.f32 %v2959, 1e-05
  %v2962 = vadd.f32 %v2960, 1e-05
  %v2963 = vrsqrt.pop %v2961
  %v2964 = vrsqrt.pop %v2962
  %v2965 = vmul.f32 %v2949, %v2963
  %v2966 = vmul.f32 %v2950, %v2964
  %v2967 = vlaneseq
  %v2968 = vshrl.u32 %v2967, 7
  %v2969 = vsub.s32 0, %v2968
  %v2970 = vrot.slane %v2940, %v2969
  %v2971 = vmul.f32 %v2965, %v2970
  %v2972 = vmul.f32 %v2966, %v2970
  %v2973 = vlaneseq
  %v2974 = vshrl.u32 %v2973, 7
  %v2975 = vsub.s32 1, %v2974
  %v2976 = vrot.slane %v2940, %v2975
  %v2977 = vadd.f32 %v2971, %v2976
  %v2978 = vadd.f32 %v2972, %v2976
  %2979 = vst.msk [vmem:[%s16] sm:$0xff] %vm157, %v2977
  %2980 = vst.msk [vmem:[%s16 + $0x8] sm:$0xff] %vm157, %v2978
  // Predicated region
  $region66: #{cross_modal_relation_att_forward.1} parent=0 // pred_check
    _
  $region67: #{cross_modal_relation_att_forward.1} parent=0 // pred_check_branch
    %2982 = sbr.rel (0) target = $region69
  $region68: #{cross_modal_relation_att_forward.1} parent=0 // pred_region
    _
  $region69: #{cross_modal_relation_att_forward.1} parent=0 // pred_fallthru
    _
  // Predicated region
  $region70: #{cross_modal_relation_att_forward.1} parent=0 // pred_check
    _
  $region71: #{cross_modal_relation_att_forward.1} parent=0 // pred_check_branch
    %2984 = sbr.rel (0) target = $region73
  $region72: #{cross_modal_relation_att_forward.1} parent=0 // pred_region
    _
  $region73: #{cross_modal_relation_att_forward.1} parent=0 // pred_fallthru
    _

</llo_original>
